<compile_context>
chip_gen: v5e
topology: v5e:2x2
jax: 0.10.0
libtpu: 0.0.40
codegen_flags: <defaults>
</compile_context>

<pallas_src>
import functools

import jax
import jax.numpy as jnp
from jax.experimental import pallas as pl
from jax.experimental.pallas import tpu as pltpu


def _layernorm(x, gamma, beta, eps=1e-6):
    # PyTorch nn.LayerNorm(eps=1e-6): biased variance over the last dim, f32.
    mean = jnp.mean(x, axis=-1, keepdims=True)
    var = jnp.mean((x - mean) ** 2, axis=-1, keepdims=True)
    return (x - mean) * jax.lax.rsqrt(var + eps) * gamma + beta


def _attention_block_kernel(n_head, d_k, d_v, with_mask, with_attn, *refs):
    """One grid step == one tile of `bt` batch elements; everything in VMEM."""
    q_ref, k_ref, v_ref = refs[0], refs[1], refs[2]
    pos = 3
    mask_ref = None
    if with_mask:
        mask_ref = refs[pos]
        pos += 1
    (wq_ref, wk_ref, wv_ref, wfc_ref,
     ln1_g_ref, ln1_b_ref,
     w1_ref, b1_ref, w2_ref, b2_ref,
     ln2_g_ref, ln2_b_ref) = refs[pos:pos + 12]
    pos += 12
    out_ref = refs[pos]
    pos += 1
    attn_ref = refs[pos] if with_attn else None

    bt, Lq, D = q_ref.shape
    Lk = k_ref.shape[1]
    H = n_head
    cd = wq_ref.dtype                       # matmul compute dtype (f32 / bf16)

    qin = q_ref[...].reshape(bt * Lq, D)    # leading-dim merge: free
    residual = qin.astype(jnp.float32)
    q2 = qin.astype(cd)
    k2 = k_ref[...].reshape(bt * Lk, D).astype(cd)
    v2 = v_ref[...].reshape(bt * Lk, D).astype(cd)

    # --- projections: one MXU matmul each, M = bt*L rows.
    #     1/sqrt(d_k) is already folded into wq (prepare_params).
    qp = jnp.dot(q2, wq_ref[...], preferred_element_type=jnp.float32)
    kp = jnp.dot(k2, wk_ref[...], preferred_element_type=jnp.float32)
    vp = jnp.dot(v2, wv_ref[...], preferred_element_type=jnp.float32)

    # --- split heads and move them into the batch dim: (bt*H, L, d) ---
    q3 = jnp.transpose(qp.reshape(bt, Lq, H, d_k),
                       (0, 2, 1, 3)).reshape(bt * H, Lq, d_k).astype(cd)
    k3 = jnp.transpose(kp.reshape(bt, Lk, H, d_k),
                       (0, 2, 1, 3)).reshape(bt * H, Lk, d_k).astype(cd)
    v3 = jnp.transpose(vp.reshape(bt, Lk, H, d_v),
                       (0, 2, 1, 3)).reshape(bt * H, Lk, d_v).astype(cd)

    # --- one batched scores matmul over all bt*H sequences ---
    s = jnp.einsum("bqd,bkd->bqk", q3, k3,
                   preferred_element_type=jnp.float32)       # (bt*H, Lq, Lk)
    s4 = s.reshape(bt, H, Lq, Lk)
    if mask_ref is not None:
        s4 = jnp.where(mask_ref[...][:, None, :, :] == 0.0, -1e9, s4)

    # --- one softmax over the whole (bt, H, Lq, Lk) tensor, f32 math ---
    s4 = s4 - jnp.max(s4, axis=-1, keepdims=True)
    e = jnp.exp(s4)
    denom = jnp.sum(e, axis=-1, keepdims=True)
    inv = pl.reciprocal(denom, approx=True)                  # EUP slot
    inv = inv * (2.0 - denom * inv)                          # 1 Newton step -> f32 parity
    p4 = e * inv
    if attn_ref is not None:
        attn_ref[...] = p4.astype(attn_ref.dtype)            # single lane-dense store

    # --- one batched PV matmul, then one fc matmul with K = D ---
    ctx3 = jnp.einsum("bqk,bkd->bqd",
                      p4.reshape(bt * H, Lq, Lk).astype(cd), v3,
                      preferred_element_type=jnp.float32)    # (bt*H, Lq, d_v)
    ctx = jnp.transpose(ctx3.reshape(bt, H, Lq, d_v),
                        (0, 2, 1, 3)).reshape(bt * Lq, H * d_v)

    x = jnp.dot(ctx.astype(cd), wfc_ref[...],
                preferred_element_type=jnp.float32) + residual
    x = _layernorm(x, ln1_g_ref[...], ln1_b_ref[...])

    # --- positionwise feed-forward + residual + layernorm ---
    h1 = jnp.maximum(
        jnp.dot(x.astype(cd), w1_ref[...], preferred_element_type=jnp.float32)
        + b1_ref[...], 0.0)
    y = (jnp.dot(h1.astype(cd), w2_ref[...], preferred_element_type=jnp.float32)
         + b2_ref[...] + x)
    y = _layernorm(y, ln2_g_ref[...], ln2_b_ref[...])
    out_ref[...] = y.reshape(bt, Lq, D).astype(out_ref.dtype)


def _vmem_limit_bytes():
    cap = 64 * 1024 * 1024                       # v7x-safe fallback
    try:
        info = pltpu.get_tpu_info()
        cap = int(getattr(info, "vmem_capacity_bytes", cap) or cap)
    except Exception:
        pass
    return int(min(cap * 3 // 4, 100 * 1024 * 1024))


def _pick_batch_tile(B, Lq, Lk, D, hid, n_head, weight_itemsize,
                     vmem_limit_bytes, target_rows=512, min_steps=2):
    """Batch tile sized by matmul rows AND a rough VMEM activation budget,
    keeping >= 2 grid steps when B >= 2 (v7x megacore)."""
    bt = max(1, target_rows // max(Lq, 1))
    # Rough f32 activation bytes per batch element inside one grid step.
    per_seq = 4 * ((Lq + 2 * Lk) * D * 2          # q/k/v tiles (double-buffered)
                   + 3 * max(Lq, Lk) * D          # projections
                   + 4 * n_head * Lq * Lk         # scores / probs / attn writeback
                   + Lq * hid                     # FFN hidden
                   + 6 * Lq * D)                  # residual / ctx / out
    weights = weight_itemsize * (4 * D * D + 2 * D * hid) + 4 * (6 * D + hid)
    act_budget = max(vmem_limit_bytes - 2 * weights, vmem_limit_bytes // 4)
    bt = min(bt, max(1, (act_budget // 2) // max(per_seq, 1)))
    bt = min(bt, B)
    if B >= min_steps:
        bt = min(bt, -(-B // min_steps))
    return max(int(bt), 1)


def prepare_params(params, n_head, compute_dtype=jnp.float32):
    """One-time weight prep: fold 1/sqrt(d_k) into wq, cast matmul weights."""
    D = params["wq"].shape[0]
    d_k = D // n_head
    cd = compute_dtype
    p = dict(params)
    p["wq"] = (params["wq"] * (1.0 / (d_k ** 0.5))).astype(cd)
    for name in ("wk", "wv", "wfc", "w1", "w2"):
        p[name] = params[name].astype(cd)
    for name in ("ln1_g", "ln1_b", "b1", "b2", "ln2_g", "ln2_b"):
        p[name] = params[name].astype(jnp.float32)
    return p


def attention_block_kvcache(q, k, v, params, n_head, *,
                            mask=None,
                            return_attn=True,
                            compute_dtype=jnp.float32,
                            out_dtype=None,
                            batch_rows_target=512,
                            prepared=False):
    B, Lq, D = q.shape
    Lk = k.shape[1]
    d_k = D // n_head
    d_v = d_k
    cd = compute_dtype
    if not prepared:
        params = prepare_params(params, n_head, cd)
    hid = params["w1"].shape[1]
    if out_dtype is None:
        out_dtype = jnp.bfloat16 if cd == jnp.bfloat16 else jnp.float32

    vmem_limit = _vmem_limit_bytes()
    bt = _pick_batch_tile(B, Lq, Lk, D, hid, n_head,
                          jnp.dtype(cd).itemsize, vmem_limit,
                          target_rows=batch_rows_target)
    Bp = -(-B // bt) * bt
    pad = Bp - B
    grid = (Bp // bt,)

    qc, kc, vc = q.astype(cd), k.astype(cd), v.astype(cd)
    if pad:
        zpad = ((0, pad), (0, 0), (0, 0))
        qc = jnp.pad(qc, zpad)
        kc = jnp.pad(kc, zpad)
        vc = jnp.pad(vc, zpad)

    with_mask = mask is not None
    mask_args = []
    if with_mask:
        m = mask.astype(jnp.float32)
        if m.ndim == 4:                       # (B, 1, Lq, Lk) PyTorch style
            m = m[:, 0]
        m = jnp.broadcast_to(m.reshape(B, -1, Lk), (B, Lq, Lk))
        if pad:
            m = jnp.pad(m, ((0, pad), (0, 0), (0, 0)), constant_values=1.0)
        mask_args = [m]

    kernel = functools.partial(_attention_block_kernel, n_head, d_k, d_v,
                               with_mask, return_attn)

    def _call(single_buffer_weights):
        if single_buffer_weights:
            const = lambda shape: pl.BlockSpec(
                shape, lambda i: (0,) * len(shape),
                pipeline_mode=pl.Buffered(1))           # resident weights: 1 buffer
        else:
            const = lambda shape: pl.BlockSpec(
                shape, lambda i: (0,) * len(shape))

        in_specs = [
            pl.BlockSpec((bt, Lq, D), lambda i: (i, 0, 0)),   # q
            pl.BlockSpec((bt, Lk, D), lambda i: (i, 0, 0)),   # k
            pl.BlockSpec((bt, Lk, D), lambda i: (i, 0, 0)),   # v
        ]
        if with_mask:
            in_specs.append(pl.BlockSpec((bt, Lq, Lk), lambda i: (i, 0, 0)))
        in_specs += [
            const((D, n_head * d_k)),    # wq (scale folded in)
            const((D, n_head * d_k)),    # wk
            const((D, n_head * d_v)),    # wv
            const((n_head * d_v, D)),    # wfc
            const((1, D)), const((1, D)),        # ln1 gamma / beta
            const((D, hid)), const((1, hid)),    # w1, b1
            const((hid, D)), const((1, D)),      # w2, b2
            const((1, D)), const((1, D)),        # ln2 gamma / beta
        ]

        if return_attn:
            out_specs = (pl.BlockSpec((bt, Lq, D), lambda i: (i, 0, 0)),
                         pl.BlockSpec((bt, n_head, Lq, Lk),
                                      lambda i: (i, 0, 0, 0)))
            out_shape = (jax.ShapeDtypeStruct((Bp, Lq, D), out_dtype),
                         jax.ShapeDtypeStruct((Bp, n_head, Lq, Lk),
                                              jnp.float32))
        else:
            out_specs = pl.BlockSpec((bt, Lq, D), lambda i: (i, 0, 0))
            out_shape = jax.ShapeDtypeStruct((Bp, Lq, D), out_dtype)

        return pl.pallas_call(
            kernel,
            out_shape=out_shape,
            grid_spec=pltpu.PrefetchScalarGridSpec(
                num_scalar_prefetch=0,
                grid=grid,
                in_specs=in_specs,
                out_specs=out_specs),
            compiler_params=pltpu.CompilerParams(
                dimension_semantics=("parallel",),
                vmem_limit_bytes=vmem_limit),
        )(qc, kc, vc, *mask_args,
          params["wq"], params["wk"], params["wv"], params["wfc"],
          params["ln1_g"], params["ln1_b"],
          params["w1"], params["b1"], params["w2"], params["b2"],
          params["ln2_g"], params["ln2_b"])

    try:
        result = _call(True)
    except Exception:
        # Fallback if this JAX rejects pipeline_mode=pl.Buffered(1):
        # default double-buffered constant weights (correct, more VMEM).
        result = _call(False)

    if return_attn:
        out, attn = result
        if pad:
            out, attn = out[:B], attn[:B]
        return out, attn
    out = result
    return out[:B] if pad else out


def reference(q, k, v, p, n_head, mask=None):
    """Pure-JAX reference mirroring the PyTorch forward (dropout = identity)."""
    B, Lq, D = q.shape
    Lk = k.shape[1]
    d_k = D // n_head
    qp = (q @ p["wq"]).reshape(B, Lq, n_head, d_k).transpose(0, 2, 1, 3)
    kp = (k @ p["wk"]).reshape(B, Lk, n_head, d_k).transpose(0, 2, 1, 3)
    vp = (v @ p["wv"]).reshape(B, Lk, n_head, d_k).transpose(0, 2, 1, 3)
    scores = jnp.einsum("bhqd,bhkd->bhqk", qp / (d_k ** 0.5), kp)
    if mask is not None:
        scores = jnp.where(mask[:, None, :, :] == 0, -1e9, scores)
    attn = jax.nn.softmax(scores, axis=-1)
    ctx = jnp.einsum("bhqk,bhkd->bhqd", attn, vp).transpose(0, 2, 1, 3).reshape(B, Lq, D)
    x = ctx @ p["wfc"] + q
    x = _layernorm(x, p["ln1_g"], p["ln1_b"])
    y = jnp.maximum(x @ p["w1"] + p["b1"], 0.0) @ p["w2"] + p["b2"] + x
    y = _layernorm(y, p["ln2_g"], p["ln2_b"])
    return y, attn


def init_params(key, feat_dim, hidden_dim):
    ks = jax.random.split(key, 8)
    scale = 0.1
    return {
        "wq": jax.random.normal(ks[0], (feat_dim, feat_dim), jnp.float32) * scale,
        "wk": jax.random.normal(ks[1], (feat_dim, feat_dim), jnp.float32) * scale,
        "wv": jax.random.normal(ks[2], (feat_dim, feat_dim), jnp.float32) * scale,
        "wfc": jax.random.normal(ks[3], (feat_dim, feat_dim), jnp.float32) * scale,
        "ln1_g": jnp.ones((1, feat_dim), jnp.float32),
        "ln1_b": jnp.zeros((1, feat_dim), jnp.float32),
        "w1": jax.random.normal(ks[4], (feat_dim, hidden_dim), jnp.float32) * scale,
        "b1": jax.random.normal(ks[5], (1, hidden_dim), jnp.float32) * scale,
        "w2": jax.random.normal(ks[6], (hidden_dim, feat_dim), jnp.float32) * scale,
        "b2": jax.random.normal(ks[7], (1, feat_dim), jnp.float32) * scale,
        "ln2_g": jnp.ones((1, feat_dim), jnp.float32),
        "ln2_b": jnp.zeros((1, feat_dim), jnp.float32),
    }


if __name__ == "__main__":
    B, L, FEAT, HID, HEADS = 2, 8, 32, 64, 4

    key = jax.random.PRNGKey(0)
    kq, kk, kv, kp = jax.random.split(key, 4)
    q = jax.random.normal(kq, (B, L, FEAT), jnp.float32)
    k = jax.random.normal(kk, (B, L, FEAT), jnp.float32)
    v = jax.random.normal(kv, (B, L, FEAT), jnp.float32)
    params = init_params(kp, FEAT, HID)

    # --- f32 path with attention output, no mask (matches PyTorch forward) ---
    prep_f32 = prepare_params(params, HEADS, jnp.float32)
    out, attn = attention_block_kvcache(q, k, v, prep_f32, HEADS, prepared=True)
    out = jax.block_until_ready(out)
    attn = jax.block_until_ready(attn)

    ref_out, ref_attn = reference(q, k, v, params, HEADS)
    assert out.shape == (B, L, FEAT) and attn.shape == (B, HEADS, L, L)
    assert jnp.allclose(out, ref_out, atol=1e-4, rtol=1e-4)
    assert jnp.allclose(attn, ref_attn, atol=1e-4, rtol=1e-4)

    # --- f32 path with a causal slf_attn_mask ---
    causal = (jnp.arange(L)[:, None] >= jnp.arange(L)[None, :]).astype(jnp.float32)
    mask = jnp.broadcast_to(causal, (B, L, L))
    out_m, attn_m = attention_block_kvcache(q, k, v, prep_f32, HEADS,
                                            mask=mask, prepared=True)
    out_m = jax.block_until_ready(out_m)
    ref_out_m, ref_attn_m = reference(q, k, v, params, HEADS, mask=mask)
    assert jnp.allclose(out_m, ref_out_m, atol=1e-4, rtol=1e-4)
    assert jnp.allclose(attn_m, ref_attn_m, atol=1e-4, rtol=1e-4)

    # --- bf16 matmul path, attn writeback skipped (decode-style hot path) ---
    prep_bf16 = prepare_params(params, HEADS, jnp.bfloat16)
    out_bf16 = attention_block_kvcache(q, k, v, prep_bf16, HEADS,
                                       return_attn=False,
                                       compute_dtype=jnp.bfloat16,
                                       prepared=True)
    out_bf16 = jax.block_until_ready(out_bf16)
    assert out_bf16.shape == (B, L, FEAT)
    assert out_bf16.dtype == jnp.bfloat16
    ob = out_bf16.astype(jnp.float32)
    assert bool(jnp.all(jnp.isfinite(ob)))
    assert float(jnp.max(jnp.abs(ob - ref_out))) < 0.25

    print("KERNEL_OK")
</pallas_src>

<mosaic_0001>
module attributes {stable_mosaic.version = 11 : i64} {
  func.func @_attention_block_kernel(%arg0: i32, %arg1: memref<1x8x32xf32, #tpu.memory_space<vmem>>, %arg2: memref<1x8x32xf32, #tpu.memory_space<vmem>>, %arg3: memref<1x8x32xf32, #tpu.memory_space<vmem>>, %arg4: memref<32x32xf32, #tpu.memory_space<vmem>>, %arg5: memref<32x32xf32, #tpu.memory_space<vmem>>, %arg6: memref<32x32xf32, #tpu.memory_space<vmem>>, %arg7: memref<32x32xf32, #tpu.memory_space<vmem>>, %arg8: memref<1x32xf32, #tpu.memory_space<vmem>>, %arg9: memref<1x32xf32, #tpu.memory_space<vmem>>, %arg10: memref<32x64xf32, #tpu.memory_space<vmem>>, %arg11: memref<1x64xf32, #tpu.memory_space<vmem>>, %arg12: memref<64x32xf32, #tpu.memory_space<vmem>>, %arg13: memref<1x32xf32, #tpu.memory_space<vmem>>, %arg14: memref<1x32xf32, #tpu.memory_space<vmem>>, %arg15: memref<1x32xf32, #tpu.memory_space<vmem>>, %arg16: memref<1x8x32xf32, #tpu.memory_space<vmem>>, %arg17: memref<1x4x8x8xf32, #tpu.memory_space<vmem>>) attributes {dimension_semantics = [#tpu.dimension_semantics<parallel>], iteration_bounds = array<i64: 2>, scalar_prefetch = 0 : i64, scratch_operands = 0 : i64, tpu.core_type = #tpu.core_type<tc>, window_params = [{transform_indices = @transform_0, window_bounds = array<i64: 1, 8, 32>}, {transform_indices = @transform_1, window_bounds = array<i64: 1, 8, 32>}, {transform_indices = @transform_2, window_bounds = array<i64: 1, 8, 32>}, {pipeline_mode = #tpu.pipeline_mode<synchronous>, transform_indices = @transform_3, window_bounds = array<i64: 32, 32>}, {pipeline_mode = #tpu.pipeline_mode<synchronous>, transform_indices = @transform_4, window_bounds = array<i64: 32, 32>}, {pipeline_mode = #tpu.pipeline_mode<synchronous>, transform_indices = @transform_5, window_bounds = array<i64: 32, 32>}, {pipeline_mode = #tpu.pipeline_mode<synchronous>, transform_indices = @transform_6, window_bounds = array<i64: 32, 32>}, {pipeline_mode = #tpu.pipeline_mode<synchronous>, transform_indices = @transform_7, window_bounds = array<i64: 1, 32>}, {pipeline_mode = #tpu.pipeline_mode<synchronous>, transform_indices = @transform_8, window_bounds = array<i64: 1, 32>}, {pipeline_mode = #tpu.pipeline_mode<synchronous>, transform_indices = @transform_9, window_bounds = array<i64: 32, 64>}, {pipeline_mode = #tpu.pipeline_mode<synchronous>, transform_indices = @transform_10, window_bounds = array<i64: 1, 64>}, {pipeline_mode = #tpu.pipeline_mode<synchronous>, transform_indices = @transform_11, window_bounds = array<i64: 64, 32>}, {pipeline_mode = #tpu.pipeline_mode<synchronous>, transform_indices = @transform_12, window_bounds = array<i64: 1, 32>}, {pipeline_mode = #tpu.pipeline_mode<synchronous>, transform_indices = @transform_13, window_bounds = array<i64: 1, 32>}, {pipeline_mode = #tpu.pipeline_mode<synchronous>, transform_indices = @transform_14, window_bounds = array<i64: 1, 32>}, {transform_indices = @transform_15, window_bounds = array<i64: 1, 8, 32>}, {transform_indices = @transform_16, window_bounds = array<i64: 1, 4, 8, 8>}]} {
    %c0 = arith.constant 0 : index
    %c0_0 = arith.constant 0 : index
    %c0_1 = arith.constant 0 : index
    %0 = vector.load %arg1[%c0, %c0_0, %c0_1] : memref<1x8x32xf32, #tpu.memory_space<vmem>>, vector<1x8x32xf32>
    %1 = vector.shape_cast %0 : vector<1x8x32xf32> to vector<8x32xf32>
    %c0_2 = arith.constant 0 : index
    %c0_3 = arith.constant 0 : index
    %c0_4 = arith.constant 0 : index
    %2 = vector.load %arg2[%c0_2, %c0_3, %c0_4] : memref<1x8x32xf32, #tpu.memory_space<vmem>>, vector<1x8x32xf32>
    %3 = vector.shape_cast %2 : vector<1x8x32xf32> to vector<8x32xf32>
    %c0_5 = arith.constant 0 : index
    %c0_6 = arith.constant 0 : index
    %c0_7 = arith.constant 0 : index
    %4 = vector.load %arg3[%c0_5, %c0_6, %c0_7] : memref<1x8x32xf32, #tpu.memory_space<vmem>>, vector<1x8x32xf32>
    %5 = vector.shape_cast %4 : vector<1x8x32xf32> to vector<8x32xf32>
    %c0_8 = arith.constant 0 : index
    %c0_9 = arith.constant 0 : index
    %6 = vector.load %arg4[%c0_8, %c0_9] : memref<32x32xf32, #tpu.memory_space<vmem>>, vector<32x32xf32>
    %cst = arith.constant dense<0.000000e+00> : vector<8x32xf32>
    %7 = tpu.matmul %1, %6, %cst {dimension_numbers = #tpu.dot_dimension_numbers<[1], [0], [0], [1], [0, 0, 1, 1], [], []>} : vector<8x32xf32>, vector<32x32xf32>, vector<8x32xf32> -> vector<8x32xf32>
    %c0_10 = arith.constant 0 : index
    %c0_11 = arith.constant 0 : index
    %8 = vector.load %arg5[%c0_10, %c0_11] : memref<32x32xf32, #tpu.memory_space<vmem>>, vector<32x32xf32>
    %cst_12 = arith.constant dense<0.000000e+00> : vector<8x32xf32>
    %9 = tpu.matmul %3, %8, %cst_12 {dimension_numbers = #tpu.dot_dimension_numbers<[1], [0], [0], [1], [0, 0, 1, 1], [], []>} : vector<8x32xf32>, vector<32x32xf32>, vector<8x32xf32> -> vector<8x32xf32>
    %c0_13 = arith.constant 0 : index
    %c0_14 = arith.constant 0 : index
    %10 = vector.load %arg6[%c0_13, %c0_14] : memref<32x32xf32, #tpu.memory_space<vmem>>, vector<32x32xf32>
    %cst_15 = arith.constant dense<0.000000e+00> : vector<8x32xf32>
    %11 = tpu.matmul %5, %10, %cst_15 {dimension_numbers = #tpu.dot_dimension_numbers<[1], [0], [0], [1], [0, 0, 1, 1], [], []>} : vector<8x32xf32>, vector<32x32xf32>, vector<8x32xf32> -> vector<8x32xf32>
    %12 = vector.shape_cast %7 : vector<8x32xf32> to vector<1x8x4x8xf32>
    %13 = tpu.transpose %12, [0, 2, 1, 3] : vector<1x8x4x8xf32> -> vector<1x4x8x8xf32>
    %14 = vector.shape_cast %13 : vector<1x4x8x8xf32> to vector<4x8x8xf32>
    %15 = vector.shape_cast %9 : vector<8x32xf32> to vector<1x8x4x8xf32>
    %16 = tpu.transpose %15, [0, 2, 1, 3] : vector<1x8x4x8xf32> -> vector<1x4x8x8xf32>
    %17 = vector.shape_cast %16 : vector<1x4x8x8xf32> to vector<4x8x8xf32>
    %18 = vector.shape_cast %11 : vector<8x32xf32> to vector<1x8x4x8xf32>
    %19 = tpu.transpose %18, [0, 2, 1, 3] : vector<1x8x4x8xf32> -> vector<1x4x8x8xf32>
    %20 = vector.shape_cast %19 : vector<1x4x8x8xf32> to vector<4x8x8xf32>
    "tpu.trace_start"() <{level = 10 : i32, message = "bqd,bkd->bqk"}> : () -> ()
    %cst_16 = arith.constant dense<0.000000e+00> : vector<4x8x8xf32>
    %21 = tpu.matmul %14, %17, %cst_16 {dimension_numbers = #tpu.dot_dimension_numbers<[2], [2], [1], [1], [0, 0, 0, 1, 1, 1], [0], [0]>} : vector<4x8x8xf32>, vector<4x8x8xf32>, vector<4x8x8xf32> -> vector<4x8x8xf32>
    "tpu.trace_stop"() : () -> ()
    %22 = vector.shape_cast %21 : vector<4x8x8xf32> to vector<1x4x8x8xf32>
    %cst_17 = arith.constant dense<0xFF800000> : vector<1x4x8xf32>
    %23 = vector.multi_reduction <maximumf>, %22, %cst_17 [3] : vector<1x4x8x8xf32> to vector<1x4x8xf32>
    %24 = vector.shape_cast %23 : vector<1x4x8xf32> to vector<1x4x8x1xf32>
    %25 = vector.broadcast %24 : vector<1x4x8x1xf32> to vector<1x4x8x8xf32>
    %26 = arith.subf %22, %25 : vector<1x4x8x8xf32>
    %27 = math.exp %26 : vector<1x4x8x8xf32>
    %cst_18 = arith.constant dense<0.000000e+00> : vector<1x4x8xf32>
    %28 = vector.multi_reduction <add>, %27, %cst_18 [3] : vector<1x4x8x8xf32> to vector<1x4x8xf32>
    %29 = vector.shape_cast %28 : vector<1x4x8xf32> to vector<1x4x8x1xf32>
    %30 = tpu.reciprocal %29 {approx = true} : vector<1x4x8x1xf32> -> vector<1x4x8x1xf32>
    %31 = arith.mulf %29, %30 : vector<1x4x8x1xf32>
    %cst_19 = arith.constant 2.000000e+00 : f32
    %32 = vector.broadcast %cst_19 : f32 to vector<1x4x8x1xf32>
    %33 = arith.subf %32, %31 : vector<1x4x8x1xf32>
    %34 = arith.mulf %30, %33 : vector<1x4x8x1xf32>
    %35 = vector.broadcast %34 : vector<1x4x8x1xf32> to vector<1x4x8x8xf32>
    %36 = arith.mulf %27, %35 : vector<1x4x8x8xf32>
    %c0_20 = arith.constant 0 : index
    %c0_21 = arith.constant 0 : index
    %c0_22 = arith.constant 0 : index
    %c0_23 = arith.constant 0 : index
    %37 = vector.load %arg17[%c0_20, %c0_21, %c0_22, %c0_23] : memref<1x4x8x8xf32, #tpu.memory_space<vmem>>, vector<1x4x8x8xf32>
    tpu.vector_store %arg17[%c0_20, %c0_21, %c0_22, %c0_23], %36 {strides = array<i32>} : memref<1x4x8x8xf32, #tpu.memory_space<vmem>>, vector<1x4x8x8xf32>,
    %38 = vector.shape_cast %36 : vector<1x4x8x8xf32> to vector<4x8x8xf32>
    "tpu.trace_start"() <{level = 10 : i32, message = "bqk,bkd->bqd"}> : () -> ()
    %cst_24 = arith.constant dense<0.000000e+00> : vector<4x8x8xf32>
    %39 = tpu.matmul %38, %20, %cst_24 {dimension_numbers = #tpu.dot_dimension_numbers<[2], [1], [1], [2], [0, 0, 0, 1, 1, 2], [0], [0]>} : vector<4x8x8xf32>, vector<4x8x8xf32>, vector<4x8x8xf32> -> vector<4x8x8xf32>
    "tpu.trace_stop"() : () -> ()
    %40 = vector.shape_cast %39 : vector<4x8x8xf32> to vector<1x4x8x8xf32>
    %41 = tpu.transpose %40, [0, 2, 1, 3] : vector<1x4x8x8xf32> -> vector<1x8x4x8xf32>
    %42 = vector.shape_cast %41 : vector<1x8x4x8xf32> to vector<8x32xf32>
    %c0_25 = arith.constant 0 : index
    %c0_26 = arith.constant 0 : index
    %43 = vector.load %arg7[%c0_25, %c0_26] : memref<32x32xf32, #tpu.memory_space<vmem>>, vector<32x32xf32>
    %cst_27 = arith.constant dense<0.000000e+00> : vector<8x32xf32>
    %44 = tpu.matmul %42, %43, %cst_27 {dimension_numbers = #tpu.dot_dimension_numbers<[1], [0], [0], [1], [0, 0, 1, 1], [], []>} : vector<8x32xf32>, vector<32x32xf32>, vector<8x32xf32> -> vector<8x32xf32>
    %45 = arith.addf %44, %1 : vector<8x32xf32>
    %c0_28 = arith.constant 0 : index
    %c0_29 = arith.constant 0 : index
    %46 = vector.load %arg8[%c0_28, %c0_29] : memref<1x32xf32, #tpu.memory_space<vmem>>, vector<1x32xf32>
    %c0_30 = arith.constant 0 : index
    %c0_31 = arith.constant 0 : index
    %47 = vector.load %arg9[%c0_30, %c0_31] : memref<1x32xf32, #tpu.memory_space<vmem>>, vector<1x32xf32>
    %cst_32 = arith.constant dense<0.000000e+00> : vector<8xf32>
    %48 = vector.multi_reduction <add>, %45, %cst_32 [1] : vector<8x32xf32> to vector<8xf32>
    %49 = vector.shape_cast %48 : vector<8xf32> to vector<8x1xf32>
    %cst_33 = arith.constant 3.200000e+01 : f32
    %50 = vector.broadcast %cst_33 : f32 to vector<8x1xf32>
    %51 = arith.divf %49, %50 : vector<8x1xf32>
    %52 = vector.broadcast %51 : vector<8x1xf32> to vector<8x32xf32>
    %53 = arith.subf %45, %52 : vector<8x32xf32>
    %54 = arith.mulf %53, %53 : vector<8x32xf32>
    %cst_34 = arith.constant dense<0.000000e+00> : vector<8xf32>
    %55 = vector.multi_reduction <add>, %54, %cst_34 [1] : vector<8x32xf32> to vector<8xf32>
    %56 = vector.shape_cast %55 : vector<8xf32> to vector<8x1xf32>
    %cst_35 = arith.constant 3.200000e+01 : f32
    %57 = vector.broadcast %cst_35 : f32 to vector<8x1xf32>
    %58 = arith.divf %56, %57 : vector<8x1xf32>
    %59 = vector.broadcast %51 : vector<8x1xf32> to vector<8x32xf32>
    %60 = arith.subf %45, %59 : vector<8x32xf32>
    %cst_36 = arith.constant 9.99999997E-7 : f32
    %61 = vector.broadcast %cst_36 : f32 to vector<8x1xf32>
    %62 = arith.addf %58, %61 : vector<8x1xf32>
    %63 = math.rsqrt %62 : vector<8x1xf32>
    %64 = vector.broadcast %63 : vector<8x1xf32> to vector<8x32xf32>
    %65 = arith.mulf %60, %64 : vector<8x32xf32>
    %66 = vector.broadcast %46 : vector<1x32xf32> to vector<8x32xf32>
    %67 = arith.mulf %65, %66 : vector<8x32xf32>
    %68 = vector.broadcast %47 : vector<1x32xf32> to vector<8x32xf32>
    %69 = arith.addf %67, %68 : vector<8x32xf32>
    %c0_37 = arith.constant 0 : index
    %c0_38 = arith.constant 0 : index
    %70 = vector.load %arg10[%c0_37, %c0_38] : memref<32x64xf32, #tpu.memory_space<vmem>>, vector<32x64xf32>
    %cst_39 = arith.constant dense<0.000000e+00> : vector<8x64xf32>
    %71 = tpu.matmul %69, %70, %cst_39 {dimension_numbers = #tpu.dot_dimension_numbers<[1], [0], [0], [1], [0, 0, 1, 1], [], []>} : vector<8x32xf32>, vector<32x64xf32>, vector<8x64xf32> -> vector<8x64xf32>
    %c0_40 = arith.constant 0 : index
    %c0_41 = arith.constant 0 : index
    %72 = vector.load %arg11[%c0_40, %c0_41] : memref<1x64xf32, #tpu.memory_space<vmem>>, vector<1x64xf32>
    %73 = vector.broadcast %72 : vector<1x64xf32> to vector<8x64xf32>
    %74 = arith.addf %71, %73 : vector<8x64xf32>
    %cst_42 = arith.constant 0.000000e+00 : f32
    %75 = vector.broadcast %cst_42 : f32 to vector<8x64xf32>
    %76 = arith.maximumf %74, %75 : vector<8x64xf32>
    %c0_43 = arith.constant 0 : index
    %c0_44 = arith.constant 0 : index
    %77 = vector.load %arg12[%c0_43, %c0_44] : memref<64x32xf32, #tpu.memory_space<vmem>>, vector<64x32xf32>
    %cst_45 = arith.constant dense<0.000000e+00> : vector<8x32xf32>
    %78 = tpu.matmul %76, %77, %cst_45 {dimension_numbers = #tpu.dot_dimension_numbers<[1], [0], [0], [1], [0, 0, 1, 1], [], []>} : vector<8x64xf32>, vector<64x32xf32>, vector<8x32xf32> -> vector<8x32xf32>
    %c0_46 = arith.constant 0 : index
    %c0_47 = arith.constant 0 : index
    %79 = vector.load %arg13[%c0_46, %c0_47] : memref<1x32xf32, #tpu.memory_space<vmem>>, vector<1x32xf32>
    %80 = vector.broadcast %79 : vector<1x32xf32> to vector<8x32xf32>
    %81 = arith.addf %78, %80 : vector<8x32xf32>
    %82 = arith.addf %81, %69 : vector<8x32xf32>
    %c0_48 = arith.constant 0 : index
    %c0_49 = arith.constant 0 : index
    %83 = vector.load %arg14[%c0_48, %c0_49] : memref<1x32xf32, #tpu.memory_space<vmem>>, vector<1x32xf32>
    %c0_50 = arith.constant 0 : index
    %c0_51 = arith.constant 0 : index
    %84 = vector.load %arg15[%c0_50, %c0_51] : memref<1x32xf32, #tpu.memory_space<vmem>>, vector<1x32xf32>
    %cst_52 = arith.constant dense<0.000000e+00> : vector<8xf32>
    %85 = vector.multi_reduction <add>, %82, %cst_52 [1] : vector<8x32xf32> to vector<8xf32>
    %86 = vector.shape_cast %85 : vector<8xf32> to vector<8x1xf32>
    %cst_53 = arith.constant 3.200000e+01 : f32
    %87 = vector.broadcast %cst_53 : f32 to vector<8x1xf32>
    %88 = arith.divf %86, %87 : vector<8x1xf32>
    %89 = vector.broadcast %88 : vector<8x1xf32> to vector<8x32xf32>
    %90 = arith.subf %82, %89 : vector<8x32xf32>
    %91 = arith.mulf %90, %90 : vector<8x32xf32>
    %cst_54 = arith.constant dense<0.000000e+00> : vector<8xf32>
    %92 = vector.multi_reduction <add>, %91, %cst_54 [1] : vector<8x32xf32> to vector<8xf32>
    %93 = vector.shape_cast %92 : vector<8xf32> to vector<8x1xf32>
    %cst_55 = arith.constant 3.200000e+01 : f32
    %94 = vector.broadcast %cst_55 : f32 to vector<8x1xf32>
    %95 = arith.divf %93, %94 : vector<8x1xf32>
    %96 = vector.broadcast %88 : vector<8x1xf32> to vector<8x32xf32>
    %97 = arith.subf %82, %96 : vector<8x32xf32>
    %cst_56 = arith.constant 9.99999997E-7 : f32
    %98 = vector.broadcast %cst_56 : f32 to vector<8x1xf32>
    %99 = arith.addf %95, %98 : vector<8x1xf32>
    %100 = math.rsqrt %99 : vector<8x1xf32>
    %101 = vector.broadcast %100 : vector<8x1xf32> to vector<8x32xf32>
    %102 = arith.mulf %97, %101 : vector<8x32xf32>
    %103 = vector.broadcast %83 : vector<1x32xf32> to vector<8x32xf32>
    %104 = arith.mulf %102, %103 : vector<8x32xf32>
    %105 = vector.broadcast %84 : vector<1x32xf32> to vector<8x32xf32>
    %106 = arith.addf %104, %105 : vector<8x32xf32>
    %107 = vector.shape_cast %106 : vector<8x32xf32> to vector<1x8x32xf32>
    %c0_57 = arith.constant 0 : index
    %c0_58 = arith.constant 0 : index
    %c0_59 = arith.constant 0 : index
    %108 = vector.load %arg16[%c0_57, %c0_58, %c0_59] : memref<1x8x32xf32, #tpu.memory_space<vmem>>, vector<1x8x32xf32>
    tpu.vector_store %arg16[%c0_57, %c0_58, %c0_59], %107 {strides = array<i32>} : memref<1x8x32xf32, #tpu.memory_space<vmem>>, vector<1x8x32xf32>,
    return
  }
  func.func @transform_0(%arg0: i32) -> (i32, i32, i32) {
    %c0_i32 = arith.constant 0 : i32
    %c0_i32_0 = arith.constant 0 : i32
    %c0_i32_1 = arith.constant 0 : i32
    return %arg0, %c0_i32, %c0_i32_0 : i32, i32, i32
  }
  func.func @transform_1(%arg0: i32) -> (i32, i32, i32) {
    %c0_i32 = arith.constant 0 : i32
    %c0_i32_0 = arith.constant 0 : i32
    %c0_i32_1 = arith.constant 0 : i32
    return %arg0, %c0_i32, %c0_i32_0 : i32, i32, i32
  }
  func.func @transform_2(%arg0: i32) -> (i32, i32, i32) {
    %c0_i32 = arith.constant 0 : i32
    %c0_i32_0 = arith.constant 0 : i32
    %c0_i32_1 = arith.constant 0 : i32
    return %arg0, %c0_i32, %c0_i32_0 : i32, i32, i32
  }
  func.func @transform_3(%arg0: i32) -> (i32, i32) {
    %c0_i32 = arith.constant 0 : i32
    %c0_i32_0 = arith.constant 0 : i32
    %c0_i32_1 = arith.constant 0 : i32
    return %c0_i32, %c0_i32_0 : i32, i32
  }
  func.func @transform_4(%arg0: i32) -> (i32, i32) {
    %c0_i32 = arith.constant 0 : i32
    %c0_i32_0 = arith.constant 0 : i32
    %c0_i32_1 = arith.constant 0 : i32
    return %c0_i32, %c0_i32_0 : i32, i32
  }
  func.func @transform_5(%arg0: i32) -> (i32, i32) {
    %c0_i32 = arith.constant 0 : i32
    %c0_i32_0 = arith.constant 0 : i32
    %c0_i32_1 = arith.constant 0 : i32
    return %c0_i32, %c0_i32_0 : i32, i32
  }
  func.func @transform_6(%arg0: i32) -> (i32, i32) {
    %c0_i32 = arith.constant 0 : i32
    %c0_i32_0 = arith.constant 0 : i32
    %c0_i32_1 = arith.constant 0 : i32
    return %c0_i32, %c0_i32_0 : i32, i32
  }
  func.func @transform_7(%arg0: i32) -> (i32, i32) {
    %c0_i32 = arith.constant 0 : i32
    %c0_i32_0 = arith.constant 0 : i32
    %c0_i32_1 = arith.constant 0 : i32
    return %c0_i32, %c0_i32_0 : i32, i32
  }
  func.func @transform_8(%arg0: i32) -> (i32, i32) {
    %c0_i32 = arith.constant 0 : i32
    %c0_i32_0 = arith.constant 0 : i32
    %c0_i32_1 = arith.constant 0 : i32
    return %c0_i32, %c0_i32_0 : i32, i32
  }
  func.func @transform_9(%arg0: i32) -> (i32, i32) {
    %c0_i32 = arith.constant 0 : i32
    %c0_i32_0 = arith.constant 0 : i32
    %c0_i32_1 = arith.constant 0 : i32
    return %c0_i32, %c0_i32_0 : i32, i32
  }
  func.func @transform_10(%arg0: i32) -> (i32, i32) {
    %c0_i32 = arith.constant 0 : i32
    %c0_i32_0 = arith.constant 0 : i32
    %c0_i32_1 = arith.constant 0 : i32
    return %c0_i32, %c0_i32_0 : i32, i32
  }
  func.func @transform_11(%arg0: i32) -> (i32, i32) {
    %c0_i32 = arith.constant 0 : i32
    %c0_i32_0 = arith.constant 0 : i32
    %c0_i32_1 = arith.constant 0 : i32
    return %c0_i32, %c0_i32_0 : i32, i32
  }
  func.func @transform_12(%arg0: i32) -> (i32, i32) {
    %c0_i32 = arith.constant 0 : i32
    %c0_i32_0 = arith.constant 0 : i32
    %c0_i32_1 = arith.constant 0 : i32
    return %c0_i32, %c0_i32_0 : i32, i32
  }
  func.func @transform_13(%arg0: i32) -> (i32, i32) {
    %c0_i32 = arith.constant 0 : i32
    %c0_i32_0 = arith.constant 0 : i32
    %c0_i32_1 = arith.constant 0 : i32
    return %c0_i32, %c0_i32_0 : i32, i32
  }
  func.func @transform_14(%arg0: i32) -> (i32, i32) {
    %c0_i32 = arith.constant 0 : i32
    %c0_i32_0 = arith.constant 0 : i32
    %c0_i32_1 = arith.constant 0 : i32
    return %c0_i32, %c0_i32_0 : i32, i32
  }
  func.func @transform_15(%arg0: i32) -> (i32, i32, i32) {
    %c0_i32 = arith.constant 0 : i32
    %c0_i32_0 = arith.constant 0 : i32
    %c0_i32_1 = arith.constant 0 : i32
    return %arg0, %c0_i32, %c0_i32_0 : i32, i32, i32
  }
  func.func @transform_16(%arg0: i32) -> (i32, i32, i32, i32) {
    %c0_i32 = arith.constant 0 : i32
    %c0_i32_0 = arith.constant 0 : i32
    %c0_i32_1 = arith.constant 0 : i32
    %c0_i32_2 = arith.constant 0 : i32
    return %arg0, %c0_i32, %c0_i32_0, %c0_i32_1 : i32, i32, i32, i32
  }
}

module attributes {stable_mosaic.version = 11 : i64} {
  func.func @_attention_block_kernel(%arg0: i32, %arg1: memref<1x8x32xf32, #tpu.memory_space<vmem>>, %arg2: memref<1x8x32xf32, #tpu.memory_space<vmem>>, %arg3: memref<1x8x32xf32, #tpu.memory_space<vmem>>, %arg4: memref<32x32xf32, #tpu.memory_space<vmem>>, %arg5: memref<32x32xf32, #tpu.memory_space<vmem>>, %arg6: memref<32x32xf32, #tpu.memory_space<vmem>>, %arg7: memref<32x32xf32, #tpu.memory_space<vmem>>, %arg8: memref<1x32xf32, #tpu.memory_space<vmem>>, %arg9: memref<1x32xf32, #tpu.memory_space<vmem>>, %arg10: memref<32x64xf32, #tpu.memory_space<vmem>>, %arg11: memref<1x64xf32, #tpu.memory_space<vmem>>, %arg12: memref<64x32xf32, #tpu.memory_space<vmem>>, %arg13: memref<1x32xf32, #tpu.memory_space<vmem>>, %arg14: memref<1x32xf32, #tpu.memory_space<vmem>>, %arg15: memref<1x32xf32, #tpu.memory_space<vmem>>, %arg16: memref<1x8x32xf32, #tpu.memory_space<vmem>>, %arg17: memref<1x4x8x8xf32, #tpu.memory_space<vmem>>) attributes {dimension_semantics = [#tpu.dimension_semantics<parallel>], iteration_bounds = array<i64: 2>, scalar_prefetch = 0 : i64, scratch_operands = 0 : i64, tpu.core_type = #tpu.core_type<tc>, window_params = [{transform_indices = @transform_0, window_bounds = array<i64: 1, 8, 32>}, {transform_indices = @transform_1, window_bounds = array<i64: 1, 8, 32>}, {transform_indices = @transform_2, window_bounds = array<i64: 1, 8, 32>}, {pipeline_mode = #tpu.pipeline_mode<synchronous>, transform_indices = @transform_3, window_bounds = array<i64: 32, 32>}, {pipeline_mode = #tpu.pipeline_mode<synchronous>, transform_indices = @transform_4, window_bounds = array<i64: 32, 32>}, {pipeline_mode = #tpu.pipeline_mode<synchronous>, transform_indices = @transform_5, window_bounds = array<i64: 32, 32>}, {pipeline_mode = #tpu.pipeline_mode<synchronous>, transform_indices = @transform_6, window_bounds = array<i64: 32, 32>}, {pipeline_mode = #tpu.pipeline_mode<synchronous>, transform_indices = @transform_7, window_bounds = array<i64: 1, 32>}, {pipeline_mode = #tpu.pipeline_mode<synchronous>, transform_indices = @transform_8, window_bounds = array<i64: 1, 32>}, {pipeline_mode = #tpu.pipeline_mode<synchronous>, transform_indices = @transform_9, window_bounds = array<i64: 32, 64>}, {pipeline_mode = #tpu.pipeline_mode<synchronous>, transform_indices = @transform_10, window_bounds = array<i64: 1, 64>}, {pipeline_mode = #tpu.pipeline_mode<synchronous>, transform_indices = @transform_11, window_bounds = array<i64: 64, 32>}, {pipeline_mode = #tpu.pipeline_mode<synchronous>, transform_indices = @transform_12, window_bounds = array<i64: 1, 32>}, {pipeline_mode = #tpu.pipeline_mode<synchronous>, transform_indices = @transform_13, window_bounds = array<i64: 1, 32>}, {pipeline_mode = #tpu.pipeline_mode<synchronous>, transform_indices = @transform_14, window_bounds = array<i64: 1, 32>}, {transform_indices = @transform_15, window_bounds = array<i64: 1, 8, 32>}, {transform_indices = @transform_16, window_bounds = array<i64: 1, 4, 8, 8>}]} {
    %c0 = arith.constant 0 : index
    %c0_0 = arith.constant 0 : index
    %c0_1 = arith.constant 0 : index
    %0 = vector.load %arg1[%c0, %c0_0, %c0_1] : memref<1x8x32xf32, #tpu.memory_space<vmem>>, vector<1x8x32xf32>
    %1 = vector.shape_cast %0 : vector<1x8x32xf32> to vector<8x32xf32>
    %c0_2 = arith.constant 0 : index
    %c0_3 = arith.constant 0 : index
    %c0_4 = arith.constant 0 : index
    %2 = vector.load %arg2[%c0_2, %c0_3, %c0_4] : memref<1x8x32xf32, #tpu.memory_space<vmem>>, vector<1x8x32xf32>
    %3 = vector.shape_cast %2 : vector<1x8x32xf32> to vector<8x32xf32>
    %c0_5 = arith.constant 0 : index
    %c0_6 = arith.constant 0 : index
    %c0_7 = arith.constant 0 : index
    %4 = vector.load %arg3[%c0_5, %c0_6, %c0_7] : memref<1x8x32xf32, #tpu.memory_space<vmem>>, vector<1x8x32xf32>
    %5 = vector.shape_cast %4 : vector<1x8x32xf32> to vector<8x32xf32>
    %c0_8 = arith.constant 0 : index
    %c0_9 = arith.constant 0 : index
    %6 = vector.load %arg4[%c0_8, %c0_9] : memref<32x32xf32, #tpu.memory_space<vmem>>, vector<32x32xf32>
    %cst = arith.constant dense<0.000000e+00> : vector<8x32xf32>
    %7 = tpu.matmul %1, %6, %cst {dimension_numbers = #tpu.dot_dimension_numbers<[1], [0], [0], [1], [0, 0, 1, 1], [], []>} : vector<8x32xf32>, vector<32x32xf32>, vector<8x32xf32> -> vector<8x32xf32>
    %c0_10 = arith.constant 0 : index
    %c0_11 = arith.constant 0 : index
    %8 = vector.load %arg5[%c0_10, %c0_11] : memref<32x32xf32, #tpu.memory_space<vmem>>, vector<32x32xf32>
    %cst_12 = arith.constant dense<0.000000e+00> : vector<8x32xf32>
    %9 = tpu.matmul %3, %8, %cst_12 {dimension_numbers = #tpu.dot_dimension_numbers<[1], [0], [0], [1], [0, 0, 1, 1], [], []>} : vector<8x32xf32>, vector<32x32xf32>, vector<8x32xf32> -> vector<8x32xf32>
    %c0_13 = arith.constant 0 : index
    %c0_14 = arith.constant 0 : index
    %10 = vector.load %arg6[%c0_13, %c0_14] : memref<32x32xf32, #tpu.memory_space<vmem>>, vector<32x32xf32>
    %cst_15 = arith.constant dense<0.000000e+00> : vector<8x32xf32>
    %11 = tpu.matmul %5, %10, %cst_15 {dimension_numbers = #tpu.dot_dimension_numbers<[1], [0], [0], [1], [0, 0, 1, 1], [], []>} : vector<8x32xf32>, vector<32x32xf32>, vector<8x32xf32> -> vector<8x32xf32>
    %12 = vector.shape_cast %7 : vector<8x32xf32> to vector<1x8x4x8xf32>
    %13 = tpu.transpose %12, [0, 2, 1, 3] : vector<1x8x4x8xf32> -> vector<1x4x8x8xf32>
    %14 = vector.shape_cast %13 : vector<1x4x8x8xf32> to vector<4x8x8xf32>
    %15 = vector.shape_cast %9 : vector<8x32xf32> to vector<1x8x4x8xf32>
    %16 = tpu.transpose %15, [0, 2, 1, 3] : vector<1x8x4x8xf32> -> vector<1x4x8x8xf32>
    %17 = vector.shape_cast %16 : vector<1x4x8x8xf32> to vector<4x8x8xf32>
    %18 = vector.shape_cast %11 : vector<8x32xf32> to vector<1x8x4x8xf32>
    %19 = tpu.transpose %18, [0, 2, 1, 3] : vector<1x8x4x8xf32> -> vector<1x4x8x8xf32>
    %20 = vector.shape_cast %19 : vector<1x4x8x8xf32> to vector<4x8x8xf32>
    "tpu.trace_start"() <{level = 10 : i32, message = "bqd,bkd->bqk"}> : () -> ()
    %cst_16 = arith.constant dense<0.000000e+00> : vector<4x8x8xf32>
    %21 = tpu.matmul %14, %17, %cst_16 {dimension_numbers = #tpu.dot_dimension_numbers<[2], [2], [1], [1], [0, 0, 0, 1, 1, 1], [0], [0]>} : vector<4x8x8xf32>, vector<4x8x8xf32>, vector<4x8x8xf32> -> vector<4x8x8xf32>
    "tpu.trace_stop"() : () -> ()
    %22 = vector.shape_cast %21 : vector<4x8x8xf32> to vector<1x4x8x8xf32>
    %cst_17 = arith.constant dense<0xFF800000> : vector<1x4x8xf32>
    %23 = vector.multi_reduction <maximumf>, %22, %cst_17 [3] : vector<1x4x8x8xf32> to vector<1x4x8xf32>
    %24 = vector.shape_cast %23 : vector<1x4x8xf32> to vector<1x4x8x1xf32>
    %25 = vector.broadcast %24 : vector<1x4x8x1xf32> to vector<1x4x8x8xf32>
    %26 = arith.subf %22, %25 : vector<1x4x8x8xf32>
    %27 = math.exp %26 : vector<1x4x8x8xf32>
    %cst_18 = arith.constant dense<0.000000e+00> : vector<1x4x8xf32>
    %28 = vector.multi_reduction <add>, %27, %cst_18 [3] : vector<1x4x8x8xf32> to vector<1x4x8xf32>
    %29 = vector.shape_cast %28 : vector<1x4x8xf32> to vector<1x4x8x1xf32>
    %30 = tpu.reciprocal %29 {approx = true} : vector<1x4x8x1xf32> -> vector<1x4x8x1xf32>
    %31 = arith.mulf %29, %30 : vector<1x4x8x1xf32>
    %cst_19 = arith.constant 2.000000e+00 : f32
    %32 = vector.broadcast %cst_19 : f32 to vector<1x4x8x1xf32>
    %33 = arith.subf %32, %31 : vector<1x4x8x1xf32>
    %34 = arith.mulf %30, %33 : vector<1x4x8x1xf32>
    %35 = vector.broadcast %34 : vector<1x4x8x1xf32> to vector<1x4x8x8xf32>
    %36 = arith.mulf %27, %35 : vector<1x4x8x8xf32>
    %c0_20 = arith.constant 0 : index
    %c0_21 = arith.constant 0 : index
    %c0_22 = arith.constant 0 : index
    %c0_23 = arith.constant 0 : index
    %37 = vector.load %arg17[%c0_20, %c0_21, %c0_22, %c0_23] : memref<1x4x8x8xf32, #tpu.memory_space<vmem>>, vector<1x4x8x8xf32>
    tpu.vector_store %arg17[%c0_20, %c0_21, %c0_22, %c0_23], %36 {strides = array<i32>} : memref<1x4x8x8xf32, #tpu.memory_space<vmem>>, vector<1x4x8x8xf32>,
    %38 = vector.shape_cast %36 : vector<1x4x8x8xf32> to vector<4x8x8xf32>
    "tpu.trace_start"() <{level = 10 : i32, message = "bqk,bkd->bqd"}> : () -> ()
    %cst_24 = arith.constant dense<0.000000e+00> : vector<4x8x8xf32>
    %39 = tpu.matmul %38, %20, %cst_24 {dimension_numbers = #tpu.dot_dimension_numbers<[2], [1], [1], [2], [0, 0, 0, 1, 1, 2], [0], [0]>} : vector<4x8x8xf32>, vector<4x8x8xf32>, vector<4x8x8xf32> -> vector<4x8x8xf32>
    "tpu.trace_stop"() : () -> ()
    %40 = vector.shape_cast %39 : vector<4x8x8xf32> to vector<1x4x8x8xf32>
    %41 = tpu.transpose %40, [0, 2, 1, 3] : vector<1x4x8x8xf32> -> vector<1x8x4x8xf32>
    %42 = vector.shape_cast %41 : vector<1x8x4x8xf32> to vector<8x32xf32>
    %c0_25 = arith.constant 0 : index
    %c0_26 = arith.constant 0 : index
    %43 = vector.load %arg7[%c0_25, %c0_26] : memref<32x32xf32, #tpu.memory_space<vmem>>, vector<32x32xf32>
    %cst_27 = arith.constant dense<0.000000e+00> : vector<8x32xf32>
    %44 = tpu.matmul %42, %43, %cst_27 {dimension_numbers = #tpu.dot_dimension_numbers<[1], [0], [0], [1], [0, 0, 1, 1], [], []>} : vector<8x32xf32>, vector<32x32xf32>, vector<8x32xf32> -> vector<8x32xf32>
    %45 = arith.addf %44, %1 : vector<8x32xf32>
    %c0_28 = arith.constant 0 : index
    %c0_29 = arith.constant 0 : index
    %46 = vector.load %arg8[%c0_28, %c0_29] : memref<1x32xf32, #tpu.memory_space<vmem>>, vector<1x32xf32>
    %c0_30 = arith.constant 0 : index
    %c0_31 = arith.constant 0 : index
    %47 = vector.load %arg9[%c0_30, %c0_31] : memref<1x32xf32, #tpu.memory_space<vmem>>, vector<1x32xf32>
    %cst_32 = arith.constant dense<0.000000e+00> : vector<8xf32>
    %48 = vector.multi_reduction <add>, %45, %cst_32 [1] : vector<8x32xf32> to vector<8xf32>
    %49 = vector.shape_cast %48 : vector<8xf32> to vector<8x1xf32>
    %cst_33 = arith.constant 3.200000e+01 : f32
    %50 = vector.broadcast %cst_33 : f32 to vector<8x1xf32>
    %51 = arith.divf %49, %50 : vector<8x1xf32>
    %52 = vector.broadcast %51 : vector<8x1xf32> to vector<8x32xf32>
    %53 = arith.subf %45, %52 : vector<8x32xf32>
    %54 = arith.mulf %53, %53 : vector<8x32xf32>
    %cst_34 = arith.constant dense<0.000000e+00> : vector<8xf32>
    %55 = vector.multi_reduction <add>, %54, %cst_34 [1] : vector<8x32xf32> to vector<8xf32>
    %56 = vector.shape_cast %55 : vector<8xf32> to vector<8x1xf32>
    %cst_35 = arith.constant 3.200000e+01 : f32
    %57 = vector.broadcast %cst_35 : f32 to vector<8x1xf32>
    %58 = arith.divf %56, %57 : vector<8x1xf32>
    %59 = vector.broadcast %51 : vector<8x1xf32> to vector<8x32xf32>
    %60 = arith.subf %45, %59 : vector<8x32xf32>
    %cst_36 = arith.constant 9.99999997E-7 : f32
    %61 = vector.broadcast %cst_36 : f32 to vector<8x1xf32>
    %62 = arith.addf %58, %61 : vector<8x1xf32>
    %63 = math.rsqrt %62 : vector<8x1xf32>
    %64 = vector.broadcast %63 : vector<8x1xf32> to vector<8x32xf32>
    %65 = arith.mulf %60, %64 : vector<8x32xf32>
    %66 = vector.broadcast %46 : vector<1x32xf32> to vector<8x32xf32>
    %67 = arith.mulf %65, %66 : vector<8x32xf32>
    %68 = vector.broadcast %47 : vector<1x32xf32> to vector<8x32xf32>
    %69 = arith.addf %67, %68 : vector<8x32xf32>
    %c0_37 = arith.constant 0 : index
    %c0_38 = arith.constant 0 : index
    %70 = vector.load %arg10[%c0_37, %c0_38] : memref<32x64xf32, #tpu.memory_space<vmem>>, vector<32x64xf32>
    %cst_39 = arith.constant dense<0.000000e+00> : vector<8x64xf32>
    %71 = tpu.matmul %69, %70, %cst_39 {dimension_numbers = #tpu.dot_dimension_numbers<[1], [0], [0], [1], [0, 0, 1, 1], [], []>} : vector<8x32xf32>, vector<32x64xf32>, vector<8x64xf32> -> vector<8x64xf32>
    %c0_40 = arith.constant 0 : index
    %c0_41 = arith.constant 0 : index
    %72 = vector.load %arg11[%c0_40, %c0_41] : memref<1x64xf32, #tpu.memory_space<vmem>>, vector<1x64xf32>
    %73 = vector.broadcast %72 : vector<1x64xf32> to vector<8x64xf32>
    %74 = arith.addf %71, %73 : vector<8x64xf32>
    %cst_42 = arith.constant 0.000000e+00 : f32
    %75 = vector.broadcast %cst_42 : f32 to vector<8x64xf32>
    %76 = arith.maximumf %74, %75 : vector<8x64xf32>
    %c0_43 = arith.constant 0 : index
    %c0_44 = arith.constant 0 : index
    %77 = vector.load %arg12[%c0_43, %c0_44] : memref<64x32xf32, #tpu.memory_space<vmem>>, vector<64x32xf32>
    %cst_45 = arith.constant dense<0.000000e+00> : vector<8x32xf32>
    %78 = tpu.matmul %76, %77, %cst_45 {dimension_numbers = #tpu.dot_dimension_numbers<[1], [0], [0], [1], [0, 0, 1, 1], [], []>} : vector<8x64xf32>, vector<64x32xf32>, vector<8x32xf32> -> vector<8x32xf32>
    %c0_46 = arith.constant 0 : index
    %c0_47 = arith.constant 0 : index
    %79 = vector.load %arg13[%c0_46, %c0_47] : memref<1x32xf32, #tpu.memory_space<vmem>>, vector<1x32xf32>
    %80 = vector.broadcast %79 : vector<1x32xf32> to vector<8x32xf32>
    %81 = arith.addf %78, %80 : vector<8x32xf32>
    %82 = arith.addf %81, %69 : vector<8x32xf32>
    %c0_48 = arith.constant 0 : index
    %c0_49 = arith.constant 0 : index
    %83 = vector.load %arg14[%c0_48, %c0_49] : memref<1x32xf32, #tpu.memory_space<vmem>>, vector<1x32xf32>
    %c0_50 = arith.constant 0 : index
    %c0_51 = arith.constant 0 : index
    %84 = vector.load %arg15[%c0_50, %c0_51] : memref<1x32xf32, #tpu.memory_space<vmem>>, vector<1x32xf32>
    %cst_52 = arith.constant dense<0.000000e+00> : vector<8xf32>
    %85 = vector.multi_reduction <add>, %82, %cst_52 [1] : vector<8x32xf32> to vector<8xf32>
    %86 = vector.shape_cast %85 : vector<8xf32> to vector<8x1xf32>
    %cst_53 = arith.constant 3.200000e+01 : f32
    %87 = vector.broadcast %cst_53 : f32 to vector<8x1xf32>
    %88 = arith.divf %86, %87 : vector<8x1xf32>
    %89 = vector.broadcast %88 : vector<8x1xf32> to vector<8x32xf32>
    %90 = arith.subf %82, %89 : vector<8x32xf32>
    %91 = arith.mulf %90, %90 : vector<8x32xf32>
    %cst_54 = arith.constant dense<0.000000e+00> : vector<8xf32>
    %92 = vector.multi_reduction <add>, %91, %cst_54 [1] : vector<8x32xf32> to vector<8xf32>
    %93 = vector.shape_cast %92 : vector<8xf32> to vector<8x1xf32>
    %cst_55 = arith.constant 3.200000e+01 : f32
    %94 = vector.broadcast %cst_55 : f32 to vector<8x1xf32>
    %95 = arith.divf %93, %94 : vector<8x1xf32>
    %96 = vector.broadcast %88 : vector<8x1xf32> to vector<8x32xf32>
    %97 = arith.subf %82, %96 : vector<8x32xf32>
    %cst_56 = arith.constant 9.99999997E-7 : f32
    %98 = vector.broadcast %cst_56 : f32 to vector<8x1xf32>
    %99 = arith.addf %95, %98 : vector<8x1xf32>
    %100 = math.rsqrt %99 : vector<8x1xf32>
    %101 = vector.broadcast %100 : vector<8x1xf32> to vector<8x32xf32>
    %102 = arith.mulf %97, %101 : vector<8x32xf32>
    %103 = vector.broadcast %83 : vector<1x32xf32> to vector<8x32xf32>
    %104 = arith.mulf %102, %103 : vector<8x32xf32>
    %105 = vector.broadcast %84 : vector<1x32xf32> to vector<8x32xf32>
    %106 = arith.addf %104, %105 : vector<8x32xf32>
    %107 = vector.shape_cast %106 : vector<8x32xf32> to vector<1x8x32xf32>
    %c0_57 = arith.constant 0 : index
    %c0_58 = arith.constant 0 : index
    %c0_59 = arith.constant 0 : index
    %108 = vector.load %arg16[%c0_57, %c0_58, %c0_59] : memref<1x8x32xf32, #tpu.memory_space<vmem>>, vector<1x8x32xf32>
    tpu.vector_store %arg16[%c0_57, %c0_58, %c0_59], %107 {strides = array<i32>} : memref<1x8x32xf32, #tpu.memory_space<vmem>>, vector<1x8x32xf32>,
    return
  }
  func.func @transform_0(%arg0: i32) -> (i32, i32, i32) {
    %c0_i32 = arith.constant 0 : i32
    %c0_i32_0 = arith.constant 0 : i32
    %c0_i32_1 = arith.constant 0 : i32
    return %arg0, %c0_i32, %c0_i32_0 : i32, i32, i32
  }
  func.func @transform_1(%arg0: i32) -> (i32, i32, i32) {
    %c0_i32 = arith.constant 0 : i32
    %c0_i32_0 = arith.constant 0 : i32
    %c0_i32_1 = arith.constant 0 : i32
    return %arg0, %c0_i32, %c0_i32_0 : i32, i32, i32
  }
  func.func @transform_2(%arg0: i32) -> (i32, i32, i32) {
    %c0_i32 = arith.constant 0 : i32
    %c0_i32_0 = arith.constant 0 : i32
    %c0_i32_1 = arith.constant 0 : i32
    return %arg0, %c0_i32, %c0_i32_0 : i32, i32, i32
  }
  func.func @transform_3(%arg0: i32) -> (i32, i32) {
    %c0_i32 = arith.constant 0 : i32
    %c0_i32_0 = arith.constant 0 : i32
    %c0_i32_1 = arith.constant 0 : i32
    return %c0_i32, %c0_i32_0 : i32, i32
  }
  func.func @transform_4(%arg0: i32) -> (i32, i32) {
    %c0_i32 = arith.constant 0 : i32
    %c0_i32_0 = arith.constant 0 : i32
    %c0_i32_1 = arith.constant 0 : i32
    return %c0_i32, %c0_i32_0 : i32, i32
  }
  func.func @transform_5(%arg0: i32) -> (i32, i32) {
    %c0_i32 = arith.constant 0 : i32
    %c0_i32_0 = arith.constant 0 : i32
    %c0_i32_1 = arith.constant 0 : i32
    return %c0_i32, %c0_i32_0 : i32, i32
  }
  func.func @transform_6(%arg0: i32) -> (i32, i32) {
    %c0_i32 = arith.constant 0 : i32
    %c0_i32_0 = arith.constant 0 : i32
    %c0_i32_1 = arith.constant 0 : i32
    return %c0_i32, %c0_i32_0 : i32, i32
  }
  func.func @transform_7(%arg0: i32) -> (i32, i32) {
    %c0_i32 = arith.constant 0 : i32
    %c0_i32_0 = arith.constant 0 : i32
    %c0_i32_1 = arith.constant 0 : i32
    return %c0_i32, %c0_i32_0 : i32, i32
  }
  func.func @transform_8(%arg0: i32) -> (i32, i32) {
    %c0_i32 = arith.constant 0 : i32
    %c0_i32_0 = arith.constant 0 : i32
    %c0_i32_1 = arith.constant 0 : i32
    return %c0_i32, %c0_i32_0 : i32, i32
  }
  func.func @transform_9(%arg0: i32) -> (i32, i32) {
    %c0_i32 = arith.constant 0 : i32
    %c0_i32_0 = arith.constant 0 : i32
    %c0_i32_1 = arith.constant 0 : i32
    return %c0_i32, %c0_i32_0 : i32, i32
  }
  func.func @transform_10(%arg0: i32) -> (i32, i32) {
    %c0_i32 = arith.constant 0 : i32
    %c0_i32_0 = arith.constant 0 : i32
    %c0_i32_1 = arith.constant 0 : i32
    return %c0_i32, %c0_i32_0 : i32, i32
  }
  func.func @transform_11(%arg0: i32) -> (i32, i32) {
    %c0_i32 = arith.constant 0 : i32
    %c0_i32_0 = arith.constant 0 : i32
    %c0_i32_1 = arith.constant 0 : i32
    return %c0_i32, %c0_i32_0 : i32, i32
  }
  func.func @transform_12(%arg0: i32) -> (i32, i32) {
    %c0_i32 = arith.constant 0 : i32
    %c0_i32_0 = arith.constant 0 : i32
    %c0_i32_1 = arith.constant 0 : i32
    return %c0_i32, %c0_i32_0 : i32, i32
  }
  func.func @transform_13(%arg0: i32) -> (i32, i32) {
    %c0_i32 = arith.constant 0 : i32
    %c0_i32_0 = arith.constant 0 : i32
    %c0_i32_1 = arith.constant 0 : i32
    return %c0_i32, %c0_i32_0 : i32, i32
  }
  func.func @transform_14(%arg0: i32) -> (i32, i32) {
    %c0_i32 = arith.constant 0 : i32
    %c0_i32_0 = arith.constant 0 : i32
    %c0_i32_1 = arith.constant 0 : i32
    return %c0_i32, %c0_i32_0 : i32, i32
  }
  func.func @transform_15(%arg0: i32) -> (i32, i32, i32) {
    %c0_i32 = arith.constant 0 : i32
    %c0_i32_0 = arith.constant 0 : i32
    %c0_i32_1 = arith.constant 0 : i32
    return %arg0, %c0_i32, %c0_i32_0 : i32, i32, i32
  }
  func.func @transform_16(%arg0: i32) -> (i32, i32, i32, i32) {
    %c0_i32 = arith.constant 0 : i32
    %c0_i32_0 = arith.constant 0 : i32
    %c0_i32_1 = arith.constant 0 : i32
    %c0_i32_2 = arith.constant 0 : i32
    return %arg0, %c0_i32, %c0_i32_0, %c0_i32_1 : i32, i32, i32, i32
  }
}

</mosaic_0001>

<llo_original>
// kernel: tpu_custom_call.1
$region0: #{tpu_custom_call.1}
  #allocation0 [shape = 'u32[]', space=smem, size = 0x4, offset = 0x4, fixed_abs, tag = 'smem constant byte address 0x4 - core index']
  #allocation1 [shape = 'u32[72,128]{1,0:T(1,128)}', space=vmem, size = 0x9000, scoped, tag = 'internal scratch']
  %s0 = inlined_call_operand.hbm [shape: f32[2,8,32], index: 0, kind: input, shape index: {}]
  %s1 = inlined_call_operand.hbm [shape: f32[2,8,32], index: 1, kind: input, shape index: {}]
  %s2 = inlined_call_operand.hbm [shape: f32[2,8,32], index: 2, kind: input, shape index: {}]
  %s3 = inlined_call_operand.vmem [shape: f32[32,32], index: 3, kind: input, shape index: {}]
  %s4 = inlined_call_operand.vmem [shape: f32[32,32], index: 4, kind: input, shape index: {}]
  %s5 = inlined_call_operand.vmem [shape: f32[32,32], index: 5, kind: input, shape index: {}]
  %s6 = inlined_call_operand.hbm [shape: f32[32,32], index: 6, kind: input, shape index: {}]
  %s7 = inlined_call_operand.vmem [shape: f32[1,32], index: 7, kind: input, shape index: {}]
  %s8 = inlined_call_operand.vmem [shape: f32[1,32], index: 8, kind: input, shape index: {}]
  %s9 = inlined_call_operand.hbm [shape: f32[32,64], index: 9, kind: input, shape index: {}]
  %s10 = inlined_call_operand.vmem [shape: f32[1,64], index: 10, kind: input, shape index: {}]
  %s11 = inlined_call_operand.vmem [shape: f32[64,32], index: 11, kind: input, shape index: {}]
  %s12 = inlined_call_operand.vmem [shape: f32[1,32], index: 12, kind: input, shape index: {}]
  %s13 = inlined_call_operand.vmem [shape: f32[1,32], index: 13, kind: input, shape index: {}]
  %s14 = inlined_call_operand.vmem [shape: f32[1,32], index: 14, kind: input, shape index: {}]
  %s15 = inlined_call_operand.hbm [shape: f32[2,8,32], index: 15, kind: output, shape index: {0}]
  %s16 = inlined_call_operand.hbm [shape: f32[2,4,8,8], index: 16, kind: output, shape index: {1}]
  %17 = xla_tuple %s15, %s16
  %s18 = sld [smem:[#allocation0]]
  $region121: #{tpu_custom_call.1} parent=0
    _
  %s20 = ssub.s32 1, %s18
  %s21 = scalar_select 0, %s20, %s18
  $region1: #{tpu_custom_call.1} parent=0
    #allocation2 [shape = 'u8[8192]{0}', space=vmem, size = 0x2000, scoped, tag = 'input window, operand 0']
    #allocation3 [shape = 's32[2]{0}', space=sflag, size = 0x8, scoped, tag = 'scoped memory for tpu_custom_call.1']
    #allocation4 [shape = 's32[2]{0}', space=sflag, size = 0x8, scoped, tag = 'scoped memory for tpu_custom_call.1']
    #allocation5 [shape = 'u8[8192]{0}', space=vmem, size = 0x2000, scoped, tag = 'input window, operand 1']
    #allocation6 [shape = 's32[2]{0}', space=sflag, size = 0x8, scoped, tag = 'scoped memory for tpu_custom_call.1']
    #allocation7 [shape = 'u8[8192]{0}', space=vmem, size = 0x2000, scoped, tag = 'input window, operand 2']
    #allocation8 [shape = 'u8[16384]{0}', space=vmem, size = 0x4000, scoped, tag = 'input window, operand 6, single buffered']
    #allocation9 [shape = 's32[1]{0}', space=sflag, size = 0x4, scoped, tag = 'scoped memory for tpu_custom_call.1']
    #allocation10 [shape = 'u8[16384]{0}', space=vmem, size = 0x4000, scoped, tag = 'input window, operand 9, single buffered']
    #allocation11 [shape = 'u8[8192]{0}', space=vmem, size = 0x2000, scoped, tag = 'output window, operand 0']
    #allocation12 [shape = 'u8[32768]{0}', space=vmem, size = 0x8000, scoped, tag = 'output window, operand 1']
    #allocation13 [shape = 's32[2]{0}', space=sflag, size = 0x8, scoped, tag = 'scoped memory for tpu_custom_call.1']
    %22 = vsyncpa [#allocation3], 0
    %s23 = scalar_lea.sflag [#allocation3], 1
    %24 = vsyncpa %s23, 0
    %25 = vsyncpa [#allocation6], 0
    %s26 = scalar_lea.sflag [#allocation6], 1
    %27 = vsyncpa %s26, 0
    %28 = vsyncpa [#allocation9], 0
    %29 = vsyncpa [#allocation4], 0
    %s30 = scalar_lea.sflag [#allocation4], 1
    %31 = vsyncpa %s30, 0
    %32 = vsyncpa [#allocation13], 0
    %s33 = scalar_lea.sflag [#allocation13], 1
    %34 = vsyncpa %s33, 0
    loop: start=0, step=1, limit=4
    $region2: #{tpu_custom_call.1} parent=1 // loop_pre_header
      _
    $region3: #{tpu_custom_call.1} parent=1 // loop_header
      %s36 = sphi 0, %s40
      %p37 = scmp.ge.s32.totalorder %s36, 4
      %s46 = sphi 0, %s48
      %s49 = sphi 0, %s46
      %s50 = sphi 0, %s49
      %s66 = sphi 0, %s50
      %s72 = sphi 0, %s74
      %s75 = sphi 0, %s72
      %s76 = sphi 0, %s75
      %s92 = sphi 0, %s76
      %s98 = sphi 0, %s100
      %s101 = sphi 0, %s98
      %s102 = sphi 0, %s101
      %s118 = sphi 0, %s102
      %s122 = sphi 0, %s122
      %s124 = sphi 0, %s122
      %s125 = sphi 0, %s124
      %s139 = sphi 0, %s125
      %s143 = sphi 0, %s143
      %s145 = sphi 0, %s143
      %s146 = sphi 0, %s145
      %s160 = sphi 0, %s146
      %s164 = sphi 0, %s164
      %s166 = sphi 0, %s164
      %s167 = sphi 0, %s166
      %s181 = sphi 0, %s167
      %s185 = sphi 0, %s185
      %s187 = sphi 0, %s185
      %s188 = sphi 0, %s187
      %s202 = sphi 0, %s188
      %s206 = sphi 0, %s206
      %s208 = sphi 0, %s206
      %s209 = sphi 0, %s208
      %s223 = sphi 0, %s209
      %s227 = sphi 0, %s227
      %s229 = sphi 0, %s227
      %s230 = sphi 0, %s229
      %s244 = sphi 0, %s230
      %s248 = sphi 0, %s248
      %s250 = sphi 0, %s248
      %s251 = sphi 0, %s250
      %s265 = sphi 0, %s251
      %s269 = sphi 0, %s269
      %s271 = sphi 0, %s269
      %s272 = sphi 0, %s271
      %s286 = sphi 0, %s272
      %s290 = sphi 0, %s290
      %s292 = sphi 0, %s290
      %s293 = sphi 0, %s292
      %s307 = sphi 0, %s293
      %s311 = sphi 0, %s311
      %s313 = sphi 0, %s311
      %s314 = sphi 0, %s313
      %s328 = sphi 0, %s314
      %s332 = sphi 0, %s332
      %s334 = sphi 0, %s332
      %s335 = sphi 0, %s334
      %s349 = sphi 0, %s335
      %s353 = sphi 0, %s353
      %s355 = sphi 0, %s353
      %s356 = sphi 0, %s355
      %s370 = sphi 0, %s356
      %s376 = sphi 0, %s378
      %s379 = sphi 0, %s376
      %s380 = sphi 0, %s379
      %s396 = sphi 0, %s380
      %s402 = sphi 0, %s404
      %s405 = sphi 0, %s402
      %s406 = sphi 0, %s405
      %s422 = sphi 0, %s406
    $region4: #{tpu_custom_call.1} parent=1 // loop_header_branch
      %39 = sbr.rel (%p37) target = $region8
    $region5: #{tpu_custom_call.1} parent=1 // loop_body
      %s41 = ssub.s32 %s36, 1
      %s42 = ssub.s32 %s36, 2
      %s43 = sadd.s32 %s36, 1
      %s44 = ssub.s32 %s36, %s43
      %p45 = scmp.eq.s32.totalorder %s44, 0
      %s47 = sadd.s32 %s46, 1
      %s48 = scalar_select %p45, %s46, %s47
      %p51 = pneg %p45
      %p52 = scmp.eq.s32.totalorder %s36, 1
      %p53 = por %p51, %p52
      %p54 = scmp.ne.s32.totalorder %s46, %s49
      %p55 = scmp.eq.s32.totalorder %s36, 0
      %p56 = por %p54, %p55
      %p57 = scmp.ne.s32.totalorder %s46, %s49
      %p58 = scmp.eq.s32.totalorder %s41, 1
      %p59 = por %p57, %p58
      %p60 = scmp.ne.s32.totalorder %s49, %s50
      %p61 = scmp.eq.s32.totalorder %s41, 0
      %p62 = por %p60, %p61
      %p63 = scmp.ne.s32.totalorder %s49, %s50
      %p64 = scmp.eq.s32.totalorder %s42, 1
      %p65 = por %p63, %p64
      %p67 = scmp.ne.s32.totalorder %s50, %s66
      %p68 = scmp.eq.s32.totalorder %s42, 0
      %p69 = por %p67, %p68
      %s70 = ssub.s32 %s36, %s43
      %p71 = scmp.eq.s32.totalorder %s70, 0
      %s73 = sadd.s32 %s72, 1
      %s74 = scalar_select %p71, %s72, %s73
      %p77 = pneg %p71
      %p78 = scmp.eq.s32.totalorder %s36, 1
      %p79 = por %p77, %p78
      %p80 = scmp.ne.s32.totalorder %s72, %s75
      %p81 = scmp.eq.s32.totalorder %s36, 0
      %p82 = por %p80, %p81
      %p83 = scmp.ne.s32.totalorder %s72, %s75
      %p84 = scmp.eq.s32.totalorder %s41, 1
      %p85 = por %p83, %p84
      %p86 = scmp.ne.s32.totalorder %s75, %s76
      %p87 = scmp.eq.s32.totalorder %s41, 0
      %p88 = por %p86, %p87
      %p89 = scmp.ne.s32.totalorder %s75, %s76
      %p90 = scmp.eq.s32.totalorder %s42, 1
      %p91 = por %p89, %p90
      %p93 = scmp.ne.s32.totalorder %s76, %s92
      %p94 = scmp.eq.s32.totalorder %s42, 0
      %p95 = por %p93, %p94
      %s96 = ssub.s32 %s36, %s43
      %p97 = scmp.eq.s32.totalorder %s96, 0
      %s99 = sadd.s32 %s98, 1
      %s100 = scalar_select %p97, %s98, %s99
      %p103 = pneg %p97
      %p104 = scmp.eq.s32.totalorder %s36, 1
      %p105 = por %p103, %p104
      %p106 = scmp.ne.s32.totalorder %s98, %s101
      %p107 = scmp.eq.s32.totalorder %s36, 0
      %p108 = por %p106, %p107
      %p109 = scmp.ne.s32.totalorder %s98, %s101
      %p110 = scmp.eq.s32.totalorder %s41, 1
      %p111 = por %p109, %p110
      %p112 = scmp.ne.s32.totalorder %s101, %s102
      %p113 = scmp.eq.s32.totalorder %s41, 0
      %p114 = por %p112, %p113
      %p115 = scmp.ne.s32.totalorder %s101, %s102
      %p116 = scmp.eq.s32.totalorder %s42, 1
      %p117 = por %p115, %p116
      %p119 = scmp.ne.s32.totalorder %s102, %s118
      %p120 = scmp.eq.s32.totalorder %s42, 0
      %p121 = por %p119, %p120
      %s123 = sadd.s32 %s122, 1
      %p126 = scmp.eq.s32.totalorder %s36, 1
      %p127 = scmp.ne.s32.totalorder %s122, %s124
      %p128 = scmp.eq.s32.totalorder %s36, 0
      %p129 = por %p127, %p128
      %p130 = scmp.ne.s32.totalorder %s122, %s124
      %p131 = scmp.eq.s32.totalorder %s41, 1
      %p132 = por %p130, %p131
      %p133 = scmp.ne.s32.totalorder %s124, %s125
      %p134 = scmp.eq.s32.totalorder %s41, 0
      %p135 = por %p133, %p134
      %p136 = scmp.ne.s32.totalorder %s124, %s125
      %p137 = scmp.eq.s32.totalorder %s42, 1
      %p138 = por %p136, %p137
      %p140 = scmp.ne.s32.totalorder %s125, %s139
      %p141 = scmp.eq.s32.totalorder %s42, 0
      %p142 = por %p140, %p141
      %s144 = sadd.s32 %s143, 1
      %p147 = scmp.eq.s32.totalorder %s36, 1
      %p148 = scmp.ne.s32.totalorder %s143, %s145
      %p149 = scmp.eq.s32.totalorder %s36, 0
      %p150 = por %p148, %p149
      %p151 = scmp.ne.s32.totalorder %s143, %s145
      %p152 = scmp.eq.s32.totalorder %s41, 1
      %p153 = por %p151, %p152
      %p154 = scmp.ne.s32.totalorder %s145, %s146
      %p155 = scmp.eq.s32.totalorder %s41, 0
      %p156 = por %p154, %p155
      %p157 = scmp.ne.s32.totalorder %s145, %s146
      %p158 = scmp.eq.s32.totalorder %s42, 1
      %p159 = por %p157, %p158
      %p161 = scmp.ne.s32.totalorder %s146, %s160
      %p162 = scmp.eq.s32.totalorder %s42, 0
      %p163 = por %p161, %p162
      %s165 = sadd.s32 %s164, 1
      %p168 = scmp.eq.s32.totalorder %s36, 1
      %p169 = scmp.ne.s32.totalorder %s164, %s166
      %p170 = scmp.eq.s32.totalorder %s36, 0
      %p171 = por %p169, %p170
      %p172 = scmp.ne.s32.totalorder %s164, %s166
      %p173 = scmp.eq.s32.totalorder %s41, 1
      %p174 = por %p172, %p173
      %p175 = scmp.ne.s32.totalorder %s166, %s167
      %p176 = scmp.eq.s32.totalorder %s41, 0
      %p177 = por %p175, %p176
      %p178 = scmp.ne.s32.totalorder %s166, %s167
      %p179 = scmp.eq.s32.totalorder %s42, 1
      %p180 = por %p178, %p179
      %p182 = scmp.ne.s32.totalorder %s167, %s181
      %p183 = scmp.eq.s32.totalorder %s42, 0
      %p184 = por %p182, %p183
      %s186 = sadd.s32 %s185, 1
      %p189 = scmp.eq.s32.totalorder %s36, 1
      %p190 = scmp.ne.s32.totalorder %s185, %s187
      %p191 = scmp.eq.s32.totalorder %s36, 0
      %p192 = por %p190, %p191
      %p193 = scmp.ne.s32.totalorder %s185, %s187
      %p194 = scmp.eq.s32.totalorder %s41, 1
      %p195 = por %p193, %p194
      %p196 = scmp.ne.s32.totalorder %s187, %s188
      %p197 = scmp.eq.s32.totalorder %s41, 0
      %p198 = por %p196, %p197
      %p199 = scmp.ne.s32.totalorder %s187, %s188
      %p200 = scmp.eq.s32.totalorder %s42, 1
      %p201 = por %p199, %p200
      %p203 = scmp.ne.s32.totalorder %s188, %s202
      %p204 = scmp.eq.s32.totalorder %s42, 0
      %p205 = por %p203, %p204
      %s207 = sadd.s32 %s206, 1
      %p210 = scmp.eq.s32.totalorder %s36, 1
      %p211 = scmp.ne.s32.totalorder %s206, %s208
      %p212 = scmp.eq.s32.totalorder %s36, 0
      %p213 = por %p211, %p212
      %p214 = scmp.ne.s32.totalorder %s206, %s208
      %p215 = scmp.eq.s32.totalorder %s41, 1
      %p216 = por %p214, %p215
      %p217 = scmp.ne.s32.totalorder %s208, %s209
      %p218 = scmp.eq.s32.totalorder %s41, 0
      %p219 = por %p217, %p218
      %p220 = scmp.ne.s32.totalorder %s208, %s209
      %p221 = scmp.eq.s32.totalorder %s42, 1
      %p222 = por %p220, %p221
      %p224 = scmp.ne.s32.totalorder %s209, %s223
      %p225 = scmp.eq.s32.totalorder %s42, 0
      %p226 = por %p224, %p225
      %s228 = sadd.s32 %s227, 1
      %p231 = scmp.eq.s32.totalorder %s36, 1
      %p232 = scmp.ne.s32.totalorder %s227, %s229
      %p233 = scmp.eq.s32.totalorder %s36, 0
      %p234 = por %p232, %p233
      %p235 = scmp.ne.s32.totalorder %s227, %s229
      %p236 = scmp.eq.s32.totalorder %s41, 1
      %p237 = por %p235, %p236
      %p238 = scmp.ne.s32.totalorder %s229, %s230
      %p239 = scmp.eq.s32.totalorder %s41, 0
      %p240 = por %p238, %p239
      %p241 = scmp.ne.s32.totalorder %s229, %s230
      %p242 = scmp.eq.s32.totalorder %s42, 1
      %p243 = por %p241, %p242
      %p245 = scmp.ne.s32.totalorder %s230, %s244
      %p246 = scmp.eq.s32.totalorder %s42, 0
      %p247 = por %p245, %p246
      %s249 = sadd.s32 %s248, 1
      %p252 = scmp.eq.s32.totalorder %s36, 1
      %p253 = scmp.ne.s32.totalorder %s248, %s250
      %p254 = scmp.eq.s32.totalorder %s36, 0
      %p255 = por %p253, %p254
      %p256 = scmp.ne.s32.totalorder %s248, %s250
      %p257 = scmp.eq.s32.totalorder %s41, 1
      %p258 = por %p256, %p257
      %p259 = scmp.ne.s32.totalorder %s250, %s251
      %p260 = scmp.eq.s32.totalorder %s41, 0
      %p261 = por %p259, %p260
      %p262 = scmp.ne.s32.totalorder %s250, %s251
      %p263 = scmp.eq.s32.totalorder %s42, 1
      %p264 = por %p262, %p263
      %p266 = scmp.ne.s32.totalorder %s251, %s265
      %p267 = scmp.eq.s32.totalorder %s42, 0
      %p268 = por %p266, %p267
      %s270 = sadd.s32 %s269, 1
      %p273 = scmp.eq.s32.totalorder %s36, 1
      %p274 = scmp.ne.s32.totalorder %s269, %s271
      %p275 = scmp.eq.s32.totalorder %s36, 0
      %p276 = por %p274, %p275
      %p277 = scmp.ne.s32.totalorder %s269, %s271
      %p278 = scmp.eq.s32.totalorder %s41, 1
      %p279 = por %p277, %p278
      %p280 = scmp.ne.s32.totalorder %s271, %s272
      %p281 = scmp.eq.s32.totalorder %s41, 0
      %p282 = por %p280, %p281
      %p283 = scmp.ne.s32.totalorder %s271, %s272
      %p284 = scmp.eq.s32.totalorder %s42, 1
      %p285 = por %p283, %p284
      %p287 = scmp.ne.s32.totalorder %s272, %s286
      %p288 = scmp.eq.s32.totalorder %s42, 0
      %p289 = por %p287, %p288
      %s291 = sadd.s32 %s290, 1
      %p294 = scmp.eq.s32.totalorder %s36, 1
      %p295 = scmp.ne.s32.totalorder %s290, %s292
      %p296 = scmp.eq.s32.totalorder %s36, 0
      %p297 = por %p295, %p296
      %p298 = scmp.ne.s32.totalorder %s290, %s292
      %p299 = scmp.eq.s32.totalorder %s41, 1
      %p300 = por %p298, %p299
      %p301 = scmp.ne.s32.totalorder %s292, %s293
      %p302 = scmp.eq.s32.totalorder %s41, 0
      %p303 = por %p301, %p302
      %p304 = scmp.ne.s32.totalorder %s292, %s293
      %p305 = scmp.eq.s32.totalorder %s42, 1
      %p306 = por %p304, %p305
      %p308 = scmp.ne.s32.totalorder %s293, %s307
      %p309 = scmp.eq.s32.totalorder %s42, 0
      %p310 = por %p308, %p309
      %s312 = sadd.s32 %s311, 1
      %p315 = scmp.eq.s32.totalorder %s36, 1
      %p316 = scmp.ne.s32.totalorder %s311, %s313
      %p317 = scmp.eq.s32.totalorder %s36, 0
      %p318 = por %p316, %p317
      %p319 = scmp.ne.s32.totalorder %s311, %s313
      %p320 = scmp.eq.s32.totalorder %s41, 1
      %p321 = por %p319, %p320
      %p322 = scmp.ne.s32.totalorder %s313, %s314
      %p323 = scmp.eq.s32.totalorder %s41, 0
      %p324 = por %p322, %p323
      %p325 = scmp.ne.s32.totalorder %s313, %s314
      %p326 = scmp.eq.s32.totalorder %s42, 1
      %p327 = por %p325, %p326
      %p329 = scmp.ne.s32.totalorder %s314, %s328
      %p330 = scmp.eq.s32.totalorder %s42, 0
      %p331 = por %p329, %p330
      %s333 = sadd.s32 %s332, 1
      %p336 = scmp.eq.s32.totalorder %s36, 1
      %p337 = scmp.ne.s32.totalorder %s332, %s334
      %p338 = scmp.eq.s32.totalorder %s36, 0
      %p339 = por %p337, %p338
      %p340 = scmp.ne.s32.totalorder %s332, %s334
      %p341 = scmp.eq.s32.totalorder %s41, 1
      %p342 = por %p340, %p341
      %p343 = scmp.ne.s32.totalorder %s334, %s335
      %p344 = scmp.eq.s32.totalorder %s41, 0
      %p345 = por %p343, %p344
      %p346 = scmp.ne.s32.totalorder %s334, %s335
      %p347 = scmp.eq.s32.totalorder %s42, 1
      %p348 = por %p346, %p347
      %p350 = scmp.ne.s32.totalorder %s335, %s349
      %p351 = scmp.eq.s32.totalorder %s42, 0
      %p352 = por %p350, %p351
      %s354 = sadd.s32 %s353, 1
      %p357 = scmp.eq.s32.totalorder %s36, 1
      %p358 = scmp.ne.s32.totalorder %s353, %s355
      %p359 = scmp.eq.s32.totalorder %s36, 0
      %p360 = por %p358, %p359
      %p361 = scmp.ne.s32.totalorder %s353, %s355
      %p362 = scmp.eq.s32.totalorder %s41, 1
      %p363 = por %p361, %p362
      %p364 = scmp.ne.s32.totalorder %s355, %s356
      %p365 = scmp.eq.s32.totalorder %s41, 0
      %p366 = por %p364, %p365
      %p367 = scmp.ne.s32.totalorder %s355, %s356
      %p368 = scmp.eq.s32.totalorder %s42, 1
      %p369 = por %p367, %p368
      %p371 = scmp.ne.s32.totalorder %s356, %s370
      %p372 = scmp.eq.s32.totalorder %s42, 0
      %p373 = por %p371, %p372
      %s374 = ssub.s32 %s36, %s43
      %p375 = scmp.eq.s32.totalorder %s374, 0
      %s377 = sadd.s32 %s376, 1
      %s378 = scalar_select %p375, %s376, %s377
      %p381 = pneg %p375
      %p382 = scmp.eq.s32.totalorder %s36, 1
      %p383 = por %p381, %p382
      %p384 = scmp.ne.s32.totalorder %s376, %s379
      %p385 = scmp.eq.s32.totalorder %s36, 0
      %p386 = por %p384, %p385
      %p387 = scmp.ne.s32.totalorder %s376, %s379
      %p388 = scmp.eq.s32.totalorder %s41, 1
      %p389 = por %p387, %p388
      %p390 = scmp.ne.s32.totalorder %s379, %s380
      %p391 = scmp.eq.s32.totalorder %s41, 0
      %p392 = por %p390, %p391
      %p393 = scmp.ne.s32.totalorder %s379, %s380
      %p394 = scmp.eq.s32.totalorder %s42, 1
      %p395 = por %p393, %p394
      %p397 = scmp.ne.s32.totalorder %s380, %s396
      %p398 = scmp.eq.s32.totalorder %s42, 0
      %p399 = por %p397, %p398
      %s400 = ssub.s32 %s36, %s43
      %p401 = scmp.eq.s32.totalorder %s400, 0
      %s403 = sadd.s32 %s402, 1
      %s404 = scalar_select %p401, %s402, %s403
      %p407 = pneg %p401
      %p408 = scmp.eq.s32.totalorder %s36, 1
      %p409 = por %p407, %p408
      %p410 = scmp.ne.s32.totalorder %s402, %s405
      %p411 = scmp.eq.s32.totalorder %s36, 0
      %p412 = por %p410, %p411
      %p413 = scmp.ne.s32.totalorder %s402, %s405
      %p414 = scmp.eq.s32.totalorder %s41, 1
      %p415 = por %p413, %p414
      %p416 = scmp.ne.s32.totalorder %s405, %s406
      %p417 = scmp.eq.s32.totalorder %s41, 0
      %p418 = por %p416, %p417
      %p419 = scmp.ne.s32.totalorder %s405, %s406
      %p420 = scmp.eq.s32.totalorder %s42, 1
      %p421 = por %p419, %p420
      %p423 = scmp.ne.s32.totalorder %s406, %s422
      %p424 = scmp.eq.s32.totalorder %s42, 0
      %p425 = por %p423, %p424
      %p426 = scmp.le.s32.totalorder 1, %s36
      %p427 = scmp.lt.s32.totalorder %s36, 3
      %p428 = pnand %p426, %p427
      %p429 = pneg %p428
      // Predicated region
      $region9: #{tpu_custom_call.1} parent=5 // pred_check
        _
      $region10: #{tpu_custom_call.1} parent=5 // pred_check_branch
        %431 = sbr.rel (%p428) target = $region12
      $region11: #{tpu_custom_call.1} parent=5 // pred_region
        %s432 = ssub.s32 %s36, 1
        // Predicated region
        $region13: #{tpu_custom_call.1} parent=11 // pred_check
          %p433 = pneg %p135
        $region14: #{tpu_custom_call.1} parent=11 // pred_check_branch
          %435 = sbr.rel (%p433) target = $region16
        $region15: #{tpu_custom_call.1} parent=11 // pred_region
          _
        $region16: #{tpu_custom_call.1} parent=11 // pred_fallthru
          _
        // Predicated region
        $region17: #{tpu_custom_call.1} parent=11 // pred_check
          %p436 = pneg %p156
        $region18: #{tpu_custom_call.1} parent=11 // pred_check_branch
          %438 = sbr.rel (%p436) target = $region20
        $region19: #{tpu_custom_call.1} parent=11 // pred_region
          _
        $region20: #{tpu_custom_call.1} parent=11 // pred_fallthru
          _
        // Predicated region
        $region21: #{tpu_custom_call.1} parent=11 // pred_check
          %p439 = pneg %p177
        $region22: #{tpu_custom_call.1} parent=11 // pred_check_branch
          %441 = sbr.rel (%p439) target = $region24
        $region23: #{tpu_custom_call.1} parent=11 // pred_region
          _
        $region24: #{tpu_custom_call.1} parent=11 // pred_fallthru
          _
        // Predicated region
        $region25: #{tpu_custom_call.1} parent=11 // pred_check
          %p442 = pneg %p198
        $region26: #{tpu_custom_call.1} parent=11 // pred_check_branch
          %444 = sbr.rel (%p442) target = $region28
        $region27: #{tpu_custom_call.1} parent=11 // pred_region
          %446 = vsyncadd [#allocation9], 0
          %s447 = sshll.u32 %s6, 4
          %s448 = int_to_ptr.hbm [resolvable:$true] %s447
          %s449 = sshll.u32 [#allocation8], 4
          %s450 = int_to_ptr.vmem [resolvable:$true] %s449
          %455 = dma.hbm_to_vmem [thread:$0]  %s448, 512, %s450, [#allocation9], 128, 128, 8
        $region28: #{tpu_custom_call.1} parent=11 // pred_fallthru
          _
        // Predicated region
        $region29: #{tpu_custom_call.1} parent=11 // pred_check
          %p456 = pneg %p219
        $region30: #{tpu_custom_call.1} parent=11 // pred_check_branch
          %458 = sbr.rel (%p456) target = $region32
        $region31: #{tpu_custom_call.1} parent=11 // pred_region
          _
        $region32: #{tpu_custom_call.1} parent=11 // pred_fallthru
          _
        // Predicated region
        $region33: #{tpu_custom_call.1} parent=11 // pred_check
          %p459 = pneg %p240
        $region34: #{tpu_custom_call.1} parent=11 // pred_check_branch
          %461 = sbr.rel (%p459) target = $region36
        $region35: #{tpu_custom_call.1} parent=11 // pred_region
          _
        $region36: #{tpu_custom_call.1} parent=11 // pred_fallthru
          _
        // Predicated region
        $region37: #{tpu_custom_call.1} parent=11 // pred_check
          %p462 = pneg %p261
        $region38: #{tpu_custom_call.1} parent=11 // pred_check_branch
          %464 = sbr.rel (%p462) target = $region40
        $region39: #{tpu_custom_call.1} parent=11 // pred_region
          %466 = vsyncadd [#allocation9], 0
          %s467 = sshll.u32 %s9, 4
          %s468 = int_to_ptr.hbm [resolvable:$true] %s467
          %s469 = sshll.u32 [#allocation10], 4
          %s470 = int_to_ptr.vmem [resolvable:$true] %s469
          %475 = dma.hbm_to_vmem [thread:$0]  %s468, 512, %s470, [#allocation9], 128, 128, 8
        $region40: #{tpu_custom_call.1} parent=11 // pred_fallthru
          _
        // Predicated region
        $region41: #{tpu_custom_call.1} parent=11 // pred_check
          %p476 = pneg %p282
        $region42: #{tpu_custom_call.1} parent=11 // pred_check_branch
          %478 = sbr.rel (%p476) target = $region44
        $region43: #{tpu_custom_call.1} parent=11 // pred_region
          _
        $region44: #{tpu_custom_call.1} parent=11 // pred_fallthru
          _
        // Predicated region
        $region45: #{tpu_custom_call.1} parent=11 // pred_check
          %p479 = pneg %p303
        $region46: #{tpu_custom_call.1} parent=11 // pred_check_branch
          %481 = sbr.rel (%p479) target = $region48
        $region47: #{tpu_custom_call.1} parent=11 // pred_region
          _
        $region48: #{tpu_custom_call.1} parent=11 // pred_fallthru
          _
        // Predicated region
        $region49: #{tpu_custom_call.1} parent=11 // pred_check
          %p482 = pneg %p324
        $region50: #{tpu_custom_call.1} parent=11 // pred_check_branch
          %484 = sbr.rel (%p482) target = $region52
        $region51: #{tpu_custom_call.1} parent=11 // pred_region
          _
        $region52: #{tpu_custom_call.1} parent=11 // pred_fallthru
          _
        // Predicated region
        $region53: #{tpu_custom_call.1} parent=11 // pred_check
          %p485 = pneg %p345
        $region54: #{tpu_custom_call.1} parent=11 // pred_check_branch
          %487 = sbr.rel (%p485) target = $region56
        $region55: #{tpu_custom_call.1} parent=11 // pred_region
          _
        $region56: #{tpu_custom_call.1} parent=11 // pred_fallthru
          _
        // Predicated region
        $region57: #{tpu_custom_call.1} parent=11 // pred_check
          %p488 = pneg %p366
        $region58: #{tpu_custom_call.1} parent=11 // pred_check_branch
          %490 = sbr.rel (%p488) target = $region60
        $region59: #{tpu_custom_call.1} parent=11 // pred_region
          _
        $region60: #{tpu_custom_call.1} parent=11 // pred_fallthru
          _
      $region12: #{tpu_custom_call.1} parent=5 // pred_fallthru
        _
      %p491 = scmp.lt.s32.totalorder %s36, 2
      // Predicated region
      $region61: #{tpu_custom_call.1} parent=5 // pred_check
        %p492 = pneg %p491
      $region62: #{tpu_custom_call.1} parent=5 // pred_check_branch
        %494 = sbr.rel (%p492) target = $region64
      $region63: #{tpu_custom_call.1} parent=5 // pred_region
        // Predicated region
        $region65: #{tpu_custom_call.1} parent=63 // pred_check
          %p495 = pneg %p56
        $region66: #{tpu_custom_call.1} parent=63 // pred_check_branch
          %497 = sbr.rel (%p495) target = $region68
        $region67: #{tpu_custom_call.1} parent=63 // pred_region
          %s498 = sand.u32 %s46, 1
          %s499 = scalar_lea.sflag [#allocation3], %s498
          %s500 = sand.u32 %s46, 1
          %s501 = smul.addr %s500, 8
          %s502 = scalar_lea.vmem [#allocation2], %s501
          %504 = vsyncadd %s499, 0
          %s505 = smul.addr %s36, 8
          %s506 = scalar_lea.hbm %s0, %s505
          %s508 = sshll.u32 %s506, 4
          %s509 = int_to_ptr.hbm [resolvable:$true] %s508
          %s510 = sshll.u32 %s502, 4
          %s511 = int_to_ptr.vmem [resolvable:$true] %s510
          %513 = dma.hbm_to_vmem [thread:$0]  %s509, 128, %s511, %s499
        $region68: #{tpu_custom_call.1} parent=63 // pred_fallthru
          _
        // Predicated region
        $region69: #{tpu_custom_call.1} parent=63 // pred_check
          %p514 = pneg %p82
        $region70: #{tpu_custom_call.1} parent=63 // pred_check_branch
          %516 = sbr.rel (%p514) target = $region72
        $region71: #{tpu_custom_call.1} parent=63 // pred_region
          %s517 = sand.u32 %s36, 1
          %s518 = scalar_lea.sflag [#allocation6], %s517
          %s519 = sand.u32 %s72, 1
          %s520 = smul.addr %s519, 8
          %s521 = scalar_lea.vmem [#allocation5], %s520
          %523 = vsyncadd %s518, 0
          %s524 = smul.addr %s36, 8
          %s525 = scalar_lea.hbm %s1, %s524
          %s527 = sshll.u32 %s525, 4
          %s528 = int_to_ptr.hbm [resolvable:$true] %s527
          %s529 = sshll.u32 %s521, 4
          %s530 = int_to_ptr.vmem [resolvable:$true] %s529
          %532 = dma.hbm_to_vmem [thread:$0]  %s528, 128, %s530, %s518
        $region72: #{tpu_custom_call.1} parent=63 // pred_fallthru
          _
        // Predicated region
        $region73: #{tpu_custom_call.1} parent=63 // pred_check
          %p533 = pneg %p108
        $region74: #{tpu_custom_call.1} parent=63 // pred_check_branch
          %535 = sbr.rel (%p533) target = $region76
        $region75: #{tpu_custom_call.1} parent=63 // pred_region
          %s536 = sand.u32 %s36, 1
          %s537 = scalar_lea.sflag [#allocation6], %s536
          %s538 = sand.u32 %s98, 1
          %s539 = smul.addr %s538, 8
          %s540 = scalar_lea.vmem [#allocation7], %s539
          %542 = vsyncadd %s537, 0
          %s543 = smul.addr %s36, 8
          %s544 = scalar_lea.hbm %s2, %s543
          %s546 = sshll.u32 %s544, 4
          %s547 = int_to_ptr.hbm [resolvable:$true] %s546
          %s548 = sshll.u32 %s540, 4
          %s549 = int_to_ptr.vmem [resolvable:$true] %s548
          %551 = dma.hbm_to_vmem [thread:$0]  %s547, 128, %s549, %s537
        $region76: #{tpu_custom_call.1} parent=63 // pred_fallthru
          _
      $region64: #{tpu_custom_call.1} parent=5 // pred_fallthru
        _
      %p552 = scmp.le.s32.totalorder 1, %s36
      %p553 = scmp.lt.s32.totalorder %s36, 3
      %p554 = pnand %p552, %p553
      %p555 = pneg %p554
      // Predicated region
      $region77: #{tpu_custom_call.1} parent=5 // pred_check
        _
      $region78: #{tpu_custom_call.1} parent=5 // pred_check_branch
        %557 = sbr.rel (%p554) target = $region80
      $region79: #{tpu_custom_call.1} parent=5 // pred_region
        %s558 = ssub.s32 %s36, 1
        %s559 = sand.u32 %s49, 1
        %s560 = scalar_lea.sflag [#allocation3], %s559
        %s561 = sand.u32 %s49, 1
        %s562 = smul.addr %s561, 8
        %s563 = scalar_lea.vmem [#allocation2], %s562
        // Predicated region
        $region81: #{tpu_custom_call.1} parent=79 // pred_check
          %p564 = pneg %p62
        $region82: #{tpu_custom_call.1} parent=79 // pred_check_branch
          %566 = sbr.rel (%p564) target = $region84
        $region83: #{tpu_custom_call.1} parent=79 // pred_region
          %568 = dma.done %s560, 128
        $region84: #{tpu_custom_call.1} parent=79 // pred_fallthru
          _
        %s569 = sand.u32 %s41, 1
        %s570 = scalar_lea.sflag [#allocation6], %s569
        %s571 = sand.u32 %s75, 1
        %s572 = smul.addr %s571, 8
        %s573 = scalar_lea.vmem [#allocation5], %s572
        // Predicated region
        $region85: #{tpu_custom_call.1} parent=79 // pred_check
          %p574 = pneg %p88
        $region86: #{tpu_custom_call.1} parent=79 // pred_check_branch
          %576 = sbr.rel (%p574) target = $region88
        $region87: #{tpu_custom_call.1} parent=79 // pred_region
          %578 = dma.done %s570, 128
        $region88: #{tpu_custom_call.1} parent=79 // pred_fallthru
          _
        %s579 = sand.u32 %s41, 1
        %s580 = scalar_lea.sflag [#allocation6], %s579
        %s581 = sand.u32 %s101, 1
        %s582 = smul.addr %s581, 8
        %s583 = scalar_lea.vmem [#allocation7], %s582
        // Predicated region
        $region89: #{tpu_custom_call.1} parent=79 // pred_check
          %p584 = pneg %p114
        $region90: #{tpu_custom_call.1} parent=79 // pred_check_branch
          %586 = sbr.rel (%p584) target = $region92
        $region91: #{tpu_custom_call.1} parent=79 // pred_region
          %588 = dma.done %s580, 128
        $region92: #{tpu_custom_call.1} parent=79 // pred_fallthru
          _
        // Predicated region
        $region93: #{tpu_custom_call.1} parent=79 // pred_check
          %p589 = pneg %p198
        $region94: #{tpu_custom_call.1} parent=79 // pred_check_branch
          %591 = sbr.rel (%p589) target = $region96
        $region95: #{tpu_custom_call.1} parent=79 // pred_region
          %593 = dma.done [#allocation9], 512
        $region96: #{tpu_custom_call.1} parent=79 // pred_fallthru
          _
        // Predicated region
        $region97: #{tpu_custom_call.1} parent=79 // pred_check
          %p594 = pneg %p261
        $region98: #{tpu_custom_call.1} parent=79 // pred_check_branch
          %596 = sbr.rel (%p594) target = $region100
        $region99: #{tpu_custom_call.1} parent=79 // pred_region
          %598 = dma.done [#allocation9], 512
        $region100: #{tpu_custom_call.1} parent=79 // pred_fallthru
          _
        %s599 = sand.u32 %s49, 1
        %s600 = scalar_lea.sflag [#allocation3], %s599
        %s601 = sand.u32 %s49, 1
        %s602 = smul.addr %s601, 8
        %s603 = scalar_lea.vmem [#allocation2], %s602
        %p604 = pneg %p62
        %p605 = pneg %p59
        %s606 = sand.u32 %s41, 1
        %s607 = scalar_lea.sflag [#allocation6], %s606
        %s608 = sand.u32 %s75, 1
        %s609 = smul.addr %s608, 8
        %s610 = scalar_lea.vmem [#allocation5], %s609
        %p611 = pneg %p88
        %p612 = pneg %p85
        %s613 = sand.u32 %s41, 1
        %s614 = scalar_lea.sflag [#allocation6], %s613
        %s615 = sand.u32 %s101, 1
        %s616 = smul.addr %s615, 8
        %s617 = scalar_lea.vmem [#allocation7], %s616
        %p618 = pneg %p114
        %p619 = pneg %p111
        %p620 = pneg %p135
        %p621 = pneg %p132
        %p622 = pneg %p156
        %p623 = pneg %p153
        %p624 = pneg %p177
        %p625 = pneg %p174
        %p626 = pneg %p198
        %p627 = pneg %p195
        %p628 = pneg %p219
        %p629 = pneg %p216
        %p630 = pneg %p240
        %p631 = pneg %p237
        %p632 = pneg %p261
        %p633 = pneg %p258
        %p634 = pneg %p282
        %p635 = pneg %p279
        %p636 = pneg %p303
        %p637 = pneg %p300
        %p638 = pneg %p324
        %p639 = pneg %p321
        %p640 = pneg %p345
        %p641 = pneg %p342
        %p642 = pneg %p366
        %p643 = pneg %p363
        %p644 = pneg %p392
        %p645 = pneg %p389
        %s646 = sand.u32 %s379, 1
        %s647 = scalar_lea.sflag [#allocation4], %s646
        %s648 = sand.u32 %s379, 1
        %s649 = smul.addr %s648, 8
        %s650 = scalar_lea.vmem [#allocation11], %s649
        %p651 = pneg %p418
        %p652 = pneg %p415
        %s653 = sand.u32 %s405, 1
        %s654 = scalar_lea.sflag [#allocation13], %s653
        %s655 = sand.u32 %s405, 1
        %s656 = smul.addr %s655, 32
        %s657 = scalar_lea.vmem [#allocation12], %s656
        %v658 = vld [vmem:[%s563] sm:$0xff]
        %v659 = vld [vmem:[%s573] sm:$0xff]
        %v660 = vld [vmem:[%s583] sm:$0xff]
        %v661 = vld [vmem:[%s3] sm:$0xff]
        %v662 = vld [vmem:[%s3 + $0x8] sm:$0xff]
        %v663 = vld [vmem:[%s3 + $0x10] sm:$0xff]
        %v664 = vld [vmem:[%s3 + $0x18] sm:$0xff]
        %vm665 = vcmask 261120
        %v667 = vsel %vm665, %v658, 0
        %669 = vmatpush.msra.mxu0 0.0
        %670 = vmatpush.msra.mxu0 0.0
        %671 = vmatpush.msra.mxu0 0.0
        %672 = vmatpush.msra.mxu0 0.0
        %673 = vmatpush.msra.mxu0 0.0
        %674 = vmatpush.msra.mxu0 0.0
        %675 = vmatpush.msra.mxu0 0.0
        %676 = vmatpush.msra.mxu0 0.0
        %677 = vmatpush.msra.mxu0 0.0
        %678 = vmatpush.msra.mxu0 0.0
        %679 = vmatpush.msra.mxu0 0.0
        %680 = vmatpush.msra.mxu0 0.0
        %681 = vmatpush.msra.mxu0 %v664
        %682 = vmatpush.msra.mxu0 %v663
        %683 = vmatpush.msra.mxu0 %v662
        %684 = vmatpush.msra.mxu0 %v661
        %685 = vmatmul.f32.gmra.mxu0 %v667
        %v686 = vpop.f32.mrf.mxu0
        %v687 = vadd.f32 0.0, %v686
        %688 = vdwg.mxu0
        %v689 = vld [vmem:[%s4] sm:$0xff]
        %v690 = vld [vmem:[%s4 + $0x8] sm:$0xff]
        %v691 = vld [vmem:[%s4 + $0x10] sm:$0xff]
        %v692 = vld [vmem:[%s4 + $0x18] sm:$0xff]
        %v694 = vsel %vm665, %v659, 0
        %696 = vmatpush.msra.mxu0 0.0
        %697 = vmatpush.msra.mxu0 0.0
        %698 = vmatpush.msra.mxu0 0.0
        %699 = vmatpush.msra.mxu0 0.0
        %700 = vmatpush.msra.mxu0 0.0
        %701 = vmatpush.msra.mxu0 0.0
        %702 = vmatpush.msra.mxu0 0.0
        %703 = vmatpush.msra.mxu0 0.0
        %704 = vmatpush.msra.mxu0 0.0
        %705 = vmatpush.msra.mxu0 0.0
        %706 = vmatpush.msra.mxu0 0.0
        %707 = vmatpush.msra.mxu0 0.0
        %708 = vmatpush.msra.mxu0 %v692
        %709 = vmatpush.msra.mxu0 %v691
        %710 = vmatpush.msra.mxu0 %v690
        %711 = vmatpush.msra.mxu0 %v689
        %712 = vmatmul.f32.gmra.mxu0 %v694
        %v713 = vpop.f32.mrf.mxu0
        %v714 = vadd.f32 0.0, %v713
        %715 = vdwg.mxu0
        %v716 = vld [vmem:[%s5] sm:$0xff]
        %v717 = vld [vmem:[%s5 + $0x8] sm:$0xff]
        %v718 = vld [vmem:[%s5 + $0x10] sm:$0xff]
        %v719 = vld [vmem:[%s5 + $0x18] sm:$0xff]
        %v721 = vsel %vm665, %v660, 0
        %723 = vmatpush.msra.mxu0 0.0
        %724 = vmatpush.msra.mxu0 0.0
        %725 = vmatpush.msra.mxu0 0.0
        %726 = vmatpush.msra.mxu0 0.0
        %727 = vmatpush.msra.mxu0 0.0
        %728 = vmatpush.msra.mxu0 0.0
        %729 = vmatpush.msra.mxu0 0.0
        %730 = vmatpush.msra.mxu0 0.0
        %731 = vmatpush.msra.mxu0 0.0
        %732 = vmatpush.msra.mxu0 0.0
        %733 = vmatpush.msra.mxu0 0.0
        %734 = vmatpush.msra.mxu0 0.0
        %735 = vmatpush.msra.mxu0 %v719
        %736 = vmatpush.msra.mxu0 %v718
        %737 = vmatpush.msra.mxu0 %v717
        %738 = vmatpush.msra.mxu0 %v716
        %739 = vmatmul.f32.gmra.mxu0 %v721
        %v740 = vpop.f32.mrf.mxu0
        %v741 = vadd.f32 0.0, %v740
        %742 = vdwg.mxu0
        %744 = vrot.lane.b32.xlu0 %v687, 120
        %v745 = vpop.permute.xlu0 %744
        %747 = vrot.lane.b32.xlu0 %v687, 112
        %v748 = vpop.permute.xlu0 %747
        %750 = vrot.lane.b32.xlu0 %v687, 104
        %v751 = vpop.permute.xlu0 %750
        %v753 = vrot.slane %v748, 4
        %vm754 = vcmask 1047556
        %v755 = vsel %vm754, %v753, %v687
        %v756 = vrot.slane %v687, 4
        %v757 = vsel %vm754, %v748, %v756
        %v759 = vunpack.c.l.s4 1983009808
        %v760 = vunpack.c.0.s8 %v759
        %v761 = vperm.slane %v755, %v760
        %v763 = vunpack.c.l.s4 1983009808
        %v764 = vunpack.c.0.s8 %v763
        %v765 = vperm.slane %v757, %v764
        %v766 = vrot.slane %v751, 4
        %v767 = vsel %vm754, %v766, %v745
        %v768 = vrot.slane %v745, 4
        %v769 = vsel %vm754, %v751, %v768
        %v771 = vunpack.c.l.s4 1983009808
        %v772 = vunpack.c.0.s8 %v771
        %v773 = vperm.slane %v767, %v772
        %v775 = vunpack.c.l.s4 1983009808
        %v776 = vunpack.c.0.s8 %v775
        %v777 = vperm.slane %v769, %v776
        %v778 = vrot.slane %v773, 4
        %v779 = vsel %vm754, %v778, %v761
        %v780 = vrot.slane %v761, 4
        %v781 = vsel %vm754, %v773, %v780
        %v783 = vunpack.c.l.s4 1934713408
        %v784 = vunpack.c.0.s8 %v783
        %v785 = vperm.slane %v779, %v784
        %v787 = vunpack.c.l.s4 1934713408
        %v788 = vunpack.c.0.s8 %v787
        %v789 = vperm.slane %v781, %v788
        %v790 = vrot.slane %v777, 4
        %v791 = vsel %vm754, %v790, %v765
        %v792 = vrot.slane %v765, 4
        %v793 = vsel %vm754, %v777, %v792
        %v795 = vunpack.c.l.s4 1934713408
        %v796 = vunpack.c.0.s8 %v795
        %v797 = vperm.slane %v791, %v796
        %v799 = vunpack.c.l.s4 1934713408
        %v800 = vunpack.c.0.s8 %v799
        %v801 = vperm.slane %v793, %v800
        %v802 = vrot.slane %v785, 4
        %v803 = vsel %vm754, 0.0, %v802
        %v804 = vrot.slane %v789, 4
        %v805 = vsel %vm754, 0.0, %v804
        %v806 = vrot.slane %v797, 4
        %v807 = vsel %vm754, 0.0, %v806
        %v808 = vrot.slane %v801, 4
        %v809 = vsel %vm754, 0.0, %v808
        %v810 = vsel %vm754, %v804, %v785
        %v812 = vunpack.c.l.s4 1983009808
        %v813 = vunpack.c.0.s8 %v812
        %v814 = vperm.slane %v810, %v813
        %v815 = vrot.slane %v805, 4
        %v816 = vsel %vm754, %v815, %v803
        %v818 = vunpack.c.l.s4 1983009808
        %v819 = vunpack.c.0.s8 %v818
        %v820 = vperm.slane %v816, %v819
        %v821 = vsel %vm754, %v808, %v797
        %v823 = vunpack.c.l.s4 1983009808
        %v824 = vunpack.c.0.s8 %v823
        %v825 = vperm.slane %v821, %v824
        %v826 = vrot.slane %v809, 4
        %v827 = vsel %vm754, %v826, %v807
        %v829 = vunpack.c.l.s4 1983009808
        %v830 = vunpack.c.0.s8 %v829
        %v831 = vperm.slane %v827, %v830
        %v832 = vrot.slane %v820, 4
        %v833 = vsel %vm754, %v832, %v814
        %v834 = vrot.slane %v814, 4
        %v835 = vsel %vm754, %v820, %v834
        %v837 = vunpack.c.l.s4 1934713408
        %v838 = vunpack.c.0.s8 %v837
        %v839 = vperm.slane %v833, %v838
        %v841 = vunpack.c.l.s4 1934713408
        %v842 = vunpack.c.0.s8 %v841
        %v843 = vperm.slane %v835, %v842
        %v844 = vrot.slane %v831, 4
        %v845 = vsel %vm754, %v844, %v825
        %v846 = vrot.slane %v825, 4
        %v847 = vsel %vm754, %v831, %v846
        %v849 = vunpack.c.l.s4 1934713408
        %v850 = vunpack.c.0.s8 %v849
        %v851 = vperm.slane %v845, %v850
        %v853 = vunpack.c.l.s4 1934713408
        %v854 = vunpack.c.0.s8 %v853
        %v855 = vperm.slane %v847, %v854
        %v856 = vrot.slane %v851, 4
        %v857 = vsel %vm754, %v856, %v839
        %v858 = vrot.slane %v839, 4
        %v859 = vsel %vm754, %v851, %v858
        %v860 = vrot.slane %v855, 4
        %v861 = vsel %vm754, %v860, %v843
        %v862 = vrot.slane %v843, 4
        %v863 = vsel %vm754, %v855, %v862
        %865 = vrot.lane.b32.xlu0 %v714, 120
        %v866 = vpop.permute.xlu0 %865
        %868 = vrot.lane.b32.xlu0 %v714, 112
        %v869 = vpop.permute.xlu0 %868
        %871 = vrot.lane.b32.xlu0 %v714, 104
        %v872 = vpop.permute.xlu0 %871
        %v874 = vrot.slane %v869, 4
        %v875 = vsel %vm754, %v874, %v714
        %v876 = vrot.slane %v714, 4
        %v877 = vsel %vm754, %v869, %v876
        %v879 = vunpack.c.l.s4 1983009808
        %v880 = vunpack.c.0.s8 %v879
        %v881 = vperm.slane %v875, %v880
        %v883 = vunpack.c.l.s4 1983009808
        %v884 = vunpack.c.0.s8 %v883
        %v885 = vperm.slane %v877, %v884
        %v886 = vrot.slane %v872, 4
        %v887 = vsel %vm754, %v886, %v866
        %v888 = vrot.slane %v866, 4
        %v889 = vsel %vm754, %v872, %v888
        %v891 = vunpack.c.l.s4 1983009808
        %v892 = vunpack.c.0.s8 %v891
        %v893 = vperm.slane %v887, %v892
        %v895 = vunpack.c.l.s4 1983009808
        %v896 = vunpack.c.0.s8 %v895
        %v897 = vperm.slane %v889, %v896
        %v898 = vrot.slane %v893, 4
        %v899 = vsel %vm754, %v898, %v881
        %v900 = vrot.slane %v881, 4
        %v901 = vsel %vm754, %v893, %v900
        %v903 = vunpack.c.l.s4 1934713408
        %v904 = vunpack.c.0.s8 %v903
        %v905 = vperm.slane %v899, %v904
        %v907 = vunpack.c.l.s4 1934713408
        %v908 = vunpack.c.0.s8 %v907
        %v909 = vperm.slane %v901, %v908
        %v910 = vrot.slane %v897, 4
        %v911 = vsel %vm754, %v910, %v885
        %v912 = vrot.slane %v885, 4
        %v913 = vsel %vm754, %v897, %v912
        %v915 = vunpack.c.l.s4 1934713408
        %v916 = vunpack.c.0.s8 %v915
        %v917 = vperm.slane %v911, %v916
        %v919 = vunpack.c.l.s4 1934713408
        %v920 = vunpack.c.0.s8 %v919
        %v921 = vperm.slane %v913, %v920
        %v922 = vrot.slane %v905, 4
        %v923 = vsel %vm754, 0.0, %v922
        %v924 = vrot.slane %v909, 4
        %v925 = vsel %vm754, 0.0, %v924
        %v926 = vrot.slane %v917, 4
        %v927 = vsel %vm754, 0.0, %v926
        %v928 = vrot.slane %v921, 4
        %v929 = vsel %vm754, 0.0, %v928
        %v930 = vsel %vm754, %v924, %v905
        %v932 = vunpack.c.l.s4 1983009808
        %v933 = vunpack.c.0.s8 %v932
        %v934 = vperm.slane %v930, %v933
        %v935 = vrot.slane %v925, 4
        %v936 = vsel %vm754, %v935, %v923
        %v938 = vunpack.c.l.s4 1983009808
        %v939 = vunpack.c.0.s8 %v938
        %v940 = vperm.slane %v936, %v939
        %v941 = vsel %vm754, %v928, %v917
        %v943 = vunpack.c.l.s4 1983009808
        %v944 = vunpack.c.0.s8 %v943
        %v945 = vperm.slane %v941, %v944
        %v946 = vrot.slane %v929, 4
        %v947 = vsel %vm754, %v946, %v927
        %v949 = vunpack.c.l.s4 1983009808
        %v950 = vunpack.c.0.s8 %v949
        %v951 = vperm.slane %v947, %v950
        %v952 = vrot.slane %v940, 4
        %v953 = vsel %vm754, %v952, %v934
        %v954 = vrot.slane %v934, 4
        %v955 = vsel %vm754, %v940, %v954
        %v957 = vunpack.c.l.s4 1934713408
        %v958 = vunpack.c.0.s8 %v957
        %v959 = vperm.slane %v953, %v958
        %v961 = vunpack.c.l.s4 1934713408
        %v962 = vunpack.c.0.s8 %v961
        %v963 = vperm.slane %v955, %v962
        %v964 = vrot.slane %v951, 4
        %v965 = vsel %vm754, %v964, %v945
        %v966 = vrot.slane %v945, 4
        %v967 = vsel %vm754, %v951, %v966
        %v969 = vunpack.c.l.s4 1934713408
        %v970 = vunpack.c.0.s8 %v969
        %v971 = vperm.slane %v965, %v970
        %v973 = vunpack.c.l.s4 1934713408
        %v974 = vunpack.c.0.s8 %v973
        %v975 = vperm.slane %v967, %v974
        %v976 = vrot.slane %v971, 4
        %v977 = vsel %vm754, %v976, %v959
        %v978 = vrot.slane %v959, 4
        %v979 = vsel %vm754, %v971, %v978
        %v980 = vrot.slane %v975, 4
        %v981 = vsel %vm754, %v980, %v963
        %v982 = vrot.slane %v963, 4
        %v983 = vsel %vm754, %v975, %v982
        %985 = vrot.lane.b32.xlu0 %v741, 120
        %v986 = vpop.permute.xlu0 %985
        %988 = vrot.lane.b32.xlu0 %v741, 112
        %v989 = vpop.permute.xlu0 %988
        %991 = vrot.lane.b32.xlu0 %v741, 104
        %v992 = vpop.permute.xlu0 %991
        %v994 = vrot.slane %v989, 4
        %v995 = vsel %vm754, %v994, %v741
        %v996 = vrot.slane %v741, 4
        %v997 = vsel %vm754, %v989, %v996
        %v999 = vunpack.c.l.s4 1983009808
        %v1000 = vunpack.c.0.s8 %v999
        %v1001 = vperm.slane %v995, %v1000
        %v1003 = vunpack.c.l.s4 1983009808
        %v1004 = vunpack.c.0.s8 %v1003
        %v1005 = vperm.slane %v997, %v1004
        %v1006 = vrot.slane %v992, 4
        %v1007 = vsel %vm754, %v1006, %v986
        %v1008 = vrot.slane %v986, 4
        %v1009 = vsel %vm754, %v992, %v1008
        %v1011 = vunpack.c.l.s4 1983009808
        %v1012 = vunpack.c.0.s8 %v1011
        %v1013 = vperm.slane %v1007, %v1012
        %v1015 = vunpack.c.l.s4 1983009808
        %v1016 = vunpack.c.0.s8 %v1015
        %v1017 = vperm.slane %v1009, %v1016
        %v1018 = vrot.slane %v1013, 4
        %v1019 = vsel %vm754, %v1018, %v1001
        %v1020 = vrot.slane %v1001, 4
        %v1021 = vsel %vm754, %v1013, %v1020
        %v1023 = vunpack.c.l.s4 1934713408
        %v1024 = vunpack.c.0.s8 %v1023
        %v1025 = vperm.slane %v1019, %v1024
        %v1027 = vunpack.c.l.s4 1934713408
        %v1028 = vunpack.c.0.s8 %v1027
        %v1029 = vperm.slane %v1021, %v1028
        %v1030 = vrot.slane %v1017, 4
        %v1031 = vsel %vm754, %v1030, %v1005
        %v1032 = vrot.slane %v1005, 4
        %v1033 = vsel %vm754, %v1017, %v1032
        %v1035 = vunpack.c.l.s4 1934713408
        %v1036 = vunpack.c.0.s8 %v1035
        %v1037 = vperm.slane %v1031, %v1036
        %v1039 = vunpack.c.l.s4 1934713408
        %v1040 = vunpack.c.0.s8 %v1039
        %v1041 = vperm.slane %v1033, %v1040
        %v1042 = vrot.slane %v1025, 4
        %v1043 = vsel %vm754, 0.0, %v1042
        %v1044 = vrot.slane %v1029, 4
        %v1045 = vsel %vm754, 0.0, %v1044
        %v1046 = vrot.slane %v1037, 4
        %v1047 = vsel %vm754, 0.0, %v1046
        %v1048 = vrot.slane %v1041, 4
        %v1049 = vsel %vm754, 0.0, %v1048
        %v1050 = vsel %vm754, %v1044, %v1025
        %v1052 = vunpack.c.l.s4 1983009808
        %v1053 = vunpack.c.0.s8 %v1052
        %v1054 = vperm.slane %v1050, %v1053
        %v1055 = vrot.slane %v1045, 4
        %v1056 = vsel %vm754, %v1055, %v1043
        %v1058 = vunpack.c.l.s4 1983009808
        %v1059 = vunpack.c.0.s8 %v1058
        %v1060 = vperm.slane %v1056, %v1059
        %v1061 = vsel %vm754, %v1048, %v1037
        %v1063 = vunpack.c.l.s4 1983009808
        %v1064 = vunpack.c.0.s8 %v1063
        %v1065 = vperm.slane %v1061, %v1064
        %v1066 = vrot.slane %v1049, 4
        %v1067 = vsel %vm754, %v1066, %v1047
        %v1069 = vunpack.c.l.s4 1983009808
        %v1070 = vunpack.c.0.s8 %v1069
        %v1071 = vperm.slane %v1067, %v1070
        %v1072 = vrot.slane %v1060, 4
        %v1073 = vsel %vm754, %v1072, %v1054
        %v1074 = vrot.slane %v1054, 4
        %v1075 = vsel %vm754, %v1060, %v1074
        %v1077 = vunpack.c.l.s4 1934713408
        %v1078 = vunpack.c.0.s8 %v1077
        %v1079 = vperm.slane %v1073, %v1078
        %v1081 = vunpack.c.l.s4 1934713408
        %v1082 = vunpack.c.0.s8 %v1081
        %v1083 = vperm.slane %v1075, %v1082
        %v1084 = vrot.slane %v1071, 4
        %v1085 = vsel %vm754, %v1084, %v1065
        %v1086 = vrot.slane %v1065, 4
        %v1087 = vsel %vm754, %v1071, %v1086
        %v1089 = vunpack.c.l.s4 1934713408
        %v1090 = vunpack.c.0.s8 %v1089
        %v1091 = vperm.slane %v1085, %v1090
        %v1093 = vunpack.c.l.s4 1934713408
        %v1094 = vunpack.c.0.s8 %v1093
        %v1095 = vperm.slane %v1087, %v1094
        %v1096 = vrot.slane %v1091, 4
        %v1097 = vsel %vm754, %v1096, %v1079
        %v1098 = vrot.slane %v1079, 4
        %v1099 = vsel %vm754, %v1091, %v1098
        %v1100 = vrot.slane %v1095, 4
        %v1101 = vsel %vm754, %v1100, %v1083
        %v1102 = vrot.slane %v1083, 4
        %v1103 = vsel %vm754, %v1095, %v1102
        %vm1104 = vcmask 64512
        %v1106 = vsel %vm1104, %v857, 0
        %v1109 = vsel %vm1104, %v977, 0
        %1111 = vmatpush.xpose.msra.mxu0 0.0
        %1112 = vmatpush.xpose.msra.mxu0 0.0
        %1113 = vmatpush.xpose.msra.mxu0 0.0
        %1114 = vmatpush.xpose.msra.mxu0 0.0
        %1115 = vmatpush.xpose.msra.mxu0 0.0
        %1116 = vmatpush.xpose.msra.mxu0 0.0
        %1117 = vmatpush.xpose.msra.mxu0 0.0
        %1118 = vmatpush.xpose.msra.mxu0 0.0
        %1119 = vmatpush.xpose.msra.mxu0 0.0
        %1120 = vmatpush.xpose.msra.mxu0 0.0
        %1121 = vmatpush.xpose.msra.mxu0 0.0
        %1122 = vmatpush.xpose.msra.mxu0 0.0
        %1123 = vmatpush.xpose.msra.mxu0 0.0
        %1124 = vmatpush.xpose.msra.mxu0 0.0
        %1125 = vmatpush.xpose.msra.mxu0 0.0
        %1126 = vmatpush.xpose.msra.mxu0 %v1109
        %1127 = vmatmul.f32.gmra.mxu0 %v1106
        %v1128 = vpop.f32.mrf.mxu0
        %v1129 = vadd.f32 0.0, %v1128
        %1130 = vdwg.mxu0
        %v1132 = vsel %vm1104, %v859, 0
        %v1135 = vsel %vm1104, %v979, 0
        %1137 = vmatpush.xpose.msra.mxu0 0.0
        %1138 = vmatpush.xpose.msra.mxu0 0.0
        %1139 = vmatpush.xpose.msra.mxu0 0.0
        %1140 = vmatpush.xpose.msra.mxu0 0.0
        %1141 = vmatpush.xpose.msra.mxu0 0.0
        %1142 = vmatpush.xpose.msra.mxu0 0.0
        %1143 = vmatpush.xpose.msra.mxu0 0.0
        %1144 = vmatpush.xpose.msra.mxu0 0.0
        %1145 = vmatpush.xpose.msra.mxu0 0.0
        %1146 = vmatpush.xpose.msra.mxu0 0.0
        %1147 = vmatpush.xpose.msra.mxu0 0.0
        %1148 = vmatpush.xpose.msra.mxu0 0.0
        %1149 = vmatpush.xpose.msra.mxu0 0.0
        %1150 = vmatpush.xpose.msra.mxu0 0.0
        %1151 = vmatpush.xpose.msra.mxu0 0.0
        %1152 = vmatpush.xpose.msra.mxu0 %v1135
        %1153 = vmatmul.f32.gmra.mxu0 %v1132
        %v1154 = vpop.f32.mrf.mxu0
        %v1155 = vadd.f32 0.0, %v1154
        %1156 = vdwg.mxu0
        %v1158 = vsel %vm1104, %v861, 0
        %v1161 = vsel %vm1104, %v981, 0
        %1163 = vmatpush.xpose.msra.mxu0 0.0
        %1164 = vmatpush.xpose.msra.mxu0 0.0
        %1165 = vmatpush.xpose.msra.mxu0 0.0
        %1166 = vmatpush.xpose.msra.mxu0 0.0
        %1167 = vmatpush.xpose.msra.mxu0 0.0
        %1168 = vmatpush.xpose.msra.mxu0 0.0
        %1169 = vmatpush.xpose.msra.mxu0 0.0
        %1170 = vmatpush.xpose.msra.mxu0 0.0
        %1171 = vmatpush.xpose.msra.mxu0 0.0
        %1172 = vmatpush.xpose.msra.mxu0 0.0
        %1173 = vmatpush.xpose.msra.mxu0 0.0
        %1174 = vmatpush.xpose.msra.mxu0 0.0
        %1175 = vmatpush.xpose.msra.mxu0 0.0
        %1176 = vmatpush.xpose.msra.mxu0 0.0
        %1177 = vmatpush.xpose.msra.mxu0 0.0
        %1178 = vmatpush.xpose.msra.mxu0 %v1161
        %1179 = vmatmul.f32.gmra.mxu0 %v1158
        %v1180 = vpop.f32.mrf.mxu0
        %v1181 = vadd.f32 0.0, %v1180
        %1182 = vdwg.mxu0
        %v1184 = vsel %vm1104, %v863, 0
        %v1187 = vsel %vm1104, %v983, 0
        %1189 = vmatpush.xpose.msra.mxu0 0.0
        %1190 = vmatpush.xpose.msra.mxu0 0.0
        %1191 = vmatpush.xpose.msra.mxu0 0.0
        %1192 = vmatpush.xpose.msra.mxu0 0.0
        %1193 = vmatpush.xpose.msra.mxu0 0.0
        %1194 = vmatpush.xpose.msra.mxu0 0.0
        %1195 = vmatpush.xpose.msra.mxu0 0.0
        %1196 = vmatpush.xpose.msra.mxu0 0.0
        %1197 = vmatpush.xpose.msra.mxu0 0.0
        %1198 = vmatpush.xpose.msra.mxu0 0.0
        %1199 = vmatpush.xpose.msra.mxu0 0.0
        %1200 = vmatpush.xpose.msra.mxu0 0.0
        %1201 = vmatpush.xpose.msra.mxu0 0.0
        %1202 = vmatpush.xpose.msra.mxu0 0.0
        %1203 = vmatpush.xpose.msra.mxu0 0.0
        %1204 = vmatpush.xpose.msra.mxu0 %v1187
        %1205 = vmatmul.f32.gmra.mxu0 %v1184
        %v1206 = vpop.f32.mrf.mxu0
        %v1207 = vadd.f32 0.0, %v1206
        %1208 = vdwg.mxu0
        %v1209 = vsel %vm1104, %v1129, -inf
        %1210 = vmax.xlane.f32.xlu0 %v1209
        %v1211 = vpop.xlane.xlu0 %1210
        %v1212 = vsel %vm1104, %v1155, -inf
        %1213 = vmax.xlane.f32.xlu0 %v1212
        %v1214 = vpop.xlane.xlu0 %1213
        %v1215 = vsel %vm1104, %v1181, -inf
        %1216 = vmax.xlane.f32.xlu0 %v1215
        %v1217 = vpop.xlane.xlu0 %1216
        %v1218 = vsel %vm1104, %v1207, -inf
        %1219 = vmax.xlane.f32.xlu0 %v1218
        %v1220 = vpop.xlane.xlu0 %1219
        %v1221 = vsub.f32 %v1129, %v1211
        %v1222 = vsub.f32 %v1155, %v1214
        %v1223 = vsub.f32 %v1181, %v1217
        %v1224 = vsub.f32 %v1207, %v1220
        %v1225 = vmul.f32 %v1221, 1.442695
        %v1226 = vpow.pop %v1225
        %v1227 = vmul.f32 %v1222, 1.442695
        %v1228 = vpow.pop %v1227
        %v1229 = vmul.f32 %v1223, 1.442695
        %v1230 = vpow.pop %v1229
        %v1231 = vmul.f32 %v1224, 1.442695
        %v1232 = vpow.pop %v1231
        %v1233 = vsel %vm1104, %v1226, 0.0
        %1234 = vadd.xlane.f32.xlu0 %v1233
        %v1235 = vpop.xlane.xlu0 %1234
        %v1236 = vsel %vm1104, %v1228, 0.0
        %1237 = vadd.xlane.f32.xlu0 %v1236
        %v1238 = vpop.xlane.xlu0 %1237
        %v1239 = vsel %vm1104, %v1230, 0.0
        %1240 = vadd.xlane.f32.xlu0 %v1239
        %v1241 = vpop.xlane.xlu0 %1240
        %v1242 = vsel %vm1104, %v1232, 0.0
        %1243 = vadd.xlane.f32.xlu0 %v1242
        %v1244 = vpop.xlane.xlu0 %1243
        %v1245 = vrcp.pop %v1235
        %v1246 = vrcp.pop %v1238
        %v1247 = vrcp.pop %v1241
        %v1248 = vrcp.pop %v1244
        %v1249 = vmul.f32 %v1235, %v1245
        %v1250 = vmul.f32 %v1238, %v1246
        %v1251 = vmul.f32 %v1241, %v1247
        %v1252 = vmul.f32 %v1244, %v1248
        %v1253 = vsub.f32 2.0, %v1249
        %v1254 = vsub.f32 2.0, %v1250
        %v1255 = vsub.f32 2.0, %v1251
        %v1256 = vsub.f32 2.0, %v1252
        %v1257 = vmul.f32 %v1245, %v1253
        %v1258 = vmul.f32 %v1246, %v1254
        %v1259 = vmul.f32 %v1247, %v1255
        %v1260 = vmul.f32 %v1248, %v1256
        %v1261 = vmul.f32 %v1226, %v1257
        %v1262 = vmul.f32 %v1228, %v1258
        %v1263 = vmul.f32 %v1230, %v1259
        %v1264 = vmul.f32 %v1232, %v1260
        %1265 = vst.msk [vmem:[%s657] sm:$0xff] %vm1104, %v1261
        %1266 = vst.msk [vmem:[%s657 + $0x8] sm:$0xff] %vm1104, %v1262
        %1267 = vst.msk [vmem:[%s657 + $0x10] sm:$0xff] %vm1104, %v1263
        %1268 = vst.msk [vmem:[%s657 + $0x18] sm:$0xff] %vm1104, %v1264
        %v1270 = vsel %vm1104, %v1261, 0
        %1272 = vmatpush.msra.mxu0 0.0
        %1273 = vmatpush.msra.mxu0 0.0
        %1274 = vmatpush.msra.mxu0 0.0
        %1275 = vmatpush.msra.mxu0 0.0
        %1276 = vmatpush.msra.mxu0 0.0
        %1277 = vmatpush.msra.mxu0 0.0
        %1278 = vmatpush.msra.mxu0 0.0
        %1279 = vmatpush.msra.mxu0 0.0
        %1280 = vmatpush.msra.mxu0 0.0
        %1281 = vmatpush.msra.mxu0 0.0
        %1282 = vmatpush.msra.mxu0 0.0
        %1283 = vmatpush.msra.mxu0 0.0
        %1284 = vmatpush.msra.mxu0 0.0
        %1285 = vmatpush.msra.mxu0 0.0
        %1286 = vmatpush.msra.mxu0 0.0
        %1287 = vmatpush.msra.mxu0 %v1097
        %1288 = vmatmul.f32.gmra.mxu0 %v1270
        %v1289 = vpop.f32.mrf.mxu0
        %v1290 = vadd.f32 0.0, %v1289
        %1291 = vdwg.mxu0
        %v1293 = vsel %vm1104, %v1262, 0
        %1295 = vmatpush.msra.mxu0 0.0
        %1296 = vmatpush.msra.mxu0 0.0
        %1297 = vmatpush.msra.mxu0 0.0
        %1298 = vmatpush.msra.mxu0 0.0
        %1299 = vmatpush.msra.mxu0 0.0
        %1300 = vmatpush.msra.mxu0 0.0
        %1301 = vmatpush.msra.mxu0 0.0
        %1302 = vmatpush.msra.mxu0 0.0
        %1303 = vmatpush.msra.mxu0 0.0
        %1304 = vmatpush.msra.mxu0 0.0
        %1305 = vmatpush.msra.mxu0 0.0
        %1306 = vmatpush.msra.mxu0 0.0
        %1307 = vmatpush.msra.mxu0 0.0
        %1308 = vmatpush.msra.mxu0 0.0
        %1309 = vmatpush.msra.mxu0 0.0
        %1310 = vmatpush.msra.mxu0 %v1099
        %1311 = vmatmul.f32.gmra.mxu0 %v1293
        %v1312 = vpop.f32.mrf.mxu0
        %v1313 = vadd.f32 0.0, %v1312
        %1314 = vdwg.mxu0
        %v1316 = vsel %vm1104, %v1263, 0
        %1318 = vmatpush.msra.mxu0 0.0
        %1319 = vmatpush.msra.mxu0 0.0
        %1320 = vmatpush.msra.mxu0 0.0
        %1321 = vmatpush.msra.mxu0 0.0
        %1322 = vmatpush.msra.mxu0 0.0
        %1323 = vmatpush.msra.mxu0 0.0
        %1324 = vmatpush.msra.mxu0 0.0
        %1325 = vmatpush.msra.mxu0 0.0
        %1326 = vmatpush.msra.mxu0 0.0
        %1327 = vmatpush.msra.mxu0 0.0
        %1328 = vmatpush.msra.mxu0 0.0
        %1329 = vmatpush.msra.mxu0 0.0
        %1330 = vmatpush.msra.mxu0 0.0
        %1331 = vmatpush.msra.mxu0 0.0
        %1332 = vmatpush.msra.mxu0 0.0
        %1333 = vmatpush.msra.mxu0 %v1101
        %1334 = vmatmul.f32.gmra.mxu0 %v1316
        %v1335 = vpop.f32.mrf.mxu0
        %v1336 = vadd.f32 0.0, %v1335
        %1337 = vdwg.mxu0
        %v1339 = vsel %vm1104, %v1264, 0
        %1341 = vmatpush.msra.mxu0 0.0
        %1342 = vmatpush.msra.mxu0 0.0
        %1343 = vmatpush.msra.mxu0 0.0
        %1344 = vmatpush.msra.mxu0 0.0
        %1345 = vmatpush.msra.mxu0 0.0
        %1346 = vmatpush.msra.mxu0 0.0
        %1347 = vmatpush.msra.mxu0 0.0
        %1348 = vmatpush.msra.mxu0 0.0
        %1349 = vmatpush.msra.mxu0 0.0
        %1350 = vmatpush.msra.mxu0 0.0
        %1351 = vmatpush.msra.mxu0 0.0
        %1352 = vmatpush.msra.mxu0 0.0
        %1353 = vmatpush.msra.mxu0 0.0
        %1354 = vmatpush.msra.mxu0 0.0
        %1355 = vmatpush.msra.mxu0 0.0
        %1356 = vmatpush.msra.mxu0 %v1103
        %1357 = vmatmul.f32.gmra.mxu0 %v1339
        %v1358 = vpop.f32.mrf.mxu0
        %v1359 = vadd.f32 0.0, %v1358
        %1360 = vdwg.mxu0
        %v1361 = vrot.slane %v1336, 4
        %v1362 = vsel %vm754, %v1361, %v1290
        %v1363 = vrot.slane %v1290, 4
        %v1364 = vsel %vm754, %v1336, %v1363
        %v1366 = vunpack.c.l.s4 1983009808
        %v1367 = vunpack.c.0.s8 %v1366
        %v1368 = vperm.slane %v1362, %v1367
        %v1370 = vunpack.c.l.s4 1983009808
        %v1371 = vunpack.c.0.s8 %v1370
        %v1372 = vperm.slane %v1364, %v1371
        %v1373 = vrot.slane %v1359, 4
        %v1374 = vsel %vm754, %v1373, %v1313
        %v1375 = vrot.slane %v1313, 4
        %v1376 = vsel %vm754, %v1359, %v1375
        %v1378 = vunpack.c.l.s4 1983009808
        %v1379 = vunpack.c.0.s8 %v1378
        %v1380 = vperm.slane %v1374, %v1379
        %v1382 = vunpack.c.l.s4 1983009808
        %v1383 = vunpack.c.0.s8 %v1382
        %v1384 = vperm.slane %v1376, %v1383
        %v1385 = vrot.slane %v1380, 4
        %v1386 = vsel %vm754, %v1385, %v1368
        %v1387 = vrot.slane %v1368, 4
        %v1388 = vsel %vm754, %v1380, %v1387
        %v1390 = vunpack.c.l.s4 1934713408
        %v1391 = vunpack.c.0.s8 %v1390
        %v1392 = vperm.slane %v1386, %v1391
        %v1394 = vunpack.c.l.s4 1934713408
        %v1395 = vunpack.c.0.s8 %v1394
        %v1396 = vperm.slane %v1388, %v1395
        %v1397 = vrot.slane %v1384, 4
        %v1398 = vsel %vm754, %v1397, %v1372
        %v1399 = vrot.slane %v1372, 4
        %v1400 = vsel %vm754, %v1384, %v1399
        %v1402 = vunpack.c.l.s4 1934713408
        %v1403 = vunpack.c.0.s8 %v1402
        %v1404 = vperm.slane %v1398, %v1403
        %v1406 = vunpack.c.l.s4 1934713408
        %v1407 = vunpack.c.0.s8 %v1406
        %v1408 = vperm.slane %v1400, %v1407
        %v1409 = vrot.slane %v1392, 4
        %v1410 = vsel %vm754, 0.0, %v1409
        %v1411 = vrot.slane %v1396, 4
        %v1412 = vsel %vm754, 0.0, %v1411
        %v1413 = vrot.slane %v1404, 4
        %v1414 = vsel %vm754, 0.0, %v1413
        %v1415 = vrot.slane %v1408, 4
        %v1416 = vsel %vm754, 0.0, %v1415
        %v1417 = vsel %vm754, %v1411, %v1392
        %v1419 = vunpack.c.l.s4 1983009808
        %v1420 = vunpack.c.0.s8 %v1419
        %v1421 = vperm.slane %v1417, %v1420
        %v1422 = vrot.slane %v1412, 4
        %v1423 = vsel %vm754, %v1422, %v1410
        %v1425 = vunpack.c.l.s4 1983009808
        %v1426 = vunpack.c.0.s8 %v1425
        %v1427 = vperm.slane %v1423, %v1426
        %v1428 = vsel %vm754, %v1415, %v1404
        %v1430 = vunpack.c.l.s4 1983009808
        %v1431 = vunpack.c.0.s8 %v1430
        %v1432 = vperm.slane %v1428, %v1431
        %v1433 = vrot.slane %v1416, 4
        %v1434 = vsel %vm754, %v1433, %v1414
        %v1436 = vunpack.c.l.s4 1983009808
        %v1437 = vunpack.c.0.s8 %v1436
        %v1438 = vperm.slane %v1434, %v1437
        %v1439 = vrot.slane %v1427, 4
        %v1440 = vsel %vm754, %v1439, %v1421
        %v1441 = vrot.slane %v1421, 4
        %v1442 = vsel %vm754, %v1427, %v1441
        %v1444 = vunpack.c.l.s4 1934713408
        %v1445 = vunpack.c.0.s8 %v1444
        %v1446 = vperm.slane %v1440, %v1445
        %v1448 = vunpack.c.l.s4 1934713408
        %v1449 = vunpack.c.0.s8 %v1448
        %v1450 = vperm.slane %v1442, %v1449
        %v1451 = vrot.slane %v1438, 4
        %v1452 = vsel %vm754, %v1451, %v1432
        %v1453 = vrot.slane %v1432, 4
        %v1454 = vsel %vm754, %v1438, %v1453
        %v1456 = vunpack.c.l.s4 1934713408
        %v1457 = vunpack.c.0.s8 %v1456
        %v1458 = vperm.slane %v1452, %v1457
        %v1460 = vunpack.c.l.s4 1934713408
        %v1461 = vunpack.c.0.s8 %v1460
        %v1462 = vperm.slane %v1454, %v1461
        %v1463 = vrot.slane %v1458, 4
        %v1464 = vsel %vm754, %v1463, %v1446
        %v1465 = vrot.slane %v1446, 4
        %v1466 = vsel %vm754, %v1458, %v1465
        %v1467 = vrot.slane %v1462, 4
        %v1468 = vsel %vm754, %v1467, %v1450
        %v1469 = vrot.slane %v1450, 4
        %v1470 = vsel %vm754, %v1462, %v1469
        %1472 = vrot.lane.b32.xlu0 %v1466, 8
        %v1473 = vpop.permute.xlu0 %1472
        %1476 = vrot.lane.b32.xlu0 %v1468, 16
        %v1477 = vpop.permute.xlu0 %1476
        %1480 = vrot.lane.b32.xlu0 %v1470, 24
        %v1481 = vpop.permute.xlu0 %1480
        %v1483 = vsel %vm1104, %v1464, %v1473
        %vm1484 = vcmask 130048
        %v1485 = vsel %vm1484, %v1483, %v1477
        %vm1486 = vcmask 195584
        %v1487 = vsel %vm1486, %v1485, %v1481
        %v1488 = vld [vmem:[#allocation8] sm:$0xff]
        %v1489 = vld [vmem:[#allocation8 + $0x8] sm:$0xff]
        %v1490 = vld [vmem:[#allocation8 + $0x10] sm:$0xff]
        %v1491 = vld [vmem:[#allocation8 + $0x18] sm:$0xff]
        %v1493 = vsel %vm665, %v1487, 0
        %1495 = vmatpush.msra.mxu0 0.0
        %1496 = vmatpush.msra.mxu0 0.0
        %1497 = vmatpush.msra.mxu0 0.0
        %1498 = vmatpush.msra.mxu0 0.0
        %1499 = vmatpush.msra.mxu0 0.0
        %1500 = vmatpush.msra.mxu0 0.0
        %1501 = vmatpush.msra.mxu0 0.0
        %1502 = vmatpush.msra.mxu0 0.0
        %1503 = vmatpush.msra.mxu0 0.0
        %1504 = vmatpush.msra.mxu0 0.0
        %1505 = vmatpush.msra.mxu0 0.0
        %1506 = vmatpush.msra.mxu0 0.0
        %1507 = vmatpush.msra.mxu0 %v1491
        %1508 = vmatpush.msra.mxu0 %v1490
        %1509 = vmatpush.msra.mxu0 %v1489
        %1510 = vmatpush.msra.mxu0 %v1488
        %1511 = vmatmul.f32.gmra.mxu0 %v1493
        %v1512 = vpop.f32.mrf.mxu0
        %v1513 = vadd.f32 %v658, %v1512
        %1514 = vdwg.mxu0
        %v1515 = vld [vmem:[%s7] sm:$0x1]
        %v1516 = vld [vmem:[%s8] sm:$0x1]
        %v1517 = vsel %vm665, %v1513, 0.0
        %1518 = vadd.xlane.f32.xlu0 %v1517
        %v1519 = vpop.xlane.xlu0 %1518
        %v1520 = vrcp.pop 32.0
        %v1521 = vmul.f32 32.0, %v1520
        %v1522 = vsub.f32 1.0, %v1521
        %v1523 = vmul.f32 %v1520, %v1522
        %v1524 = vadd.f32 %v1520, %v1523
        %vm1525 = vweird.f32 %v1520
        %v1526 = vsel %vm1525, %v1520, %v1524
        %v1527 = vmul.f32 %v1519, %v1526
        %v1528 = vsub.f32 %v1513, %v1527
        %v1529 = vmul.f32 %v1528, %v1528
        %v1530 = vsel %vm665, %v1529, 0.0
        %1531 = vadd.xlane.f32.xlu0 %v1530
        %v1532 = vpop.xlane.xlu0 %1531
        %v1533 = vmul.f32 %v1532, %v1526
        %v1534 = vadd.f32 %v1533, 1e-06
        %v1535 = vrsqrt.pop %v1534
        %v1536 = vmul.f32 %v1535, %v1534
        %v1537 = vmul.f32 %v1536, %v1535
        %v1538 = vmul.f32 0.5, %v1537
        %v1539 = vsub.f32 1.5, %v1538
        %v1540 = vmul.f32 %v1535, %v1539
        %vm1541 = vweird.f32 %v1534
        %vm1542 = vweird.f32 %v1535
        %vm1543 = vmor %vm1541, %vm1542
        %v1544 = vsel %vm1543, %v1535, %v1540
        %v1545 = vmul.f32 %v1528, %v1544
        %v1547 = vperm.slane %v1515, 0
        %v1549 = vmul.f32 %v1545, %v1547
        %v1551 = vperm.slane %v1516, 0
        %v1553 = vadd.f32 %v1549, %v1551
        %v1554 = vld [vmem:[#allocation10] sm:$0xff]
        %v1555 = vld [vmem:[#allocation10 + $0x8] sm:$0xff]
        %v1556 = vld [vmem:[#allocation10 + $0x10] sm:$0xff]
        %v1557 = vld [vmem:[#allocation10 + $0x18] sm:$0xff]
        %v1558 = vld [vmem:[%s10] sm:$0x1]
        %v1560 = vperm.slane %v1558, 0
        %v1563 = vsel %vm665, %v1553, 0
        %1565 = vmatpush.msra.mxu0 0.0
        %1566 = vmatpush.msra.mxu0 0.0
        %1567 = vmatpush.msra.mxu0 0.0
        %1568 = vmatpush.msra.mxu0 0.0
        %1569 = vmatpush.msra.mxu0 0.0
        %1570 = vmatpush.msra.mxu0 0.0
        %1571 = vmatpush.msra.mxu0 0.0
        %1572 = vmatpush.msra.mxu0 0.0
        %1573 = vmatpush.msra.mxu0 0.0
        %1574 = vmatpush.msra.mxu0 0.0
        %1575 = vmatpush.msra.mxu0 0.0
        %1576 = vmatpush.msra.mxu0 0.0
        %1577 = vmatpush.msra.mxu0 %v1557
        %1578 = vmatpush.msra.mxu0 %v1556
        %1579 = vmatpush.msra.mxu0 %v1555
        %1580 = vmatpush.msra.mxu0 %v1554
        %1581 = vmatmul.f32.gmra.mxu0 %v1563
        %v1582 = vpop.f32.mrf.mxu0
        %v1583 = vadd.f32 %v1560, %v1582
        %1584 = vdwg.mxu0
        %v1585 = vmax.f32 %v1583, 0.0
        %v1586 = vld [vmem:[%s11] sm:$0xff]
        %v1587 = vld [vmem:[%s11 + $0x8] sm:$0xff]
        %v1588 = vld [vmem:[%s11 + $0x10] sm:$0xff]
        %v1589 = vld [vmem:[%s11 + $0x18] sm:$0xff]
        %v1590 = vld [vmem:[%s11 + $0x20] sm:$0xff]
        %v1591 = vld [vmem:[%s11 + $0x28] sm:$0xff]
        %v1592 = vld [vmem:[%s11 + $0x30] sm:$0xff]
        %v1593 = vld [vmem:[%s11 + $0x38] sm:$0xff]
        %v1594 = vld [vmem:[%s12] sm:$0x1]
        %v1596 = vperm.slane %v1594, 0
        %vm1598 = vcmask 523264
        %v1600 = vsel %vm1598, %v1585, 0
        %1602 = vmatpush.msra.mxu0 0.0
        %1603 = vmatpush.msra.mxu0 0.0
        %1604 = vmatpush.msra.mxu0 0.0
        %1605 = vmatpush.msra.mxu0 0.0
        %1606 = vmatpush.msra.mxu0 0.0
        %1607 = vmatpush.msra.mxu0 0.0
        %1608 = vmatpush.msra.mxu0 0.0
        %1609 = vmatpush.msra.mxu0 0.0
        %1610 = vmatpush.msra.mxu0 %v1593
        %1611 = vmatpush.msra.mxu0 %v1592
        %1612 = vmatpush.msra.mxu0 %v1591
        %1613 = vmatpush.msra.mxu0 %v1590
        %1614 = vmatpush.msra.mxu0 %v1589
        %1615 = vmatpush.msra.mxu0 %v1588
        %1616 = vmatpush.msra.mxu0 %v1587
        %1617 = vmatpush.msra.mxu0 %v1586
        %1618 = vmatmul.f32.gmra.mxu0 %v1600
        %v1619 = vpop.f32.mrf.mxu0
        %v1620 = vadd.f32 %v1596, %v1619
        %1621 = vdwg.mxu0
        %v1622 = vadd.f32 %v1620, %v1553
        %v1623 = vld [vmem:[%s13] sm:$0x1]
        %v1624 = vld [vmem:[%s14] sm:$0x1]
        %v1625 = vsel %vm665, %v1622, 0.0
        %1626 = vadd.xlane.f32.xlu0 %v1625
        %v1627 = vpop.xlane.xlu0 %1626
        %v1628 = vmul.f32 %v1627, %v1526
        %v1629 = vsub.f32 %v1622, %v1628
        %v1630 = vmul.f32 %v1629, %v1629
        %v1631 = vsel %vm665, %v1630, 0.0
        %1632 = vadd.xlane.f32.xlu0 %v1631
        %v1633 = vpop.xlane.xlu0 %1632
        %v1634 = vmul.f32 %v1633, %v1526
        %v1635 = vadd.f32 %v1634, 1e-06
        %v1636 = vrsqrt.pop %v1635
        %v1637 = vmul.f32 %v1636, %v1635
        %v1638 = vmul.f32 %v1637, %v1636
        %v1639 = vmul.f32 0.5, %v1638
        %v1640 = vsub.f32 1.5, %v1639
        %v1641 = vmul.f32 %v1636, %v1640
        %vm1642 = vweird.f32 %v1635
        %vm1643 = vweird.f32 %v1636
        %vm1644 = vmor %vm1642, %vm1643
        %v1645 = vsel %vm1644, %v1636, %v1641
        %v1646 = vmul.f32 %v1629, %v1645
        %v1648 = vperm.slane %v1623, 0
        %v1650 = vmul.f32 %v1646, %v1648
        %v1652 = vperm.slane %v1624, 0
        %v1654 = vadd.f32 %v1650, %v1652
        %1655 = vst.msk [vmem:[%s650] sm:$0xff] %vm665, %v1654
        %s1656 = sand.u32 %s379, 1
        %s1657 = scalar_lea.sflag [#allocation4], %s1656
        %s1658 = sand.u32 %s379, 1
        %s1659 = smul.addr %s1658, 8
        %s1660 = scalar_lea.vmem [#allocation11], %s1659
        %s1661 = sand.u32 %s405, 1
        %s1662 = scalar_lea.sflag [#allocation13], %s1661
        %s1663 = sand.u32 %s405, 1
        %s1664 = smul.addr %s1663, 32
        %s1665 = scalar_lea.vmem [#allocation12], %s1664
        // Predicated region
        $region101: #{tpu_custom_call.1} parent=79 // pred_check
          %p1666 = pneg %p389
        $region102: #{tpu_custom_call.1} parent=79 // pred_check_branch
          %1668 = sbr.rel (%p1666) target = $region104
        $region103: #{tpu_custom_call.1} parent=79 // pred_region
          %1670 = vsyncadd %s1657, 0
          %s1671 = smul.addr %s41, 8
          %s1672 = scalar_lea.hbm %s15, %s1671
          %s1674 = sshll.u32 %s1660, 4
          %s1675 = int_to_ptr.vmem [resolvable:$true] %s1674
          %s1676 = sshll.u32 %s1672, 4
          %s1677 = int_to_ptr.hbm [resolvable:$true] %s1676
          %1679 = dma.vmem_to_hbm [thread:$0]  %s1675, 128, %s1677, %s1657
        $region104: #{tpu_custom_call.1} parent=79 // pred_fallthru
          _
        // Predicated region
        $region105: #{tpu_custom_call.1} parent=79 // pred_check
          %p1680 = pneg %p415
        $region106: #{tpu_custom_call.1} parent=79 // pred_check_branch
          %1682 = sbr.rel (%p1680) target = $region108
        $region107: #{tpu_custom_call.1} parent=79 // pred_region
          %1684 = vsyncadd %s1662, 0
          %s1685 = smul.addr %s41, 4
          %s1686 = smul.addr %s1685, 8
          %s1687 = scalar_lea.hbm %s16, %s1686
          %s1688 = sshll.u32 %s1665, 4
          %s1689 = int_to_ptr.vmem [resolvable:$true] %s1688
          %s1690 = sshll.u32 %s1687, 4
          %s1691 = int_to_ptr.hbm [resolvable:$true] %s1690
          %1696 = dma.vmem_to_hbm [thread:$0]  %s1689, 512, %s1691, %s1662, 128, 128, 8
        $region108: #{tpu_custom_call.1} parent=79 // pred_fallthru
          _
      $region80: #{tpu_custom_call.1} parent=5 // pred_fallthru
        _
      %p1697 = scmp.le.s32.totalorder 2, %s36
      // Predicated region
      $region109: #{tpu_custom_call.1} parent=5 // pred_check
        %p1698 = pneg %p1697
      $region110: #{tpu_custom_call.1} parent=5 // pred_check_branch
        %1700 = sbr.rel (%p1698) target = $region112
      $region111: #{tpu_custom_call.1} parent=5 // pred_region
        %s1701 = ssub.s32 %s36, 2
        // Predicated region
        $region113: #{tpu_custom_call.1} parent=111 // pred_check
          %p1702 = pneg %p395
        $region114: #{tpu_custom_call.1} parent=111 // pred_check_branch
          %1704 = sbr.rel (%p1702) target = $region116
        $region115: #{tpu_custom_call.1} parent=111 // pred_region
          %s1705 = sand.u32 %s380, 1
          %s1706 = scalar_lea.sflag [#allocation4], %s1705
          %s1707 = sand.u32 %s380, 1
          %s1708 = smul.addr %s1707, 8
          %s1709 = scalar_lea.vmem [#allocation11], %s1708
          %1711 = dma.done %s1706, 128
        $region116: #{tpu_custom_call.1} parent=111 // pred_fallthru
          _
        // Predicated region
        $region117: #{tpu_custom_call.1} parent=111 // pred_check
          %p1712 = pneg %p421
        $region118: #{tpu_custom_call.1} parent=111 // pred_check_branch
          %1714 = sbr.rel (%p1712) target = $region120
        $region119: #{tpu_custom_call.1} parent=111 // pred_region
          %s1715 = sand.u32 %s406, 1
          %s1716 = scalar_lea.sflag [#allocation13], %s1715
          %s1717 = sand.u32 %s406, 1
          %s1718 = smul.addr %s1717, 32
          %s1719 = scalar_lea.vmem [#allocation12], %s1718
          %1721 = dma.done %s1716, 512
        $region120: #{tpu_custom_call.1} parent=111 // pred_fallthru
          _
      $region112: #{tpu_custom_call.1} parent=5 // pred_fallthru
        _
    $region6: #{tpu_custom_call.1} parent=1 // loop_footer
      %s40 = sadd.s32 1, %s36
    $region7: #{tpu_custom_call.1} parent=1 // loop_footer_branch
      %35 = sbr.rel target = $region3
    $region8: #{tpu_custom_call.1} parent=1 // loop_exit
      _
    %1722 = vsyncpa [#allocation3], 1
    %s1723 = scalar_lea.sflag [#allocation3], 1
    %1724 = vsyncpa %s1723, 1
    %1725 = vsyncpa [#allocation6], 1
    %s1726 = scalar_lea.sflag [#allocation6], 1
    %1727 = vsyncpa %s1726, 1
    %1728 = vsyncpa [#allocation9], 1
    %1729 = vsyncpa [#allocation4], 1
    %s1730 = scalar_lea.sflag [#allocation4], 1
    %1731 = vsyncpa %s1730, 1
    %1732 = vsyncpa [#allocation13], 1
    %s1733 = scalar_lea.sflag [#allocation13], 1
    %1734 = vsyncpa %s1733, 1

// kernel: tpu_custom_call.1
$region0: #{tpu_custom_call.1}
  #allocation0 [shape = 'u32[]', space=smem, size = 0x4, offset = 0x4, fixed_abs, tag = 'smem constant byte address 0x4 - core index']
  #allocation1 [shape = 'u32[72,128]{1,0:T(1,128)}', space=vmem, size = 0x9000, scoped, tag = 'internal scratch']
  %s0 = inlined_call_operand.hbm [shape: f32[2,8,32], index: 0, kind: input, shape index: {}]
  %s1 = inlined_call_operand.hbm [shape: f32[2,8,32], index: 1, kind: input, shape index: {}]
  %s2 = inlined_call_operand.hbm [shape: f32[2,8,32], index: 2, kind: input, shape index: {}]
  %s3 = inlined_call_operand.vmem [shape: f32[32,32], index: 3, kind: input, shape index: {}]
  %s4 = inlined_call_operand.vmem [shape: f32[32,32], index: 4, kind: input, shape index: {}]
  %s5 = inlined_call_operand.vmem [shape: f32[32,32], index: 5, kind: input, shape index: {}]
  %s6 = inlined_call_operand.hbm [shape: f32[32,32], index: 6, kind: input, shape index: {}]
  %s7 = inlined_call_operand.vmem [shape: f32[1,32], index: 7, kind: input, shape index: {}]
  %s8 = inlined_call_operand.vmem [shape: f32[1,32], index: 8, kind: input, shape index: {}]
  %s9 = inlined_call_operand.hbm [shape: f32[32,64], index: 9, kind: input, shape index: {}]
  %s10 = inlined_call_operand.vmem [shape: f32[1,64], index: 10, kind: input, shape index: {}]
  %s11 = inlined_call_operand.vmem [shape: f32[64,32], index: 11, kind: input, shape index: {}]
  %s12 = inlined_call_operand.vmem [shape: f32[1,32], index: 12, kind: input, shape index: {}]
  %s13 = inlined_call_operand.vmem [shape: f32[1,32], index: 13, kind: input, shape index: {}]
  %s14 = inlined_call_operand.vmem [shape: f32[1,32], index: 14, kind: input, shape index: {}]
  %s15 = inlined_call_operand.hbm [shape: f32[2,8,32], index: 15, kind: output, shape index: {0}]
  %s16 = inlined_call_operand.hbm [shape: f32[2,4,8,8], index: 16, kind: output, shape index: {1}]
  %17 = xla_tuple %s15, %s16
  %s18 = sld [smem:[#allocation0]]
  $region121: #{tpu_custom_call.1} parent=0
    _
  %s20 = ssub.s32 1, %s18
  %s21 = scalar_select 0, %s20, %s18
  $region1: #{tpu_custom_call.1} parent=0
    #allocation2 [shape = 'u8[8192]{0}', space=vmem, size = 0x2000, scoped, tag = 'input window, operand 0']
    #allocation3 [shape = 's32[2]{0}', space=sflag, size = 0x8, scoped, tag = 'scoped memory for tpu_custom_call.1']
    #allocation4 [shape = 's32[2]{0}', space=sflag, size = 0x8, scoped, tag = 'scoped memory for tpu_custom_call.1']
    #allocation5 [shape = 'u8[8192]{0}', space=vmem, size = 0x2000, scoped, tag = 'input window, operand 1']
    #allocation6 [shape = 's32[2]{0}', space=sflag, size = 0x8, scoped, tag = 'scoped memory for tpu_custom_call.1']
    #allocation7 [shape = 'u8[8192]{0}', space=vmem, size = 0x2000, scoped, tag = 'input window, operand 2']
    #allocation8 [shape = 'u8[16384]{0}', space=vmem, size = 0x4000, scoped, tag = 'input window, operand 6, single buffered']
    #allocation9 [shape = 's32[1]{0}', space=sflag, size = 0x4, scoped, tag = 'scoped memory for tpu_custom_call.1']
    #allocation10 [shape = 'u8[16384]{0}', space=vmem, size = 0x4000, scoped, tag = 'input window, operand 9, single buffered']
    #allocation11 [shape = 'u8[8192]{0}', space=vmem, size = 0x2000, scoped, tag = 'output window, operand 0']
    #allocation12 [shape = 'u8[32768]{0}', space=vmem, size = 0x8000, scoped, tag = 'output window, operand 1']
    #allocation13 [shape = 's32[2]{0}', space=sflag, size = 0x8, scoped, tag = 'scoped memory for tpu_custom_call.1']
    %22 = vsyncpa [#allocation3], 0
    %s23 = scalar_lea.sflag [#allocation3], 1
    %24 = vsyncpa %s23, 0
    %25 = vsyncpa [#allocation6], 0
    %s26 = scalar_lea.sflag [#allocation6], 1
    %27 = vsyncpa %s26, 0
    %28 = vsyncpa [#allocation9], 0
    %29 = vsyncpa [#allocation4], 0
    %s30 = scalar_lea.sflag [#allocation4], 1
    %31 = vsyncpa %s30, 0
    %32 = vsyncpa [#allocation13], 0
    %s33 = scalar_lea.sflag [#allocation13], 1
    %34 = vsyncpa %s33, 0
    loop: start=0, step=1, limit=4
    $region2: #{tpu_custom_call.1} parent=1 // loop_pre_header
      _
    $region3: #{tpu_custom_call.1} parent=1 // loop_header
      %s36 = sphi 0, %s40
      %p37 = scmp.ge.s32.totalorder %s36, 4
      %s46 = sphi 0, %s48
      %s49 = sphi 0, %s46
      %s50 = sphi 0, %s49
      %s66 = sphi 0, %s50
      %s72 = sphi 0, %s74
      %s75 = sphi 0, %s72
      %s76 = sphi 0, %s75
      %s92 = sphi 0, %s76
      %s98 = sphi 0, %s100
      %s101 = sphi 0, %s98
      %s102 = sphi 0, %s101
      %s118 = sphi 0, %s102
      %s122 = sphi 0, %s122
      %s124 = sphi 0, %s122
      %s125 = sphi 0, %s124
      %s139 = sphi 0, %s125
      %s143 = sphi 0, %s143
      %s145 = sphi 0, %s143
      %s146 = sphi 0, %s145
      %s160 = sphi 0, %s146
      %s164 = sphi 0, %s164
      %s166 = sphi 0, %s164
      %s167 = sphi 0, %s166
      %s181 = sphi 0, %s167
      %s185 = sphi 0, %s185
      %s187 = sphi 0, %s185
      %s188 = sphi 0, %s187
      %s202 = sphi 0, %s188
      %s206 = sphi 0, %s206
      %s208 = sphi 0, %s206
      %s209 = sphi 0, %s208
      %s223 = sphi 0, %s209
      %s227 = sphi 0, %s227
      %s229 = sphi 0, %s227
      %s230 = sphi 0, %s229
      %s244 = sphi 0, %s230
      %s248 = sphi 0, %s248
      %s250 = sphi 0, %s248
      %s251 = sphi 0, %s250
      %s265 = sphi 0, %s251
      %s269 = sphi 0, %s269
      %s271 = sphi 0, %s269
      %s272 = sphi 0, %s271
      %s286 = sphi 0, %s272
      %s290 = sphi 0, %s290
      %s292 = sphi 0, %s290
      %s293 = sphi 0, %s292
      %s307 = sphi 0, %s293
      %s311 = sphi 0, %s311
      %s313 = sphi 0, %s311
      %s314 = sphi 0, %s313
      %s328 = sphi 0, %s314
      %s332 = sphi 0, %s332
      %s334 = sphi 0, %s332
      %s335 = sphi 0, %s334
      %s349 = sphi 0, %s335
      %s353 = sphi 0, %s353
      %s355 = sphi 0, %s353
      %s356 = sphi 0, %s355
      %s370 = sphi 0, %s356
      %s376 = sphi 0, %s378
      %s379 = sphi 0, %s376
      %s380 = sphi 0, %s379
      %s396 = sphi 0, %s380
      %s402 = sphi 0, %s404
      %s405 = sphi 0, %s402
      %s406 = sphi 0, %s405
      %s422 = sphi 0, %s406
    $region4: #{tpu_custom_call.1} parent=1 // loop_header_branch
      %39 = sbr.rel (%p37) target = $region8
    $region5: #{tpu_custom_call.1} parent=1 // loop_body
      %s41 = ssub.s32 %s36, 1
      %s42 = ssub.s32 %s36, 2
      %s43 = sadd.s32 %s36, 1
      %s44 = ssub.s32 %s36, %s43
      %p45 = scmp.eq.s32.totalorder %s44, 0
      %s47 = sadd.s32 %s46, 1
      %s48 = scalar_select %p45, %s46, %s47
      %p51 = pneg %p45
      %p52 = scmp.eq.s32.totalorder %s36, 1
      %p53 = por %p51, %p52
      %p54 = scmp.ne.s32.totalorder %s46, %s49
      %p55 = scmp.eq.s32.totalorder %s36, 0
      %p56 = por %p54, %p55
      %p57 = scmp.ne.s32.totalorder %s46, %s49
      %p58 = scmp.eq.s32.totalorder %s41, 1
      %p59 = por %p57, %p58
      %p60 = scmp.ne.s32.totalorder %s49, %s50
      %p61 = scmp.eq.s32.totalorder %s41, 0
      %p62 = por %p60, %p61
      %p63 = scmp.ne.s32.totalorder %s49, %s50
      %p64 = scmp.eq.s32.totalorder %s42, 1
      %p65 = por %p63, %p64
      %p67 = scmp.ne.s32.totalorder %s50, %s66
      %p68 = scmp.eq.s32.totalorder %s42, 0
      %p69 = por %p67, %p68
      %s70 = ssub.s32 %s36, %s43
      %p71 = scmp.eq.s32.totalorder %s70, 0
      %s73 = sadd.s32 %s72, 1
      %s74 = scalar_select %p71, %s72, %s73
      %p77 = pneg %p71
      %p78 = scmp.eq.s32.totalorder %s36, 1
      %p79 = por %p77, %p78
      %p80 = scmp.ne.s32.totalorder %s72, %s75
      %p81 = scmp.eq.s32.totalorder %s36, 0
      %p82 = por %p80, %p81
      %p83 = scmp.ne.s32.totalorder %s72, %s75
      %p84 = scmp.eq.s32.totalorder %s41, 1
      %p85 = por %p83, %p84
      %p86 = scmp.ne.s32.totalorder %s75, %s76
      %p87 = scmp.eq.s32.totalorder %s41, 0
      %p88 = por %p86, %p87
      %p89 = scmp.ne.s32.totalorder %s75, %s76
      %p90 = scmp.eq.s32.totalorder %s42, 1
      %p91 = por %p89, %p90
      %p93 = scmp.ne.s32.totalorder %s76, %s92
      %p94 = scmp.eq.s32.totalorder %s42, 0
      %p95 = por %p93, %p94
      %s96 = ssub.s32 %s36, %s43
      %p97 = scmp.eq.s32.totalorder %s96, 0
      %s99 = sadd.s32 %s98, 1
      %s100 = scalar_select %p97, %s98, %s99
      %p103 = pneg %p97
      %p104 = scmp.eq.s32.totalorder %s36, 1
      %p105 = por %p103, %p104
      %p106 = scmp.ne.s32.totalorder %s98, %s101
      %p107 = scmp.eq.s32.totalorder %s36, 0
      %p108 = por %p106, %p107
      %p109 = scmp.ne.s32.totalorder %s98, %s101
      %p110 = scmp.eq.s32.totalorder %s41, 1
      %p111 = por %p109, %p110
      %p112 = scmp.ne.s32.totalorder %s101, %s102
      %p113 = scmp.eq.s32.totalorder %s41, 0
      %p114 = por %p112, %p113
      %p115 = scmp.ne.s32.totalorder %s101, %s102
      %p116 = scmp.eq.s32.totalorder %s42, 1
      %p117 = por %p115, %p116
      %p119 = scmp.ne.s32.totalorder %s102, %s118
      %p120 = scmp.eq.s32.totalorder %s42, 0
      %p121 = por %p119, %p120
      %s123 = sadd.s32 %s122, 1
      %p126 = scmp.eq.s32.totalorder %s36, 1
      %p127 = scmp.ne.s32.totalorder %s122, %s124
      %p128 = scmp.eq.s32.totalorder %s36, 0
      %p129 = por %p127, %p128
      %p130 = scmp.ne.s32.totalorder %s122, %s124
      %p131 = scmp.eq.s32.totalorder %s41, 1
      %p132 = por %p130, %p131
      %p133 = scmp.ne.s32.totalorder %s124, %s125
      %p134 = scmp.eq.s32.totalorder %s41, 0
      %p135 = por %p133, %p134
      %p136 = scmp.ne.s32.totalorder %s124, %s125
      %p137 = scmp.eq.s32.totalorder %s42, 1
      %p138 = por %p136, %p137
      %p140 = scmp.ne.s32.totalorder %s125, %s139
      %p141 = scmp.eq.s32.totalorder %s42, 0
      %p142 = por %p140, %p141
      %s144 = sadd.s32 %s143, 1
      %p147 = scmp.eq.s32.totalorder %s36, 1
      %p148 = scmp.ne.s32.totalorder %s143, %s145
      %p149 = scmp.eq.s32.totalorder %s36, 0
      %p150 = por %p148, %p149
      %p151 = scmp.ne.s32.totalorder %s143, %s145
      %p152 = scmp.eq.s32.totalorder %s41, 1
      %p153 = por %p151, %p152
      %p154 = scmp.ne.s32.totalorder %s145, %s146
      %p155 = scmp.eq.s32.totalorder %s41, 0
      %p156 = por %p154, %p155
      %p157 = scmp.ne.s32.totalorder %s145, %s146
      %p158 = scmp.eq.s32.totalorder %s42, 1
      %p159 = por %p157, %p158
      %p161 = scmp.ne.s32.totalorder %s146, %s160
      %p162 = scmp.eq.s32.totalorder %s42, 0
      %p163 = por %p161, %p162
      %s165 = sadd.s32 %s164, 1
      %p168 = scmp.eq.s32.totalorder %s36, 1
      %p169 = scmp.ne.s32.totalorder %s164, %s166
      %p170 = scmp.eq.s32.totalorder %s36, 0
      %p171 = por %p169, %p170
      %p172 = scmp.ne.s32.totalorder %s164, %s166
      %p173 = scmp.eq.s32.totalorder %s41, 1
      %p174 = por %p172, %p173
      %p175 = scmp.ne.s32.totalorder %s166, %s167
      %p176 = scmp.eq.s32.totalorder %s41, 0
      %p177 = por %p175, %p176
      %p178 = scmp.ne.s32.totalorder %s166, %s167
      %p179 = scmp.eq.s32.totalorder %s42, 1
      %p180 = por %p178, %p179
      %p182 = scmp.ne.s32.totalorder %s167, %s181
      %p183 = scmp.eq.s32.totalorder %s42, 0
      %p184 = por %p182, %p183
      %s186 = sadd.s32 %s185, 1
      %p189 = scmp.eq.s32.totalorder %s36, 1
      %p190 = scmp.ne.s32.totalorder %s185, %s187
      %p191 = scmp.eq.s32.totalorder %s36, 0
      %p192 = por %p190, %p191
      %p193 = scmp.ne.s32.totalorder %s185, %s187
      %p194 = scmp.eq.s32.totalorder %s41, 1
      %p195 = por %p193, %p194
      %p196 = scmp.ne.s32.totalorder %s187, %s188
      %p197 = scmp.eq.s32.totalorder %s41, 0
      %p198 = por %p196, %p197
      %p199 = scmp.ne.s32.totalorder %s187, %s188
      %p200 = scmp.eq.s32.totalorder %s42, 1
      %p201 = por %p199, %p200
      %p203 = scmp.ne.s32.totalorder %s188, %s202
      %p204 = scmp.eq.s32.totalorder %s42, 0
      %p205 = por %p203, %p204
      %s207 = sadd.s32 %s206, 1
      %p210 = scmp.eq.s32.totalorder %s36, 1
      %p211 = scmp.ne.s32.totalorder %s206, %s208
      %p212 = scmp.eq.s32.totalorder %s36, 0
      %p213 = por %p211, %p212
      %p214 = scmp.ne.s32.totalorder %s206, %s208
      %p215 = scmp.eq.s32.totalorder %s41, 1
      %p216 = por %p214, %p215
      %p217 = scmp.ne.s32.totalorder %s208, %s209
      %p218 = scmp.eq.s32.totalorder %s41, 0
      %p219 = por %p217, %p218
      %p220 = scmp.ne.s32.totalorder %s208, %s209
      %p221 = scmp.eq.s32.totalorder %s42, 1
      %p222 = por %p220, %p221
      %p224 = scmp.ne.s32.totalorder %s209, %s223
      %p225 = scmp.eq.s32.totalorder %s42, 0
      %p226 = por %p224, %p225
      %s228 = sadd.s32 %s227, 1
      %p231 = scmp.eq.s32.totalorder %s36, 1
      %p232 = scmp.ne.s32.totalorder %s227, %s229
      %p233 = scmp.eq.s32.totalorder %s36, 0
      %p234 = por %p232, %p233
      %p235 = scmp.ne.s32.totalorder %s227, %s229
      %p236 = scmp.eq.s32.totalorder %s41, 1
      %p237 = por %p235, %p236
      %p238 = scmp.ne.s32.totalorder %s229, %s230
      %p239 = scmp.eq.s32.totalorder %s41, 0
      %p240 = por %p238, %p239
      %p241 = scmp.ne.s32.totalorder %s229, %s230
      %p242 = scmp.eq.s32.totalorder %s42, 1
      %p243 = por %p241, %p242
      %p245 = scmp.ne.s32.totalorder %s230, %s244
      %p246 = scmp.eq.s32.totalorder %s42, 0
      %p247 = por %p245, %p246
      %s249 = sadd.s32 %s248, 1
      %p252 = scmp.eq.s32.totalorder %s36, 1
      %p253 = scmp.ne.s32.totalorder %s248, %s250
      %p254 = scmp.eq.s32.totalorder %s36, 0
      %p255 = por %p253, %p254
      %p256 = scmp.ne.s32.totalorder %s248, %s250
      %p257 = scmp.eq.s32.totalorder %s41, 1
      %p258 = por %p256, %p257
      %p259 = scmp.ne.s32.totalorder %s250, %s251
      %p260 = scmp.eq.s32.totalorder %s41, 0
      %p261 = por %p259, %p260
      %p262 = scmp.ne.s32.totalorder %s250, %s251
      %p263 = scmp.eq.s32.totalorder %s42, 1
      %p264 = por %p262, %p263
      %p266 = scmp.ne.s32.totalorder %s251, %s265
      %p267 = scmp.eq.s32.totalorder %s42, 0
      %p268 = por %p266, %p267
      %s270 = sadd.s32 %s269, 1
      %p273 = scmp.eq.s32.totalorder %s36, 1
      %p274 = scmp.ne.s32.totalorder %s269, %s271
      %p275 = scmp.eq.s32.totalorder %s36, 0
      %p276 = por %p274, %p275
      %p277 = scmp.ne.s32.totalorder %s269, %s271
      %p278 = scmp.eq.s32.totalorder %s41, 1
      %p279 = por %p277, %p278
      %p280 = scmp.ne.s32.totalorder %s271, %s272
      %p281 = scmp.eq.s32.totalorder %s41, 0
      %p282 = por %p280, %p281
      %p283 = scmp.ne.s32.totalorder %s271, %s272
      %p284 = scmp.eq.s32.totalorder %s42, 1
      %p285 = por %p283, %p284
      %p287 = scmp.ne.s32.totalorder %s272, %s286
      %p288 = scmp.eq.s32.totalorder %s42, 0
      %p289 = por %p287, %p288
      %s291 = sadd.s32 %s290, 1
      %p294 = scmp.eq.s32.totalorder %s36, 1
      %p295 = scmp.ne.s32.totalorder %s290, %s292
      %p296 = scmp.eq.s32.totalorder %s36, 0
      %p297 = por %p295, %p296
      %p298 = scmp.ne.s32.totalorder %s290, %s292
      %p299 = scmp.eq.s32.totalorder %s41, 1
      %p300 = por %p298, %p299
      %p301 = scmp.ne.s32.totalorder %s292, %s293
      %p302 = scmp.eq.s32.totalorder %s41, 0
      %p303 = por %p301, %p302
      %p304 = scmp.ne.s32.totalorder %s292, %s293
      %p305 = scmp.eq.s32.totalorder %s42, 1
      %p306 = por %p304, %p305
      %p308 = scmp.ne.s32.totalorder %s293, %s307
      %p309 = scmp.eq.s32.totalorder %s42, 0
      %p310 = por %p308, %p309
      %s312 = sadd.s32 %s311, 1
      %p315 = scmp.eq.s32.totalorder %s36, 1
      %p316 = scmp.ne.s32.totalorder %s311, %s313
      %p317 = scmp.eq.s32.totalorder %s36, 0
      %p318 = por %p316, %p317
      %p319 = scmp.ne.s32.totalorder %s311, %s313
      %p320 = scmp.eq.s32.totalorder %s41, 1
      %p321 = por %p319, %p320
      %p322 = scmp.ne.s32.totalorder %s313, %s314
      %p323 = scmp.eq.s32.totalorder %s41, 0
      %p324 = por %p322, %p323
      %p325 = scmp.ne.s32.totalorder %s313, %s314
      %p326 = scmp.eq.s32.totalorder %s42, 1
      %p327 = por %p325, %p326
      %p329 = scmp.ne.s32.totalorder %s314, %s328
      %p330 = scmp.eq.s32.totalorder %s42, 0
      %p331 = por %p329, %p330
      %s333 = sadd.s32 %s332, 1
      %p336 = scmp.eq.s32.totalorder %s36, 1
      %p337 = scmp.ne.s32.totalorder %s332, %s334
      %p338 = scmp.eq.s32.totalorder %s36, 0
      %p339 = por %p337, %p338
      %p340 = scmp.ne.s32.totalorder %s332, %s334
      %p341 = scmp.eq.s32.totalorder %s41, 1
      %p342 = por %p340, %p341
      %p343 = scmp.ne.s32.totalorder %s334, %s335
      %p344 = scmp.eq.s32.totalorder %s41, 0
      %p345 = por %p343, %p344
      %p346 = scmp.ne.s32.totalorder %s334, %s335
      %p347 = scmp.eq.s32.totalorder %s42, 1
      %p348 = por %p346, %p347
      %p350 = scmp.ne.s32.totalorder %s335, %s349
      %p351 = scmp.eq.s32.totalorder %s42, 0
      %p352 = por %p350, %p351
      %s354 = sadd.s32 %s353, 1
      %p357 = scmp.eq.s32.totalorder %s36, 1
      %p358 = scmp.ne.s32.totalorder %s353, %s355
      %p359 = scmp.eq.s32.totalorder %s36, 0
      %p360 = por %p358, %p359
      %p361 = scmp.ne.s32.totalorder %s353, %s355
      %p362 = scmp.eq.s32.totalorder %s41, 1
      %p363 = por %p361, %p362
      %p364 = scmp.ne.s32.totalorder %s355, %s356
      %p365 = scmp.eq.s32.totalorder %s41, 0
      %p366 = por %p364, %p365
      %p367 = scmp.ne.s32.totalorder %s355, %s356
      %p368 = scmp.eq.s32.totalorder %s42, 1
      %p369 = por %p367, %p368
      %p371 = scmp.ne.s32.totalorder %s356, %s370
      %p372 = scmp.eq.s32.totalorder %s42, 0
      %p373 = por %p371, %p372
      %s374 = ssub.s32 %s36, %s43
      %p375 = scmp.eq.s32.totalorder %s374, 0
      %s377 = sadd.s32 %s376, 1
      %s378 = scalar_select %p375, %s376, %s377
      %p381 = pneg %p375
      %p382 = scmp.eq.s32.totalorder %s36, 1
      %p383 = por %p381, %p382
      %p384 = scmp.ne.s32.totalorder %s376, %s379
      %p385 = scmp.eq.s32.totalorder %s36, 0
      %p386 = por %p384, %p385
      %p387 = scmp.ne.s32.totalorder %s376, %s379
      %p388 = scmp.eq.s32.totalorder %s41, 1
      %p389 = por %p387, %p388
      %p390 = scmp.ne.s32.totalorder %s379, %s380
      %p391 = scmp.eq.s32.totalorder %s41, 0
      %p392 = por %p390, %p391
      %p393 = scmp.ne.s32.totalorder %s379, %s380
      %p394 = scmp.eq.s32.totalorder %s42, 1
      %p395 = por %p393, %p394
      %p397 = scmp.ne.s32.totalorder %s380, %s396
      %p398 = scmp.eq.s32.totalorder %s42, 0
      %p399 = por %p397, %p398
      %s400 = ssub.s32 %s36, %s43
      %p401 = scmp.eq.s32.totalorder %s400, 0
      %s403 = sadd.s32 %s402, 1
      %s404 = scalar_select %p401, %s402, %s403
      %p407 = pneg %p401
      %p408 = scmp.eq.s32.totalorder %s36, 1
      %p409 = por %p407, %p408
      %p410 = scmp.ne.s32.totalorder %s402, %s405
      %p411 = scmp.eq.s32.totalorder %s36, 0
      %p412 = por %p410, %p411
      %p413 = scmp.ne.s32.totalorder %s402, %s405
      %p414 = scmp.eq.s32.totalorder %s41, 1
      %p415 = por %p413, %p414
      %p416 = scmp.ne.s32.totalorder %s405, %s406
      %p417 = scmp.eq.s32.totalorder %s41, 0
      %p418 = por %p416, %p417
      %p419 = scmp.ne.s32.totalorder %s405, %s406
      %p420 = scmp.eq.s32.totalorder %s42, 1
      %p421 = por %p419, %p420
      %p423 = scmp.ne.s32.totalorder %s406, %s422
      %p424 = scmp.eq.s32.totalorder %s42, 0
      %p425 = por %p423, %p424
      %p426 = scmp.le.s32.totalorder 1, %s36
      %p427 = scmp.lt.s32.totalorder %s36, 3
      %p428 = pnand %p426, %p427
      %p429 = pneg %p428
      // Predicated region
      $region9: #{tpu_custom_call.1} parent=5 // pred_check
        _
      $region10: #{tpu_custom_call.1} parent=5 // pred_check_branch
        %431 = sbr.rel (%p428) target = $region12
      $region11: #{tpu_custom_call.1} parent=5 // pred_region
        %s432 = ssub.s32 %s36, 1
        // Predicated region
        $region13: #{tpu_custom_call.1} parent=11 // pred_check
          %p433 = pneg %p135
        $region14: #{tpu_custom_call.1} parent=11 // pred_check_branch
          %435 = sbr.rel (%p433) target = $region16
        $region15: #{tpu_custom_call.1} parent=11 // pred_region
          _
        $region16: #{tpu_custom_call.1} parent=11 // pred_fallthru
          _
        // Predicated region
        $region17: #{tpu_custom_call.1} parent=11 // pred_check
          %p436 = pneg %p156
        $region18: #{tpu_custom_call.1} parent=11 // pred_check_branch
          %438 = sbr.rel (%p436) target = $region20
        $region19: #{tpu_custom_call.1} parent=11 // pred_region
          _
        $region20: #{tpu_custom_call.1} parent=11 // pred_fallthru
          _
        // Predicated region
        $region21: #{tpu_custom_call.1} parent=11 // pred_check
          %p439 = pneg %p177
        $region22: #{tpu_custom_call.1} parent=11 // pred_check_branch
          %441 = sbr.rel (%p439) target = $region24
        $region23: #{tpu_custom_call.1} parent=11 // pred_region
          _
        $region24: #{tpu_custom_call.1} parent=11 // pred_fallthru
          _
        // Predicated region
        $region25: #{tpu_custom_call.1} parent=11 // pred_check
          %p442 = pneg %p198
        $region26: #{tpu_custom_call.1} parent=11 // pred_check_branch
          %444 = sbr.rel (%p442) target = $region28
        $region27: #{tpu_custom_call.1} parent=11 // pred_region
          %446 = vsyncadd [#allocation9], 0
          %s447 = sshll.u32 %s6, 4
          %s448 = int_to_ptr.hbm [resolvable:$true] %s447
          %s449 = sshll.u32 [#allocation8], 4
          %s450 = int_to_ptr.vmem [resolvable:$true] %s449
          %455 = dma.hbm_to_vmem [thread:$0]  %s448, 512, %s450, [#allocation9], 128, 128, 8
        $region28: #{tpu_custom_call.1} parent=11 // pred_fallthru
          _
        // Predicated region
        $region29: #{tpu_custom_call.1} parent=11 // pred_check
          %p456 = pneg %p219
        $region30: #{tpu_custom_call.1} parent=11 // pred_check_branch
          %458 = sbr.rel (%p456) target = $region32
        $region31: #{tpu_custom_call.1} parent=11 // pred_region
          _
        $region32: #{tpu_custom_call.1} parent=11 // pred_fallthru
          _
        // Predicated region
        $region33: #{tpu_custom_call.1} parent=11 // pred_check
          %p459 = pneg %p240
        $region34: #{tpu_custom_call.1} parent=11 // pred_check_branch
          %461 = sbr.rel (%p459) target = $region36
        $region35: #{tpu_custom_call.1} parent=11 // pred_region
          _
        $region36: #{tpu_custom_call.1} parent=11 // pred_fallthru
          _
        // Predicated region
        $region37: #{tpu_custom_call.1} parent=11 // pred_check
          %p462 = pneg %p261
        $region38: #{tpu_custom_call.1} parent=11 // pred_check_branch
          %464 = sbr.rel (%p462) target = $region40
        $region39: #{tpu_custom_call.1} parent=11 // pred_region
          %466 = vsyncadd [#allocation9], 0
          %s467 = sshll.u32 %s9, 4
          %s468 = int_to_ptr.hbm [resolvable:$true] %s467
          %s469 = sshll.u32 [#allocation10], 4
          %s470 = int_to_ptr.vmem [resolvable:$true] %s469
          %475 = dma.hbm_to_vmem [thread:$0]  %s468, 512, %s470, [#allocation9], 128, 128, 8
        $region40: #{tpu_custom_call.1} parent=11 // pred_fallthru
          _
        // Predicated region
        $region41: #{tpu_custom_call.1} parent=11 // pred_check
          %p476 = pneg %p282
        $region42: #{tpu_custom_call.1} parent=11 // pred_check_branch
          %478 = sbr.rel (%p476) target = $region44
        $region43: #{tpu_custom_call.1} parent=11 // pred_region
          _
        $region44: #{tpu_custom_call.1} parent=11 // pred_fallthru
          _
        // Predicated region
        $region45: #{tpu_custom_call.1} parent=11 // pred_check
          %p479 = pneg %p303
        $region46: #{tpu_custom_call.1} parent=11 // pred_check_branch
          %481 = sbr.rel (%p479) target = $region48
        $region47: #{tpu_custom_call.1} parent=11 // pred_region
          _
        $region48: #{tpu_custom_call.1} parent=11 // pred_fallthru
          _
        // Predicated region
        $region49: #{tpu_custom_call.1} parent=11 // pred_check
          %p482 = pneg %p324
        $region50: #{tpu_custom_call.1} parent=11 // pred_check_branch
          %484 = sbr.rel (%p482) target = $region52
        $region51: #{tpu_custom_call.1} parent=11 // pred_region
          _
        $region52: #{tpu_custom_call.1} parent=11 // pred_fallthru
          _
        // Predicated region
        $region53: #{tpu_custom_call.1} parent=11 // pred_check
          %p485 = pneg %p345
        $region54: #{tpu_custom_call.1} parent=11 // pred_check_branch
          %487 = sbr.rel (%p485) target = $region56
        $region55: #{tpu_custom_call.1} parent=11 // pred_region
          _
        $region56: #{tpu_custom_call.1} parent=11 // pred_fallthru
          _
        // Predicated region
        $region57: #{tpu_custom_call.1} parent=11 // pred_check
          %p488 = pneg %p366
        $region58: #{tpu_custom_call.1} parent=11 // pred_check_branch
          %490 = sbr.rel (%p488) target = $region60
        $region59: #{tpu_custom_call.1} parent=11 // pred_region
          _
        $region60: #{tpu_custom_call.1} parent=11 // pred_fallthru
          _
      $region12: #{tpu_custom_call.1} parent=5 // pred_fallthru
        _
      %p491 = scmp.lt.s32.totalorder %s36, 2
      // Predicated region
      $region61: #{tpu_custom_call.1} parent=5 // pred_check
        %p492 = pneg %p491
      $region62: #{tpu_custom_call.1} parent=5 // pred_check_branch
        %494 = sbr.rel (%p492) target = $region64
      $region63: #{tpu_custom_call.1} parent=5 // pred_region
        // Predicated region
        $region65: #{tpu_custom_call.1} parent=63 // pred_check
          %p495 = pneg %p56
        $region66: #{tpu_custom_call.1} parent=63 // pred_check_branch
          %497 = sbr.rel (%p495) target = $region68
        $region67: #{tpu_custom_call.1} parent=63 // pred_region
          %s498 = sand.u32 %s46, 1
          %s499 = scalar_lea.sflag [#allocation3], %s498
          %s500 = sand.u32 %s46, 1
          %s501 = smul.addr %s500, 8
          %s502 = scalar_lea.vmem [#allocation2], %s501
          %504 = vsyncadd %s499, 0
          %s505 = smul.addr %s36, 8
          %s506 = scalar_lea.hbm %s0, %s505
          %s508 = sshll.u32 %s506, 4
          %s509 = int_to_ptr.hbm [resolvable:$true] %s508
          %s510 = sshll.u32 %s502, 4
          %s511 = int_to_ptr.vmem [resolvable:$true] %s510
          %513 = dma.hbm_to_vmem [thread:$0]  %s509, 128, %s511, %s499
        $region68: #{tpu_custom_call.1} parent=63 // pred_fallthru
          _
        // Predicated region
        $region69: #{tpu_custom_call.1} parent=63 // pred_check
          %p514 = pneg %p82
        $region70: #{tpu_custom_call.1} parent=63 // pred_check_branch
          %516 = sbr.rel (%p514) target = $region72
        $region71: #{tpu_custom_call.1} parent=63 // pred_region
          %s517 = sand.u32 %s36, 1
          %s518 = scalar_lea.sflag [#allocation6], %s517
          %s519 = sand.u32 %s72, 1
          %s520 = smul.addr %s519, 8
          %s521 = scalar_lea.vmem [#allocation5], %s520
          %523 = vsyncadd %s518, 0
          %s524 = smul.addr %s36, 8
          %s525 = scalar_lea.hbm %s1, %s524
          %s527 = sshll.u32 %s525, 4
          %s528 = int_to_ptr.hbm [resolvable:$true] %s527
          %s529 = sshll.u32 %s521, 4
          %s530 = int_to_ptr.vmem [resolvable:$true] %s529
          %532 = dma.hbm_to_vmem [thread:$0]  %s528, 128, %s530, %s518
        $region72: #{tpu_custom_call.1} parent=63 // pred_fallthru
          _
        // Predicated region
        $region73: #{tpu_custom_call.1} parent=63 // pred_check
          %p533 = pneg %p108
        $region74: #{tpu_custom_call.1} parent=63 // pred_check_branch
          %535 = sbr.rel (%p533) target = $region76
        $region75: #{tpu_custom_call.1} parent=63 // pred_region
          %s536 = sand.u32 %s36, 1
          %s537 = scalar_lea.sflag [#allocation6], %s536
          %s538 = sand.u32 %s98, 1
          %s539 = smul.addr %s538, 8
          %s540 = scalar_lea.vmem [#allocation7], %s539
          %542 = vsyncadd %s537, 0
          %s543 = smul.addr %s36, 8
          %s544 = scalar_lea.hbm %s2, %s543
          %s546 = sshll.u32 %s544, 4
          %s547 = int_to_ptr.hbm [resolvable:$true] %s546
          %s548 = sshll.u32 %s540, 4
          %s549 = int_to_ptr.vmem [resolvable:$true] %s548
          %551 = dma.hbm_to_vmem [thread:$0]  %s547, 128, %s549, %s537
        $region76: #{tpu_custom_call.1} parent=63 // pred_fallthru
          _
      $region64: #{tpu_custom_call.1} parent=5 // pred_fallthru
        _
      %p552 = scmp.le.s32.totalorder 1, %s36
      %p553 = scmp.lt.s32.totalorder %s36, 3
      %p554 = pnand %p552, %p553
      %p555 = pneg %p554
      // Predicated region
      $region77: #{tpu_custom_call.1} parent=5 // pred_check
        _
      $region78: #{tpu_custom_call.1} parent=5 // pred_check_branch
        %557 = sbr.rel (%p554) target = $region80
      $region79: #{tpu_custom_call.1} parent=5 // pred_region
        %s558 = ssub.s32 %s36, 1
        %s559 = sand.u32 %s49, 1
        %s560 = scalar_lea.sflag [#allocation3], %s559
        %s561 = sand.u32 %s49, 1
        %s562 = smul.addr %s561, 8
        %s563 = scalar_lea.vmem [#allocation2], %s562
        // Predicated region
        $region81: #{tpu_custom_call.1} parent=79 // pred_check
          %p564 = pneg %p62
        $region82: #{tpu_custom_call.1} parent=79 // pred_check_branch
          %566 = sbr.rel (%p564) target = $region84
        $region83: #{tpu_custom_call.1} parent=79 // pred_region
          %568 = dma.done %s560, 128
        $region84: #{tpu_custom_call.1} parent=79 // pred_fallthru
          _
        %s569 = sand.u32 %s41, 1
        %s570 = scalar_lea.sflag [#allocation6], %s569
        %s571 = sand.u32 %s75, 1
        %s572 = smul.addr %s571, 8
        %s573 = scalar_lea.vmem [#allocation5], %s572
        // Predicated region
        $region85: #{tpu_custom_call.1} parent=79 // pred_check
          %p574 = pneg %p88
        $region86: #{tpu_custom_call.1} parent=79 // pred_check_branch
          %576 = sbr.rel (%p574) target = $region88
        $region87: #{tpu_custom_call.1} parent=79 // pred_region
          %578 = dma.done %s570, 128
        $region88: #{tpu_custom_call.1} parent=79 // pred_fallthru
          _
        %s579 = sand.u32 %s41, 1
        %s580 = scalar_lea.sflag [#allocation6], %s579
        %s581 = sand.u32 %s101, 1
        %s582 = smul.addr %s581, 8
        %s583 = scalar_lea.vmem [#allocation7], %s582
        // Predicated region
        $region89: #{tpu_custom_call.1} parent=79 // pred_check
          %p584 = pneg %p114
        $region90: #{tpu_custom_call.1} parent=79 // pred_check_branch
          %586 = sbr.rel (%p584) target = $region92
        $region91: #{tpu_custom_call.1} parent=79 // pred_region
          %588 = dma.done %s580, 128
        $region92: #{tpu_custom_call.1} parent=79 // pred_fallthru
          _
        // Predicated region
        $region93: #{tpu_custom_call.1} parent=79 // pred_check
          %p589 = pneg %p198
        $region94: #{tpu_custom_call.1} parent=79 // pred_check_branch
          %591 = sbr.rel (%p589) target = $region96
        $region95: #{tpu_custom_call.1} parent=79 // pred_region
          %593 = dma.done [#allocation9], 512
        $region96: #{tpu_custom_call.1} parent=79 // pred_fallthru
          _
        // Predicated region
        $region97: #{tpu_custom_call.1} parent=79 // pred_check
          %p594 = pneg %p261
        $region98: #{tpu_custom_call.1} parent=79 // pred_check_branch
          %596 = sbr.rel (%p594) target = $region100
        $region99: #{tpu_custom_call.1} parent=79 // pred_region
          %598 = dma.done [#allocation9], 512
        $region100: #{tpu_custom_call.1} parent=79 // pred_fallthru
          _
        %s599 = sand.u32 %s49, 1
        %s600 = scalar_lea.sflag [#allocation3], %s599
        %s601 = sand.u32 %s49, 1
        %s602 = smul.addr %s601, 8
        %s603 = scalar_lea.vmem [#allocation2], %s602
        %p604 = pneg %p62
        %p605 = pneg %p59
        %s606 = sand.u32 %s41, 1
        %s607 = scalar_lea.sflag [#allocation6], %s606
        %s608 = sand.u32 %s75, 1
        %s609 = smul.addr %s608, 8
        %s610 = scalar_lea.vmem [#allocation5], %s609
        %p611 = pneg %p88
        %p612 = pneg %p85
        %s613 = sand.u32 %s41, 1
        %s614 = scalar_lea.sflag [#allocation6], %s613
        %s615 = sand.u32 %s101, 1
        %s616 = smul.addr %s615, 8
        %s617 = scalar_lea.vmem [#allocation7], %s616
        %p618 = pneg %p114
        %p619 = pneg %p111
        %p620 = pneg %p135
        %p621 = pneg %p132
        %p622 = pneg %p156
        %p623 = pneg %p153
        %p624 = pneg %p177
        %p625 = pneg %p174
        %p626 = pneg %p198
        %p627 = pneg %p195
        %p628 = pneg %p219
        %p629 = pneg %p216
        %p630 = pneg %p240
        %p631 = pneg %p237
        %p632 = pneg %p261
        %p633 = pneg %p258
        %p634 = pneg %p282
        %p635 = pneg %p279
        %p636 = pneg %p303
        %p637 = pneg %p300
        %p638 = pneg %p324
        %p639 = pneg %p321
        %p640 = pneg %p345
        %p641 = pneg %p342
        %p642 = pneg %p366
        %p643 = pneg %p363
        %p644 = pneg %p392
        %p645 = pneg %p389
        %s646 = sand.u32 %s379, 1
        %s647 = scalar_lea.sflag [#allocation4], %s646
        %s648 = sand.u32 %s379, 1
        %s649 = smul.addr %s648, 8
        %s650 = scalar_lea.vmem [#allocation11], %s649
        %p651 = pneg %p418
        %p652 = pneg %p415
        %s653 = sand.u32 %s405, 1
        %s654 = scalar_lea.sflag [#allocation13], %s653
        %s655 = sand.u32 %s405, 1
        %s656 = smul.addr %s655, 32
        %s657 = scalar_lea.vmem [#allocation12], %s656
        %v658 = vld [vmem:[%s563] sm:$0xff]
        %v659 = vld [vmem:[%s573] sm:$0xff]
        %v660 = vld [vmem:[%s583] sm:$0xff]
        %v661 = vld [vmem:[%s3] sm:$0xff]
        %v662 = vld [vmem:[%s3 + $0x8] sm:$0xff]
        %v663 = vld [vmem:[%s3 + $0x10] sm:$0xff]
        %v664 = vld [vmem:[%s3 + $0x18] sm:$0xff]
        %vm665 = vcmask 261120
        %v667 = vsel %vm665, %v658, 0
        %669 = vmatpush.msra.mxu0 0.0
        %670 = vmatpush.msra.mxu0 0.0
        %671 = vmatpush.msra.mxu0 0.0
        %672 = vmatpush.msra.mxu0 0.0
        %673 = vmatpush.msra.mxu0 0.0
        %674 = vmatpush.msra.mxu0 0.0
        %675 = vmatpush.msra.mxu0 0.0
        %676 = vmatpush.msra.mxu0 0.0
        %677 = vmatpush.msra.mxu0 0.0
        %678 = vmatpush.msra.mxu0 0.0
        %679 = vmatpush.msra.mxu0 0.0
        %680 = vmatpush.msra.mxu0 0.0
        %681 = vmatpush.msra.mxu0 %v664
        %682 = vmatpush.msra.mxu0 %v663
        %683 = vmatpush.msra.mxu0 %v662
        %684 = vmatpush.msra.mxu0 %v661
        %685 = vmatmul.f32.gmra.mxu0 %v667
        %v686 = vpop.f32.mrf.mxu0
        %v687 = vadd.f32 0.0, %v686
        %688 = vdwg.mxu0
        %v689 = vld [vmem:[%s4] sm:$0xff]
        %v690 = vld [vmem:[%s4 + $0x8] sm:$0xff]
        %v691 = vld [vmem:[%s4 + $0x10] sm:$0xff]
        %v692 = vld [vmem:[%s4 + $0x18] sm:$0xff]
        %v694 = vsel %vm665, %v659, 0
        %696 = vmatpush.msra.mxu0 0.0
        %697 = vmatpush.msra.mxu0 0.0
        %698 = vmatpush.msra.mxu0 0.0
        %699 = vmatpush.msra.mxu0 0.0
        %700 = vmatpush.msra.mxu0 0.0
        %701 = vmatpush.msra.mxu0 0.0
        %702 = vmatpush.msra.mxu0 0.0
        %703 = vmatpush.msra.mxu0 0.0
        %704 = vmatpush.msra.mxu0 0.0
        %705 = vmatpush.msra.mxu0 0.0
        %706 = vmatpush.msra.mxu0 0.0
        %707 = vmatpush.msra.mxu0 0.0
        %708 = vmatpush.msra.mxu0 %v692
        %709 = vmatpush.msra.mxu0 %v691
        %710 = vmatpush.msra.mxu0 %v690
        %711 = vmatpush.msra.mxu0 %v689
        %712 = vmatmul.f32.gmra.mxu0 %v694
        %v713 = vpop.f32.mrf.mxu0
        %v714 = vadd.f32 0.0, %v713
        %715 = vdwg.mxu0
        %v716 = vld [vmem:[%s5] sm:$0xff]
        %v717 = vld [vmem:[%s5 + $0x8] sm:$0xff]
        %v718 = vld [vmem:[%s5 + $0x10] sm:$0xff]
        %v719 = vld [vmem:[%s5 + $0x18] sm:$0xff]
        %v721 = vsel %vm665, %v660, 0
        %723 = vmatpush.msra.mxu0 0.0
        %724 = vmatpush.msra.mxu0 0.0
        %725 = vmatpush.msra.mxu0 0.0
        %726 = vmatpush.msra.mxu0 0.0
        %727 = vmatpush.msra.mxu0 0.0
        %728 = vmatpush.msra.mxu0 0.0
        %729 = vmatpush.msra.mxu0 0.0
        %730 = vmatpush.msra.mxu0 0.0
        %731 = vmatpush.msra.mxu0 0.0
        %732 = vmatpush.msra.mxu0 0.0
        %733 = vmatpush.msra.mxu0 0.0
        %734 = vmatpush.msra.mxu0 0.0
        %735 = vmatpush.msra.mxu0 %v719
        %736 = vmatpush.msra.mxu0 %v718
        %737 = vmatpush.msra.mxu0 %v717
        %738 = vmatpush.msra.mxu0 %v716
        %739 = vmatmul.f32.gmra.mxu0 %v721
        %v740 = vpop.f32.mrf.mxu0
        %v741 = vadd.f32 0.0, %v740
        %742 = vdwg.mxu0
        %744 = vrot.lane.b32.xlu0 %v687, 120
        %v745 = vpop.permute.xlu0 %744
        %747 = vrot.lane.b32.xlu0 %v687, 112
        %v748 = vpop.permute.xlu0 %747
        %750 = vrot.lane.b32.xlu0 %v687, 104
        %v751 = vpop.permute.xlu0 %750
        %v753 = vrot.slane %v748, 4
        %vm754 = vcmask 1047556
        %v755 = vsel %vm754, %v753, %v687
        %v756 = vrot.slane %v687, 4
        %v757 = vsel %vm754, %v748, %v756
        %v759 = vunpack.c.l.s4 1983009808
        %v760 = vunpack.c.0.s8 %v759
        %v761 = vperm.slane %v755, %v760
        %v763 = vunpack.c.l.s4 1983009808
        %v764 = vunpack.c.0.s8 %v763
        %v765 = vperm.slane %v757, %v764
        %v766 = vrot.slane %v751, 4
        %v767 = vsel %vm754, %v766, %v745
        %v768 = vrot.slane %v745, 4
        %v769 = vsel %vm754, %v751, %v768
        %v771 = vunpack.c.l.s4 1983009808
        %v772 = vunpack.c.0.s8 %v771
        %v773 = vperm.slane %v767, %v772
        %v775 = vunpack.c.l.s4 1983009808
        %v776 = vunpack.c.0.s8 %v775
        %v777 = vperm.slane %v769, %v776
        %v778 = vrot.slane %v773, 4
        %v779 = vsel %vm754, %v778, %v761
        %v780 = vrot.slane %v761, 4
        %v781 = vsel %vm754, %v773, %v780
        %v783 = vunpack.c.l.s4 1934713408
        %v784 = vunpack.c.0.s8 %v783
        %v785 = vperm.slane %v779, %v784
        %v787 = vunpack.c.l.s4 1934713408
        %v788 = vunpack.c.0.s8 %v787
        %v789 = vperm.slane %v781, %v788
        %v790 = vrot.slane %v777, 4
        %v791 = vsel %vm754, %v790, %v765
        %v792 = vrot.slane %v765, 4
        %v793 = vsel %vm754, %v777, %v792
        %v795 = vunpack.c.l.s4 1934713408
        %v796 = vunpack.c.0.s8 %v795
        %v797 = vperm.slane %v791, %v796
        %v799 = vunpack.c.l.s4 1934713408
        %v800 = vunpack.c.0.s8 %v799
        %v801 = vperm.slane %v793, %v800
        %v802 = vrot.slane %v785, 4
        %v803 = vsel %vm754, 0.0, %v802
        %v804 = vrot.slane %v789, 4
        %v805 = vsel %vm754, 0.0, %v804
        %v806 = vrot.slane %v797, 4
        %v807 = vsel %vm754, 0.0, %v806
        %v808 = vrot.slane %v801, 4
        %v809 = vsel %vm754, 0.0, %v808
        %v810 = vsel %vm754, %v804, %v785
        %v812 = vunpack.c.l.s4 1983009808
        %v813 = vunpack.c.0.s8 %v812
        %v814 = vperm.slane %v810, %v813
        %v815 = vrot.slane %v805, 4
        %v816 = vsel %vm754, %v815, %v803
        %v818 = vunpack.c.l.s4 1983009808
        %v819 = vunpack.c.0.s8 %v818
        %v820 = vperm.slane %v816, %v819
        %v821 = vsel %vm754, %v808, %v797
        %v823 = vunpack.c.l.s4 1983009808
        %v824 = vunpack.c.0.s8 %v823
        %v825 = vperm.slane %v821, %v824
        %v826 = vrot.slane %v809, 4
        %v827 = vsel %vm754, %v826, %v807
        %v829 = vunpack.c.l.s4 1983009808
        %v830 = vunpack.c.0.s8 %v829
        %v831 = vperm.slane %v827, %v830
        %v832 = vrot.slane %v820, 4
        %v833 = vsel %vm754, %v832, %v814
        %v834 = vrot.slane %v814, 4
        %v835 = vsel %vm754, %v820, %v834
        %v837 = vunpack.c.l.s4 1934713408
        %v838 = vunpack.c.0.s8 %v837
        %v839 = vperm.slane %v833, %v838
        %v841 = vunpack.c.l.s4 1934713408
        %v842 = vunpack.c.0.s8 %v841
        %v843 = vperm.slane %v835, %v842
        %v844 = vrot.slane %v831, 4
        %v845 = vsel %vm754, %v844, %v825
        %v846 = vrot.slane %v825, 4
        %v847 = vsel %vm754, %v831, %v846
        %v849 = vunpack.c.l.s4 1934713408
        %v850 = vunpack.c.0.s8 %v849
        %v851 = vperm.slane %v845, %v850
        %v853 = vunpack.c.l.s4 1934713408
        %v854 = vunpack.c.0.s8 %v853
        %v855 = vperm.slane %v847, %v854
        %v856 = vrot.slane %v851, 4
        %v857 = vsel %vm754, %v856, %v839
        %v858 = vrot.slane %v839, 4
        %v859 = vsel %vm754, %v851, %v858
        %v860 = vrot.slane %v855, 4
        %v861 = vsel %vm754, %v860, %v843
        %v862 = vrot.slane %v843, 4
        %v863 = vsel %vm754, %v855, %v862
        %865 = vrot.lane.b32.xlu0 %v714, 120
        %v866 = vpop.permute.xlu0 %865
        %868 = vrot.lane.b32.xlu0 %v714, 112
        %v869 = vpop.permute.xlu0 %868
        %871 = vrot.lane.b32.xlu0 %v714, 104
        %v872 = vpop.permute.xlu0 %871
        %v874 = vrot.slane %v869, 4
        %v875 = vsel %vm754, %v874, %v714
        %v876 = vrot.slane %v714, 4
        %v877 = vsel %vm754, %v869, %v876
        %v879 = vunpack.c.l.s4 1983009808
        %v880 = vunpack.c.0.s8 %v879
        %v881 = vperm.slane %v875, %v880
        %v883 = vunpack.c.l.s4 1983009808
        %v884 = vunpack.c.0.s8 %v883
        %v885 = vperm.slane %v877, %v884
        %v886 = vrot.slane %v872, 4
        %v887 = vsel %vm754, %v886, %v866
        %v888 = vrot.slane %v866, 4
        %v889 = vsel %vm754, %v872, %v888
        %v891 = vunpack.c.l.s4 1983009808
        %v892 = vunpack.c.0.s8 %v891
        %v893 = vperm.slane %v887, %v892
        %v895 = vunpack.c.l.s4 1983009808
        %v896 = vunpack.c.0.s8 %v895
        %v897 = vperm.slane %v889, %v896
        %v898 = vrot.slane %v893, 4
        %v899 = vsel %vm754, %v898, %v881
        %v900 = vrot.slane %v881, 4
        %v901 = vsel %vm754, %v893, %v900
        %v903 = vunpack.c.l.s4 1934713408
        %v904 = vunpack.c.0.s8 %v903
        %v905 = vperm.slane %v899, %v904
        %v907 = vunpack.c.l.s4 1934713408
        %v908 = vunpack.c.0.s8 %v907
        %v909 = vperm.slane %v901, %v908
        %v910 = vrot.slane %v897, 4
        %v911 = vsel %vm754, %v910, %v885
        %v912 = vrot.slane %v885, 4
        %v913 = vsel %vm754, %v897, %v912
        %v915 = vunpack.c.l.s4 1934713408
        %v916 = vunpack.c.0.s8 %v915
        %v917 = vperm.slane %v911, %v916
        %v919 = vunpack.c.l.s4 1934713408
        %v920 = vunpack.c.0.s8 %v919
        %v921 = vperm.slane %v913, %v920
        %v922 = vrot.slane %v905, 4
        %v923 = vsel %vm754, 0.0, %v922
        %v924 = vrot.slane %v909, 4
        %v925 = vsel %vm754, 0.0, %v924
        %v926 = vrot.slane %v917, 4
        %v927 = vsel %vm754, 0.0, %v926
        %v928 = vrot.slane %v921, 4
        %v929 = vsel %vm754, 0.0, %v928
        %v930 = vsel %vm754, %v924, %v905
        %v932 = vunpack.c.l.s4 1983009808
        %v933 = vunpack.c.0.s8 %v932
        %v934 = vperm.slane %v930, %v933
        %v935 = vrot.slane %v925, 4
        %v936 = vsel %vm754, %v935, %v923
        %v938 = vunpack.c.l.s4 1983009808
        %v939 = vunpack.c.0.s8 %v938
        %v940 = vperm.slane %v936, %v939
        %v941 = vsel %vm754, %v928, %v917
        %v943 = vunpack.c.l.s4 1983009808
        %v944 = vunpack.c.0.s8 %v943
        %v945 = vperm.slane %v941, %v944
        %v946 = vrot.slane %v929, 4
        %v947 = vsel %vm754, %v946, %v927
        %v949 = vunpack.c.l.s4 1983009808
        %v950 = vunpack.c.0.s8 %v949
        %v951 = vperm.slane %v947, %v950
        %v952 = vrot.slane %v940, 4
        %v953 = vsel %vm754, %v952, %v934
        %v954 = vrot.slane %v934, 4
        %v955 = vsel %vm754, %v940, %v954
        %v957 = vunpack.c.l.s4 1934713408
        %v958 = vunpack.c.0.s8 %v957
        %v959 = vperm.slane %v953, %v958
        %v961 = vunpack.c.l.s4 1934713408
        %v962 = vunpack.c.0.s8 %v961
        %v963 = vperm.slane %v955, %v962
        %v964 = vrot.slane %v951, 4
        %v965 = vsel %vm754, %v964, %v945
        %v966 = vrot.slane %v945, 4
        %v967 = vsel %vm754, %v951, %v966
        %v969 = vunpack.c.l.s4 1934713408
        %v970 = vunpack.c.0.s8 %v969
        %v971 = vperm.slane %v965, %v970
        %v973 = vunpack.c.l.s4 1934713408
        %v974 = vunpack.c.0.s8 %v973
        %v975 = vperm.slane %v967, %v974
        %v976 = vrot.slane %v971, 4
        %v977 = vsel %vm754, %v976, %v959
        %v978 = vrot.slane %v959, 4
        %v979 = vsel %vm754, %v971, %v978
        %v980 = vrot.slane %v975, 4
        %v981 = vsel %vm754, %v980, %v963
        %v982 = vrot.slane %v963, 4
        %v983 = vsel %vm754, %v975, %v982
        %985 = vrot.lane.b32.xlu0 %v741, 120
        %v986 = vpop.permute.xlu0 %985
        %988 = vrot.lane.b32.xlu0 %v741, 112
        %v989 = vpop.permute.xlu0 %988
        %991 = vrot.lane.b32.xlu0 %v741, 104
        %v992 = vpop.permute.xlu0 %991
        %v994 = vrot.slane %v989, 4
        %v995 = vsel %vm754, %v994, %v741
        %v996 = vrot.slane %v741, 4
        %v997 = vsel %vm754, %v989, %v996
        %v999 = vunpack.c.l.s4 1983009808
        %v1000 = vunpack.c.0.s8 %v999
        %v1001 = vperm.slane %v995, %v1000
        %v1003 = vunpack.c.l.s4 1983009808
        %v1004 = vunpack.c.0.s8 %v1003
        %v1005 = vperm.slane %v997, %v1004
        %v1006 = vrot.slane %v992, 4
        %v1007 = vsel %vm754, %v1006, %v986
        %v1008 = vrot.slane %v986, 4
        %v1009 = vsel %vm754, %v992, %v1008
        %v1011 = vunpack.c.l.s4 1983009808
        %v1012 = vunpack.c.0.s8 %v1011
        %v1013 = vperm.slane %v1007, %v1012
        %v1015 = vunpack.c.l.s4 1983009808
        %v1016 = vunpack.c.0.s8 %v1015
        %v1017 = vperm.slane %v1009, %v1016
        %v1018 = vrot.slane %v1013, 4
        %v1019 = vsel %vm754, %v1018, %v1001
        %v1020 = vrot.slane %v1001, 4
        %v1021 = vsel %vm754, %v1013, %v1020
        %v1023 = vunpack.c.l.s4 1934713408
        %v1024 = vunpack.c.0.s8 %v1023
        %v1025 = vperm.slane %v1019, %v1024
        %v1027 = vunpack.c.l.s4 1934713408
        %v1028 = vunpack.c.0.s8 %v1027
        %v1029 = vperm.slane %v1021, %v1028
        %v1030 = vrot.slane %v1017, 4
        %v1031 = vsel %vm754, %v1030, %v1005
        %v1032 = vrot.slane %v1005, 4
        %v1033 = vsel %vm754, %v1017, %v1032
        %v1035 = vunpack.c.l.s4 1934713408
        %v1036 = vunpack.c.0.s8 %v1035
        %v1037 = vperm.slane %v1031, %v1036
        %v1039 = vunpack.c.l.s4 1934713408
        %v1040 = vunpack.c.0.s8 %v1039
        %v1041 = vperm.slane %v1033, %v1040
        %v1042 = vrot.slane %v1025, 4
        %v1043 = vsel %vm754, 0.0, %v1042
        %v1044 = vrot.slane %v1029, 4
        %v1045 = vsel %vm754, 0.0, %v1044
        %v1046 = vrot.slane %v1037, 4
        %v1047 = vsel %vm754, 0.0, %v1046
        %v1048 = vrot.slane %v1041, 4
        %v1049 = vsel %vm754, 0.0, %v1048
        %v1050 = vsel %vm754, %v1044, %v1025
        %v1052 = vunpack.c.l.s4 1983009808
        %v1053 = vunpack.c.0.s8 %v1052
        %v1054 = vperm.slane %v1050, %v1053
        %v1055 = vrot.slane %v1045, 4
        %v1056 = vsel %vm754, %v1055, %v1043
        %v1058 = vunpack.c.l.s4 1983009808
        %v1059 = vunpack.c.0.s8 %v1058
        %v1060 = vperm.slane %v1056, %v1059
        %v1061 = vsel %vm754, %v1048, %v1037
        %v1063 = vunpack.c.l.s4 1983009808
        %v1064 = vunpack.c.0.s8 %v1063
        %v1065 = vperm.slane %v1061, %v1064
        %v1066 = vrot.slane %v1049, 4
        %v1067 = vsel %vm754, %v1066, %v1047
        %v1069 = vunpack.c.l.s4 1983009808
        %v1070 = vunpack.c.0.s8 %v1069
        %v1071 = vperm.slane %v1067, %v1070
        %v1072 = vrot.slane %v1060, 4
        %v1073 = vsel %vm754, %v1072, %v1054
        %v1074 = vrot.slane %v1054, 4
        %v1075 = vsel %vm754, %v1060, %v1074
        %v1077 = vunpack.c.l.s4 1934713408
        %v1078 = vunpack.c.0.s8 %v1077
        %v1079 = vperm.slane %v1073, %v1078
        %v1081 = vunpack.c.l.s4 1934713408
        %v1082 = vunpack.c.0.s8 %v1081
        %v1083 = vperm.slane %v1075, %v1082
        %v1084 = vrot.slane %v1071, 4
        %v1085 = vsel %vm754, %v1084, %v1065
        %v1086 = vrot.slane %v1065, 4
        %v1087 = vsel %vm754, %v1071, %v1086
        %v1089 = vunpack.c.l.s4 1934713408
        %v1090 = vunpack.c.0.s8 %v1089
        %v1091 = vperm.slane %v1085, %v1090
        %v1093 = vunpack.c.l.s4 1934713408
        %v1094 = vunpack.c.0.s8 %v1093
        %v1095 = vperm.slane %v1087, %v1094
        %v1096 = vrot.slane %v1091, 4
        %v1097 = vsel %vm754, %v1096, %v1079
        %v1098 = vrot.slane %v1079, 4
        %v1099 = vsel %vm754, %v1091, %v1098
        %v1100 = vrot.slane %v1095, 4
        %v1101 = vsel %vm754, %v1100, %v1083
        %v1102 = vrot.slane %v1083, 4
        %v1103 = vsel %vm754, %v1095, %v1102
        %vm1104 = vcmask 64512
        %v1106 = vsel %vm1104, %v857, 0
        %v1109 = vsel %vm1104, %v977, 0
        %1111 = vmatpush.xpose.msra.mxu0 0.0
        %1112 = vmatpush.xpose.msra.mxu0 0.0
        %1113 = vmatpush.xpose.msra.mxu0 0.0
        %1114 = vmatpush.xpose.msra.mxu0 0.0
        %1115 = vmatpush.xpose.msra.mxu0 0.0
        %1116 = vmatpush.xpose.msra.mxu0 0.0
        %1117 = vmatpush.xpose.msra.mxu0 0.0
        %1118 = vmatpush.xpose.msra.mxu0 0.0
        %1119 = vmatpush.xpose.msra.mxu0 0.0
        %1120 = vmatpush.xpose.msra.mxu0 0.0
        %1121 = vmatpush.xpose.msra.mxu0 0.0
        %1122 = vmatpush.xpose.msra.mxu0 0.0
        %1123 = vmatpush.xpose.msra.mxu0 0.0
        %1124 = vmatpush.xpose.msra.mxu0 0.0
        %1125 = vmatpush.xpose.msra.mxu0 0.0
        %1126 = vmatpush.xpose.msra.mxu0 %v1109
        %1127 = vmatmul.f32.gmra.mxu0 %v1106
        %v1128 = vpop.f32.mrf.mxu0
        %v1129 = vadd.f32 0.0, %v1128
        %1130 = vdwg.mxu0
        %v1132 = vsel %vm1104, %v859, 0
        %v1135 = vsel %vm1104, %v979, 0
        %1137 = vmatpush.xpose.msra.mxu0 0.0
        %1138 = vmatpush.xpose.msra.mxu0 0.0
        %1139 = vmatpush.xpose.msra.mxu0 0.0
        %1140 = vmatpush.xpose.msra.mxu0 0.0
        %1141 = vmatpush.xpose.msra.mxu0 0.0
        %1142 = vmatpush.xpose.msra.mxu0 0.0
        %1143 = vmatpush.xpose.msra.mxu0 0.0
        %1144 = vmatpush.xpose.msra.mxu0 0.0
        %1145 = vmatpush.xpose.msra.mxu0 0.0
        %1146 = vmatpush.xpose.msra.mxu0 0.0
        %1147 = vmatpush.xpose.msra.mxu0 0.0
        %1148 = vmatpush.xpose.msra.mxu0 0.0
        %1149 = vmatpush.xpose.msra.mxu0 0.0
        %1150 = vmatpush.xpose.msra.mxu0 0.0
        %1151 = vmatpush.xpose.msra.mxu0 0.0
        %1152 = vmatpush.xpose.msra.mxu0 %v1135
        %1153 = vmatmul.f32.gmra.mxu0 %v1132
        %v1154 = vpop.f32.mrf.mxu0
        %v1155 = vadd.f32 0.0, %v1154
        %1156 = vdwg.mxu0
        %v1158 = vsel %vm1104, %v861, 0
        %v1161 = vsel %vm1104, %v981, 0
        %1163 = vmatpush.xpose.msra.mxu0 0.0
        %1164 = vmatpush.xpose.msra.mxu0 0.0
        %1165 = vmatpush.xpose.msra.mxu0 0.0
        %1166 = vmatpush.xpose.msra.mxu0 0.0
        %1167 = vmatpush.xpose.msra.mxu0 0.0
        %1168 = vmatpush.xpose.msra.mxu0 0.0
        %1169 = vmatpush.xpose.msra.mxu0 0.0
        %1170 = vmatpush.xpose.msra.mxu0 0.0
        %1171 = vmatpush.xpose.msra.mxu0 0.0
        %1172 = vmatpush.xpose.msra.mxu0 0.0
        %1173 = vmatpush.xpose.msra.mxu0 0.0
        %1174 = vmatpush.xpose.msra.mxu0 0.0
        %1175 = vmatpush.xpose.msra.mxu0 0.0
        %1176 = vmatpush.xpose.msra.mxu0 0.0
        %1177 = vmatpush.xpose.msra.mxu0 0.0
        %1178 = vmatpush.xpose.msra.mxu0 %v1161
        %1179 = vmatmul.f32.gmra.mxu0 %v1158
        %v1180 = vpop.f32.mrf.mxu0
        %v1181 = vadd.f32 0.0, %v1180
        %1182 = vdwg.mxu0
        %v1184 = vsel %vm1104, %v863, 0
        %v1187 = vsel %vm1104, %v983, 0
        %1189 = vmatpush.xpose.msra.mxu0 0.0
        %1190 = vmatpush.xpose.msra.mxu0 0.0
        %1191 = vmatpush.xpose.msra.mxu0 0.0
        %1192 = vmatpush.xpose.msra.mxu0 0.0
        %1193 = vmatpush.xpose.msra.mxu0 0.0
        %1194 = vmatpush.xpose.msra.mxu0 0.0
        %1195 = vmatpush.xpose.msra.mxu0 0.0
        %1196 = vmatpush.xpose.msra.mxu0 0.0
        %1197 = vmatpush.xpose.msra.mxu0 0.0
        %1198 = vmatpush.xpose.msra.mxu0 0.0
        %1199 = vmatpush.xpose.msra.mxu0 0.0
        %1200 = vmatpush.xpose.msra.mxu0 0.0
        %1201 = vmatpush.xpose.msra.mxu0 0.0
        %1202 = vmatpush.xpose.msra.mxu0 0.0
        %1203 = vmatpush.xpose.msra.mxu0 0.0
        %1204 = vmatpush.xpose.msra.mxu0 %v1187
        %1205 = vmatmul.f32.gmra.mxu0 %v1184
        %v1206 = vpop.f32.mrf.mxu0
        %v1207 = vadd.f32 0.0, %v1206
        %1208 = vdwg.mxu0
        %v1209 = vsel %vm1104, %v1129, -inf
        %1210 = vmax.xlane.f32.xlu0 %v1209
        %v1211 = vpop.xlane.xlu0 %1210
        %v1212 = vsel %vm1104, %v1155, -inf
        %1213 = vmax.xlane.f32.xlu0 %v1212
        %v1214 = vpop.xlane.xlu0 %1213
        %v1215 = vsel %vm1104, %v1181, -inf
        %1216 = vmax.xlane.f32.xlu0 %v1215
        %v1217 = vpop.xlane.xlu0 %1216
        %v1218 = vsel %vm1104, %v1207, -inf
        %1219 = vmax.xlane.f32.xlu0 %v1218
        %v1220 = vpop.xlane.xlu0 %1219
        %v1221 = vsub.f32 %v1129, %v1211
        %v1222 = vsub.f32 %v1155, %v1214
        %v1223 = vsub.f32 %v1181, %v1217
        %v1224 = vsub.f32 %v1207, %v1220
        %v1225 = vmul.f32 %v1221, 1.442695
        %v1226 = vpow.pop %v1225
        %v1227 = vmul.f32 %v1222, 1.442695
        %v1228 = vpow.pop %v1227
        %v1229 = vmul.f32 %v1223, 1.442695
        %v1230 = vpow.pop %v1229
        %v1231 = vmul.f32 %v1224, 1.442695
        %v1232 = vpow.pop %v1231
        %v1233 = vsel %vm1104, %v1226, 0.0
        %1234 = vadd.xlane.f32.xlu0 %v1233
        %v1235 = vpop.xlane.xlu0 %1234
        %v1236 = vsel %vm1104, %v1228, 0.0
        %1237 = vadd.xlane.f32.xlu0 %v1236
        %v1238 = vpop.xlane.xlu0 %1237
        %v1239 = vsel %vm1104, %v1230, 0.0
        %1240 = vadd.xlane.f32.xlu0 %v1239
        %v1241 = vpop.xlane.xlu0 %1240
        %v1242 = vsel %vm1104, %v1232, 0.0
        %1243 = vadd.xlane.f32.xlu0 %v1242
        %v1244 = vpop.xlane.xlu0 %1243
        %v1245 = vrcp.pop %v1235
        %v1246 = vrcp.pop %v1238
        %v1247 = vrcp.pop %v1241
        %v1248 = vrcp.pop %v1244
        %v1249 = vmul.f32 %v1235, %v1245
        %v1250 = vmul.f32 %v1238, %v1246
        %v1251 = vmul.f32 %v1241, %v1247
        %v1252 = vmul.f32 %v1244, %v1248
        %v1253 = vsub.f32 2.0, %v1249
        %v1254 = vsub.f32 2.0, %v1250
        %v1255 = vsub.f32 2.0, %v1251
        %v1256 = vsub.f32 2.0, %v1252
        %v1257 = vmul.f32 %v1245, %v1253
        %v1258 = vmul.f32 %v1246, %v1254
        %v1259 = vmul.f32 %v1247, %v1255
        %v1260 = vmul.f32 %v1248, %v1256
        %v1261 = vmul.f32 %v1226, %v1257
        %v1262 = vmul.f32 %v1228, %v1258
        %v1263 = vmul.f32 %v1230, %v1259
        %v1264 = vmul.f32 %v1232, %v1260
        %1265 = vst.msk [vmem:[%s657] sm:$0xff] %vm1104, %v1261
        %1266 = vst.msk [vmem:[%s657 + $0x8] sm:$0xff] %vm1104, %v1262
        %1267 = vst.msk [vmem:[%s657 + $0x10] sm:$0xff] %vm1104, %v1263
        %1268 = vst.msk [vmem:[%s657 + $0x18] sm:$0xff] %vm1104, %v1264
        %v1270 = vsel %vm1104, %v1261, 0
        %1272 = vmatpush.msra.mxu0 0.0
        %1273 = vmatpush.msra.mxu0 0.0
        %1274 = vmatpush.msra.mxu0 0.0
        %1275 = vmatpush.msra.mxu0 0.0
        %1276 = vmatpush.msra.mxu0 0.0
        %1277 = vmatpush.msra.mxu0 0.0
        %1278 = vmatpush.msra.mxu0 0.0
        %1279 = vmatpush.msra.mxu0 0.0
        %1280 = vmatpush.msra.mxu0 0.0
        %1281 = vmatpush.msra.mxu0 0.0
        %1282 = vmatpush.msra.mxu0 0.0
        %1283 = vmatpush.msra.mxu0 0.0
        %1284 = vmatpush.msra.mxu0 0.0
        %1285 = vmatpush.msra.mxu0 0.0
        %1286 = vmatpush.msra.mxu0 0.0
        %1287 = vmatpush.msra.mxu0 %v1097
        %1288 = vmatmul.f32.gmra.mxu0 %v1270
        %v1289 = vpop.f32.mrf.mxu0
        %v1290 = vadd.f32 0.0, %v1289
        %1291 = vdwg.mxu0
        %v1293 = vsel %vm1104, %v1262, 0
        %1295 = vmatpush.msra.mxu0 0.0
        %1296 = vmatpush.msra.mxu0 0.0
        %1297 = vmatpush.msra.mxu0 0.0
        %1298 = vmatpush.msra.mxu0 0.0
        %1299 = vmatpush.msra.mxu0 0.0
        %1300 = vmatpush.msra.mxu0 0.0
        %1301 = vmatpush.msra.mxu0 0.0
        %1302 = vmatpush.msra.mxu0 0.0
        %1303 = vmatpush.msra.mxu0 0.0
        %1304 = vmatpush.msra.mxu0 0.0
        %1305 = vmatpush.msra.mxu0 0.0
        %1306 = vmatpush.msra.mxu0 0.0
        %1307 = vmatpush.msra.mxu0 0.0
        %1308 = vmatpush.msra.mxu0 0.0
        %1309 = vmatpush.msra.mxu0 0.0
        %1310 = vmatpush.msra.mxu0 %v1099
        %1311 = vmatmul.f32.gmra.mxu0 %v1293
        %v1312 = vpop.f32.mrf.mxu0
        %v1313 = vadd.f32 0.0, %v1312
        %1314 = vdwg.mxu0
        %v1316 = vsel %vm1104, %v1263, 0
        %1318 = vmatpush.msra.mxu0 0.0
        %1319 = vmatpush.msra.mxu0 0.0
        %1320 = vmatpush.msra.mxu0 0.0
        %1321 = vmatpush.msra.mxu0 0.0
        %1322 = vmatpush.msra.mxu0 0.0
        %1323 = vmatpush.msra.mxu0 0.0
        %1324 = vmatpush.msra.mxu0 0.0
        %1325 = vmatpush.msra.mxu0 0.0
        %1326 = vmatpush.msra.mxu0 0.0
        %1327 = vmatpush.msra.mxu0 0.0
        %1328 = vmatpush.msra.mxu0 0.0
        %1329 = vmatpush.msra.mxu0 0.0
        %1330 = vmatpush.msra.mxu0 0.0
        %1331 = vmatpush.msra.mxu0 0.0
        %1332 = vmatpush.msra.mxu0 0.0
        %1333 = vmatpush.msra.mxu0 %v1101
        %1334 = vmatmul.f32.gmra.mxu0 %v1316
        %v1335 = vpop.f32.mrf.mxu0
        %v1336 = vadd.f32 0.0, %v1335
        %1337 = vdwg.mxu0
        %v1339 = vsel %vm1104, %v1264, 0
        %1341 = vmatpush.msra.mxu0 0.0
        %1342 = vmatpush.msra.mxu0 0.0
        %1343 = vmatpush.msra.mxu0 0.0
        %1344 = vmatpush.msra.mxu0 0.0
        %1345 = vmatpush.msra.mxu0 0.0
        %1346 = vmatpush.msra.mxu0 0.0
        %1347 = vmatpush.msra.mxu0 0.0
        %1348 = vmatpush.msra.mxu0 0.0
        %1349 = vmatpush.msra.mxu0 0.0
        %1350 = vmatpush.msra.mxu0 0.0
        %1351 = vmatpush.msra.mxu0 0.0
        %1352 = vmatpush.msra.mxu0 0.0
        %1353 = vmatpush.msra.mxu0 0.0
        %1354 = vmatpush.msra.mxu0 0.0
        %1355 = vmatpush.msra.mxu0 0.0
        %1356 = vmatpush.msra.mxu0 %v1103
        %1357 = vmatmul.f32.gmra.mxu0 %v1339
        %v1358 = vpop.f32.mrf.mxu0
        %v1359 = vadd.f32 0.0, %v1358
        %1360 = vdwg.mxu0
        %v1361 = vrot.slane %v1336, 4
        %v1362 = vsel %vm754, %v1361, %v1290
        %v1363 = vrot.slane %v1290, 4
        %v1364 = vsel %vm754, %v1336, %v1363
        %v1366 = vunpack.c.l.s4 1983009808
        %v1367 = vunpack.c.0.s8 %v1366
        %v1368 = vperm.slane %v1362, %v1367
        %v1370 = vunpack.c.l.s4 1983009808
        %v1371 = vunpack.c.0.s8 %v1370
        %v1372 = vperm.slane %v1364, %v1371
        %v1373 = vrot.slane %v1359, 4
        %v1374 = vsel %vm754, %v1373, %v1313
        %v1375 = vrot.slane %v1313, 4
        %v1376 = vsel %vm754, %v1359, %v1375
        %v1378 = vunpack.c.l.s4 1983009808
        %v1379 = vunpack.c.0.s8 %v1378
        %v1380 = vperm.slane %v1374, %v1379
        %v1382 = vunpack.c.l.s4 1983009808
        %v1383 = vunpack.c.0.s8 %v1382
        %v1384 = vperm.slane %v1376, %v1383
        %v1385 = vrot.slane %v1380, 4
        %v1386 = vsel %vm754, %v1385, %v1368
        %v1387 = vrot.slane %v1368, 4
        %v1388 = vsel %vm754, %v1380, %v1387
        %v1390 = vunpack.c.l.s4 1934713408
        %v1391 = vunpack.c.0.s8 %v1390
        %v1392 = vperm.slane %v1386, %v1391
        %v1394 = vunpack.c.l.s4 1934713408
        %v1395 = vunpack.c.0.s8 %v1394
        %v1396 = vperm.slane %v1388, %v1395
        %v1397 = vrot.slane %v1384, 4
        %v1398 = vsel %vm754, %v1397, %v1372
        %v1399 = vrot.slane %v1372, 4
        %v1400 = vsel %vm754, %v1384, %v1399
        %v1402 = vunpack.c.l.s4 1934713408
        %v1403 = vunpack.c.0.s8 %v1402
        %v1404 = vperm.slane %v1398, %v1403
        %v1406 = vunpack.c.l.s4 1934713408
        %v1407 = vunpack.c.0.s8 %v1406
        %v1408 = vperm.slane %v1400, %v1407
        %v1409 = vrot.slane %v1392, 4
        %v1410 = vsel %vm754, 0.0, %v1409
        %v1411 = vrot.slane %v1396, 4
        %v1412 = vsel %vm754, 0.0, %v1411
        %v1413 = vrot.slane %v1404, 4
        %v1414 = vsel %vm754, 0.0, %v1413
        %v1415 = vrot.slane %v1408, 4
        %v1416 = vsel %vm754, 0.0, %v1415
        %v1417 = vsel %vm754, %v1411, %v1392
        %v1419 = vunpack.c.l.s4 1983009808
        %v1420 = vunpack.c.0.s8 %v1419
        %v1421 = vperm.slane %v1417, %v1420
        %v1422 = vrot.slane %v1412, 4
        %v1423 = vsel %vm754, %v1422, %v1410
        %v1425 = vunpack.c.l.s4 1983009808
        %v1426 = vunpack.c.0.s8 %v1425
        %v1427 = vperm.slane %v1423, %v1426
        %v1428 = vsel %vm754, %v1415, %v1404
        %v1430 = vunpack.c.l.s4 1983009808
        %v1431 = vunpack.c.0.s8 %v1430
        %v1432 = vperm.slane %v1428, %v1431
        %v1433 = vrot.slane %v1416, 4
        %v1434 = vsel %vm754, %v1433, %v1414
        %v1436 = vunpack.c.l.s4 1983009808
        %v1437 = vunpack.c.0.s8 %v1436
        %v1438 = vperm.slane %v1434, %v1437
        %v1439 = vrot.slane %v1427, 4
        %v1440 = vsel %vm754, %v1439, %v1421
        %v1441 = vrot.slane %v1421, 4
        %v1442 = vsel %vm754, %v1427, %v1441
        %v1444 = vunpack.c.l.s4 1934713408
        %v1445 = vunpack.c.0.s8 %v1444
        %v1446 = vperm.slane %v1440, %v1445
        %v1448 = vunpack.c.l.s4 1934713408
        %v1449 = vunpack.c.0.s8 %v1448
        %v1450 = vperm.slane %v1442, %v1449
        %v1451 = vrot.slane %v1438, 4
        %v1452 = vsel %vm754, %v1451, %v1432
        %v1453 = vrot.slane %v1432, 4
        %v1454 = vsel %vm754, %v1438, %v1453
        %v1456 = vunpack.c.l.s4 1934713408
        %v1457 = vunpack.c.0.s8 %v1456
        %v1458 = vperm.slane %v1452, %v1457
        %v1460 = vunpack.c.l.s4 1934713408
        %v1461 = vunpack.c.0.s8 %v1460
        %v1462 = vperm.slane %v1454, %v1461
        %v1463 = vrot.slane %v1458, 4
        %v1464 = vsel %vm754, %v1463, %v1446
        %v1465 = vrot.slane %v1446, 4
        %v1466 = vsel %vm754, %v1458, %v1465
        %v1467 = vrot.slane %v1462, 4
        %v1468 = vsel %vm754, %v1467, %v1450
        %v1469 = vrot.slane %v1450, 4
        %v1470 = vsel %vm754, %v1462, %v1469
        %1472 = vrot.lane.b32.xlu0 %v1466, 8
        %v1473 = vpop.permute.xlu0 %1472
        %1476 = vrot.lane.b32.xlu0 %v1468, 16
        %v1477 = vpop.permute.xlu0 %1476
        %1480 = vrot.lane.b32.xlu0 %v1470, 24
        %v1481 = vpop.permute.xlu0 %1480
        %v1483 = vsel %vm1104, %v1464, %v1473
        %vm1484 = vcmask 130048
        %v1485 = vsel %vm1484, %v1483, %v1477
        %vm1486 = vcmask 195584
        %v1487 = vsel %vm1486, %v1485, %v1481
        %v1488 = vld [vmem:[#allocation8] sm:$0xff]
        %v1489 = vld [vmem:[#allocation8 + $0x8] sm:$0xff]
        %v1490 = vld [vmem:[#allocation8 + $0x10] sm:$0xff]
        %v1491 = vld [vmem:[#allocation8 + $0x18] sm:$0xff]
        %v1493 = vsel %vm665, %v1487, 0
        %1495 = vmatpush.msra.mxu0 0.0
        %1496 = vmatpush.msra.mxu0 0.0
        %1497 = vmatpush.msra.mxu0 0.0
        %1498 = vmatpush.msra.mxu0 0.0
        %1499 = vmatpush.msra.mxu0 0.0
        %1500 = vmatpush.msra.mxu0 0.0
        %1501 = vmatpush.msra.mxu0 0.0
        %1502 = vmatpush.msra.mxu0 0.0
        %1503 = vmatpush.msra.mxu0 0.0
        %1504 = vmatpush.msra.mxu0 0.0
        %1505 = vmatpush.msra.mxu0 0.0
        %1506 = vmatpush.msra.mxu0 0.0
        %1507 = vmatpush.msra.mxu0 %v1491
        %1508 = vmatpush.msra.mxu0 %v1490
        %1509 = vmatpush.msra.mxu0 %v1489
        %1510 = vmatpush.msra.mxu0 %v1488
        %1511 = vmatmul.f32.gmra.mxu0 %v1493
        %v1512 = vpop.f32.mrf.mxu0
        %v1513 = vadd.f32 %v658, %v1512
        %1514 = vdwg.mxu0
        %v1515 = vld [vmem:[%s7] sm:$0x1]
        %v1516 = vld [vmem:[%s8] sm:$0x1]
        %v1517 = vsel %vm665, %v1513, 0.0
        %1518 = vadd.xlane.f32.xlu0 %v1517
        %v1519 = vpop.xlane.xlu0 %1518
        %v1520 = vrcp.pop 32.0
        %v1521 = vmul.f32 32.0, %v1520
        %v1522 = vsub.f32 1.0, %v1521
        %v1523 = vmul.f32 %v1520, %v1522
        %v1524 = vadd.f32 %v1520, %v1523
        %vm1525 = vweird.f32 %v1520
        %v1526 = vsel %vm1525, %v1520, %v1524
        %v1527 = vmul.f32 %v1519, %v1526
        %v1528 = vsub.f32 %v1513, %v1527
        %v1529 = vmul.f32 %v1528, %v1528
        %v1530 = vsel %vm665, %v1529, 0.0
        %1531 = vadd.xlane.f32.xlu0 %v1530
        %v1532 = vpop.xlane.xlu0 %1531
        %v1533 = vmul.f32 %v1532, %v1526
        %v1534 = vadd.f32 %v1533, 1e-06
        %v1535 = vrsqrt.pop %v1534
        %v1536 = vmul.f32 %v1535, %v1534
        %v1537 = vmul.f32 %v1536, %v1535
        %v1538 = vmul.f32 0.5, %v1537
        %v1539 = vsub.f32 1.5, %v1538
        %v1540 = vmul.f32 %v1535, %v1539
        %vm1541 = vweird.f32 %v1534
        %vm1542 = vweird.f32 %v1535
        %vm1543 = vmor %vm1541, %vm1542
        %v1544 = vsel %vm1543, %v1535, %v1540
        %v1545 = vmul.f32 %v1528, %v1544
        %v1547 = vperm.slane %v1515, 0
        %v1549 = vmul.f32 %v1545, %v1547
        %v1551 = vperm.slane %v1516, 0
        %v1553 = vadd.f32 %v1549, %v1551
        %v1554 = vld [vmem:[#allocation10] sm:$0xff]
        %v1555 = vld [vmem:[#allocation10 + $0x8] sm:$0xff]
        %v1556 = vld [vmem:[#allocation10 + $0x10] sm:$0xff]
        %v1557 = vld [vmem:[#allocation10 + $0x18] sm:$0xff]
        %v1558 = vld [vmem:[%s10] sm:$0x1]
        %v1560 = vperm.slane %v1558, 0
        %v1563 = vsel %vm665, %v1553, 0
        %1565 = vmatpush.msra.mxu0 0.0
        %1566 = vmatpush.msra.mxu0 0.0
        %1567 = vmatpush.msra.mxu0 0.0
        %1568 = vmatpush.msra.mxu0 0.0
        %1569 = vmatpush.msra.mxu0 0.0
        %1570 = vmatpush.msra.mxu0 0.0
        %1571 = vmatpush.msra.mxu0 0.0
        %1572 = vmatpush.msra.mxu0 0.0
        %1573 = vmatpush.msra.mxu0 0.0
        %1574 = vmatpush.msra.mxu0 0.0
        %1575 = vmatpush.msra.mxu0 0.0
        %1576 = vmatpush.msra.mxu0 0.0
        %1577 = vmatpush.msra.mxu0 %v1557
        %1578 = vmatpush.msra.mxu0 %v1556
        %1579 = vmatpush.msra.mxu0 %v1555
        %1580 = vmatpush.msra.mxu0 %v1554
        %1581 = vmatmul.f32.gmra.mxu0 %v1563
        %v1582 = vpop.f32.mrf.mxu0
        %v1583 = vadd.f32 %v1560, %v1582
        %1584 = vdwg.mxu0
        %v1585 = vmax.f32 %v1583, 0.0
        %v1586 = vld [vmem:[%s11] sm:$0xff]
        %v1587 = vld [vmem:[%s11 + $0x8] sm:$0xff]
        %v1588 = vld [vmem:[%s11 + $0x10] sm:$0xff]
        %v1589 = vld [vmem:[%s11 + $0x18] sm:$0xff]
        %v1590 = vld [vmem:[%s11 + $0x20] sm:$0xff]
        %v1591 = vld [vmem:[%s11 + $0x28] sm:$0xff]
        %v1592 = vld [vmem:[%s11 + $0x30] sm:$0xff]
        %v1593 = vld [vmem:[%s11 + $0x38] sm:$0xff]
        %v1594 = vld [vmem:[%s12] sm:$0x1]
        %v1596 = vperm.slane %v1594, 0
        %vm1598 = vcmask 523264
        %v1600 = vsel %vm1598, %v1585, 0
        %1602 = vmatpush.msra.mxu0 0.0
        %1603 = vmatpush.msra.mxu0 0.0
        %1604 = vmatpush.msra.mxu0 0.0
        %1605 = vmatpush.msra.mxu0 0.0
        %1606 = vmatpush.msra.mxu0 0.0
        %1607 = vmatpush.msra.mxu0 0.0
        %1608 = vmatpush.msra.mxu0 0.0
        %1609 = vmatpush.msra.mxu0 0.0
        %1610 = vmatpush.msra.mxu0 %v1593
        %1611 = vmatpush.msra.mxu0 %v1592
        %1612 = vmatpush.msra.mxu0 %v1591
        %1613 = vmatpush.msra.mxu0 %v1590
        %1614 = vmatpush.msra.mxu0 %v1589
        %1615 = vmatpush.msra.mxu0 %v1588
        %1616 = vmatpush.msra.mxu0 %v1587
        %1617 = vmatpush.msra.mxu0 %v1586
        %1618 = vmatmul.f32.gmra.mxu0 %v1600
        %v1619 = vpop.f32.mrf.mxu0
        %v1620 = vadd.f32 %v1596, %v1619
        %1621 = vdwg.mxu0
        %v1622 = vadd.f32 %v1620, %v1553
        %v1623 = vld [vmem:[%s13] sm:$0x1]
        %v1624 = vld [vmem:[%s14] sm:$0x1]
        %v1625 = vsel %vm665, %v1622, 0.0
        %1626 = vadd.xlane.f32.xlu0 %v1625
        %v1627 = vpop.xlane.xlu0 %1626
        %v1628 = vmul.f32 %v1627, %v1526
        %v1629 = vsub.f32 %v1622, %v1628
        %v1630 = vmul.f32 %v1629, %v1629
        %v1631 = vsel %vm665, %v1630, 0.0
        %1632 = vadd.xlane.f32.xlu0 %v1631
        %v1633 = vpop.xlane.xlu0 %1632
        %v1634 = vmul.f32 %v1633, %v1526
        %v1635 = vadd.f32 %v1634, 1e-06
        %v1636 = vrsqrt.pop %v1635
        %v1637 = vmul.f32 %v1636, %v1635
        %v1638 = vmul.f32 %v1637, %v1636
        %v1639 = vmul.f32 0.5, %v1638
        %v1640 = vsub.f32 1.5, %v1639
        %v1641 = vmul.f32 %v1636, %v1640
        %vm1642 = vweird.f32 %v1635
        %vm1643 = vweird.f32 %v1636
        %vm1644 = vmor %vm1642, %vm1643
        %v1645 = vsel %vm1644, %v1636, %v1641
        %v1646 = vmul.f32 %v1629, %v1645
        %v1648 = vperm.slane %v1623, 0
        %v1650 = vmul.f32 %v1646, %v1648
        %v1652 = vperm.slane %v1624, 0
        %v1654 = vadd.f32 %v1650, %v1652
        %1655 = vst.msk [vmem:[%s650] sm:$0xff] %vm665, %v1654
        %s1656 = sand.u32 %s379, 1
        %s1657 = scalar_lea.sflag [#allocation4], %s1656
        %s1658 = sand.u32 %s379, 1
        %s1659 = smul.addr %s1658, 8
        %s1660 = scalar_lea.vmem [#allocation11], %s1659
        %s1661 = sand.u32 %s405, 1
        %s1662 = scalar_lea.sflag [#allocation13], %s1661
        %s1663 = sand.u32 %s405, 1
        %s1664 = smul.addr %s1663, 32
        %s1665 = scalar_lea.vmem [#allocation12], %s1664
        // Predicated region
        $region101: #{tpu_custom_call.1} parent=79 // pred_check
          %p1666 = pneg %p389
        $region102: #{tpu_custom_call.1} parent=79 // pred_check_branch
          %1668 = sbr.rel (%p1666) target = $region104
        $region103: #{tpu_custom_call.1} parent=79 // pred_region
          %1670 = vsyncadd %s1657, 0
          %s1671 = smul.addr %s41, 8
          %s1672 = scalar_lea.hbm %s15, %s1671
          %s1674 = sshll.u32 %s1660, 4
          %s1675 = int_to_ptr.vmem [resolvable:$true] %s1674
          %s1676 = sshll.u32 %s1672, 4
          %s1677 = int_to_ptr.hbm [resolvable:$true] %s1676
          %1679 = dma.vmem_to_hbm [thread:$0]  %s1675, 128, %s1677, %s1657
        $region104: #{tpu_custom_call.1} parent=79 // pred_fallthru
          _
        // Predicated region
        $region105: #{tpu_custom_call.1} parent=79 // pred_check
          %p1680 = pneg %p415
        $region106: #{tpu_custom_call.1} parent=79 // pred_check_branch
          %1682 = sbr.rel (%p1680) target = $region108
        $region107: #{tpu_custom_call.1} parent=79 // pred_region
          %1684 = vsyncadd %s1662, 0
          %s1685 = smul.addr %s41, 4
          %s1686 = smul.addr %s1685, 8
          %s1687 = scalar_lea.hbm %s16, %s1686
          %s1688 = sshll.u32 %s1665, 4
          %s1689 = int_to_ptr.vmem [resolvable:$true] %s1688
          %s1690 = sshll.u32 %s1687, 4
          %s1691 = int_to_ptr.hbm [resolvable:$true] %s1690
          %1696 = dma.vmem_to_hbm [thread:$0]  %s1689, 512, %s1691, %s1662, 128, 128, 8
        $region108: #{tpu_custom_call.1} parent=79 // pred_fallthru
          _
      $region80: #{tpu_custom_call.1} parent=5 // pred_fallthru
        _
      %p1697 = scmp.le.s32.totalorder 2, %s36
      // Predicated region
      $region109: #{tpu_custom_call.1} parent=5 // pred_check
        %p1698 = pneg %p1697
      $region110: #{tpu_custom_call.1} parent=5 // pred_check_branch
        %1700 = sbr.rel (%p1698) target = $region112
      $region111: #{tpu_custom_call.1} parent=5 // pred_region
        %s1701 = ssub.s32 %s36, 2
        // Predicated region
        $region113: #{tpu_custom_call.1} parent=111 // pred_check
          %p1702 = pneg %p395
        $region114: #{tpu_custom_call.1} parent=111 // pred_check_branch
          %1704 = sbr.rel (%p1702) target = $region116
        $region115: #{tpu_custom_call.1} parent=111 // pred_region
          %s1705 = sand.u32 %s380, 1
          %s1706 = scalar_lea.sflag [#allocation4], %s1705
          %s1707 = sand.u32 %s380, 1
          %s1708 = smul.addr %s1707, 8
          %s1709 = scalar_lea.vmem [#allocation11], %s1708
          %1711 = dma.done %s1706, 128
        $region116: #{tpu_custom_call.1} parent=111 // pred_fallthru
          _
        // Predicated region
        $region117: #{tpu_custom_call.1} parent=111 // pred_check
          %p1712 = pneg %p421
        $region118: #{tpu_custom_call.1} parent=111 // pred_check_branch
          %1714 = sbr.rel (%p1712) target = $region120
        $region119: #{tpu_custom_call.1} parent=111 // pred_region
          %s1715 = sand.u32 %s406, 1
          %s1716 = scalar_lea.sflag [#allocation13], %s1715
          %s1717 = sand.u32 %s406, 1
          %s1718 = smul.addr %s1717, 32
          %s1719 = scalar_lea.vmem [#allocation12], %s1718
          %1721 = dma.done %s1716, 512
        $region120: #{tpu_custom_call.1} parent=111 // pred_fallthru
          _
      $region112: #{tpu_custom_call.1} parent=5 // pred_fallthru
        _
    $region6: #{tpu_custom_call.1} parent=1 // loop_footer
      %s40 = sadd.s32 1, %s36
    $region7: #{tpu_custom_call.1} parent=1 // loop_footer_branch
      %35 = sbr.rel target = $region3
    $region8: #{tpu_custom_call.1} parent=1 // loop_exit
      _
    %1722 = vsyncpa [#allocation3], 1
    %s1723 = scalar_lea.sflag [#allocation3], 1
    %1724 = vsyncpa %s1723, 1
    %1725 = vsyncpa [#allocation6], 1
    %s1726 = scalar_lea.sflag [#allocation6], 1
    %1727 = vsyncpa %s1726, 1
    %1728 = vsyncpa [#allocation9], 1
    %1729 = vsyncpa [#allocation4], 1
    %s1730 = scalar_lea.sflag [#allocation4], 1
    %1731 = vsyncpa %s1730, 1
    %1732 = vsyncpa [#allocation13], 1
    %s1733 = scalar_lea.sflag [#allocation13], 1
    %1734 = vsyncpa %s1733, 1

</llo_original>
